<compile_context>
chip_gen: v5e
topology: v5e:2x2
jax: 0.10.0
libtpu: 0.0.40
codegen_flags: <defaults>
</compile_context>

<pallas_src>
import jax
import jax.numpy as jnp
from jax import lax
from jax.experimental import pallas as pl
from jax.experimental.pallas import tpu as pltpu


def _recurrent_encoder_kernel(x_ref, wih_f_ref, whh_f_ref, b_f_ref,
                              wih_r_ref, whh_r_ref, b_r_ref, ctx_ref,
                              nt_out, hn_out, alpha_out,
                              xg_f, xg_r, out_f, out_r):
    S, B, H = out_f.shape

    def sigmoid(z):
        # logistic(z) == 0.5*(1 + tanh(z/2)); tanh lives on the EUP slot, so no
        # full-precision VPU divide on the serial recurrence path.
        return 0.5 * jnp.tanh(0.5 * z) + 0.5

    # ---- Phase 1: input-side gate pre-activations for all timesteps ----------
    # x2d rows are ordered k = s*B + b (time-major flattened). One matmul per
    # gate/direction replaces 2*S per-step input matmuls; bias broadcast once.
    x2d = x_ref[...]                                            # (S*B, I)
    for k in range(4):
        xg_f[k] = (jnp.dot(x2d, wih_f_ref[k],
                           preferred_element_type=jnp.float32) + b_f_ref[k])
        xg_r[k] = (jnp.dot(x2d, wih_r_ref[k],
                           preferred_element_type=jnp.float32) + b_r_ref[k])

    whh_f = [whh_f_ref[k] for k in range(4)]                    # 4 x (H, H)
    whh_r = [whh_r_ref[k] for k in range(4)]

    def lstm_cell(h, c, xg_dir, whh, row0):
        # Per-gate (B, H) pre-activation: recurrent matmul + precomputed input part.
        pre = [xg_dir[k, pl.ds(row0, B), :]
               + jnp.dot(h, whh[k], preferred_element_type=jnp.float32)
               for k in range(4)]
        i_g = sigmoid(pre[0])
        f_g = sigmoid(pre[1])
        g_g = jnp.tanh(pre[2])
        o_g = sigmoid(pre[3])
        c_new = f_g * c + i_g * g_g
        h_new = o_g * jnp.tanh(c_new)
        return h_new, c_new

    # ---- Phase 2: recurrence; fwd & rev interleaved in one unrolled loop -----
    def step(t, carry):
        h_f, c_f, h_r, c_r = carry
        tr = S - 1 - t
        h_f, c_f = lstm_cell(h_f, c_f, xg_f, whh_f, t * B)
        h_r, c_r = lstm_cell(h_r, c_r, xg_r, whh_r, tr * B)
        out_f[t] = h_f
        out_r[tr] = h_r
        return (h_f, c_f, h_r, c_r)

    z = jnp.zeros((B, H), jnp.float32)
    h_f, c_f, h_r, c_r = lax.fori_loop(0, S, step, (z, z, z, z), unroll=True)

    # nn.LSTM h_n: (num_layers * num_directions, B, H) = (2, B, H)
    hn_out[0] = h_f
    hn_out[1] = h_r

    # ---- Phase 3: rec_attention ----------------------------------------------
    out_f_v = out_f[...]                                        # (S, B, H)
    out_r_v = out_r[...]
    ctx = ctx_ref[...]                                          # (1, 2H)
    ctx_f = ctx[:, 0:H]
    ctx_r = ctx[:, H:2 * H]

    # batch_product(iput, context): scores[s, b] = <lstm_out[s, b, :], ctx>
    scores = (jnp.sum(out_f_v * ctx_f, axis=-1)
              + jnp.sum(out_r_v * ctx_r, axis=-1))              # (S, B)

    # nn.Softmax(dim=1): softmax over the batch axis of the (S, B) scores.
    m = jnp.max(scores, axis=1, keepdims=True)
    e = jnp.exp(scores - m)
    alpha = e / jnp.sum(e, axis=1, keepdims=True)               # (S, B)
    alpha_out[...] = alpha

    # repres = bmm(alpha.view(B,1,S), iput.reshape(B,S,2H)): torch's row-major
    # reinterpretation sends flat index k = s*B + b to output row p = k // S.
    # Build that ownership as a mask and contract with one batched matmul
    # (no in-kernel value reshapes, no Python B*S loop).
    s_idx = lax.broadcasted_iota(jnp.int32, (S, B, B), 0)
    p_idx = lax.broadcasted_iota(jnp.int32, (S, B, B), 1)       # output row p
    b_idx = lax.broadcasted_iota(jnp.int32, (S, B, B), 2)
    flat = s_idx * B + b_idx
    owned = jnp.logical_and(flat >= p_idx * S, flat < p_idx * S + S)
    w = jnp.where(owned, alpha[:, None, :], 0.0)                # (S, P=B, B)

    nt_f = jnp.sum(jnp.einsum('spb,sbh->sph', w, out_f_v,
                              preferred_element_type=jnp.float32), axis=0)  # (B, H)
    nt_r = jnp.sum(jnp.einsum('spb,sbh->sph', w, out_r_v,
                              preferred_element_type=jnp.float32), axis=0)  # (B, H)
    nt_out[...] = jnp.concatenate([nt_f, nt_r], axis=1)         # (B, 2H) lane-dense


def _full_spec(shape):
    nd = len(shape)
    return pl.BlockSpec(shape, lambda i, _nd=nd: (0,) * _nd)


def recurrent_encoder_forward(seq, params):
    """seq: (B, S, I) batch-first, like the PyTorch module. params in torch layout."""
    B, S, I = seq.shape
    H = params["whh_f"].shape[1]            # torch weight_hh: (4H, H)
    R = 2 * H
    num_directions, num_layers = 2, 1
    f32 = jnp.float32

    def gate_split(w):                      # torch (4H, K) -> (4, K, H), gate-major
        K = w.shape[1]
        return jnp.transpose(w.reshape(4, H, K), (0, 2, 1)).astype(f32)

    def gate_bias(b_ih, b_hh):              # torch (4H,)+(4H,) -> (4, 1, H)
        return (b_ih + b_hh).reshape(4, 1, H).astype(f32)

    wih_f = gate_split(params["wih_f"]); whh_f = gate_split(params["whh_f"])
    wih_r = gate_split(params["wih_r"]); whh_r = gate_split(params["whh_r"])
    b_f = gate_bias(params["bih_f"], params["bhh_f"])
    b_r = gate_bias(params["bih_r"], params["bhh_r"])
    ctx = params["ctx"].reshape(1, R).astype(f32)    # bin_context_vector (2H,1) -> (1,2H)

    # Time-major, flattened so row s*B + b holds seq[b, s, :].
    x2d = jnp.transpose(seq, (1, 0, 2)).reshape(S * B, I).astype(f32)

    in_arrays = (x2d, wih_f, whh_f, b_f, wih_r, whh_r, b_r, ctx)

    # NOTE: at production S/B/H the (4, S*B, H) / (S, B, H) scratch must be tiled
    # over a batch grid axis and vmem_limit_bytes set explicitly (v7x: 64 MiB VMEM).
    nt, h_n, alpha = pl.pallas_call(
        _recurrent_encoder_kernel,
        out_shape=(
            jax.ShapeDtypeStruct((B, R), f32),       # nt: fwd half | rev half
            jax.ShapeDtypeStruct((2, B, H), f32),    # h_n
            jax.ShapeDtypeStruct((S, B), f32),       # alpha
        ),
        grid=(1,),
        in_specs=[_full_spec(a.shape) for a in in_arrays],
        out_specs=(_full_spec((B, R)), _full_spec((2, B, H)), _full_spec((S, B))),
        scratch_shapes=[
            pltpu.VMEM((4, S * B, H), f32),          # xg_f: precomputed input gates
            pltpu.VMEM((4, S * B, H), f32),          # xg_r
            pltpu.VMEM((S, B, H), f32),              # out_f: fwd hidden states
            pltpu.VMEM((S, B, H), f32),              # out_r: rev hidden states
        ],
        compiler_params=pltpu.CompilerParams(
            dimension_semantics=("arbitrary",)),
    )(*in_arrays)

    nt_rep = nt.reshape(B, 1, R)                                         # (B, 1, 2H)
    hidden_reshape = h_n.reshape(-1, H * num_directions * num_layers)    # torch flat reshape
    return nt_rep, hidden_reshape, alpha


def init_params(key, ip_size, hidden):
    """Deterministic synthetic parameters in PyTorch nn.LSTM / rec_attention layout."""
    ks = jax.random.split(key, 9)
    lim = 1.0 / (hidden ** 0.5)
    R = 2 * hidden

    def u(kk, shape, l):
        return jax.random.uniform(kk, shape, jnp.float32, -l, l)

    return dict(
        wih_f=u(ks[0], (4 * hidden, ip_size), lim),   # weight_ih_l0
        whh_f=u(ks[1], (4 * hidden, hidden), lim),    # weight_hh_l0
        bih_f=u(ks[2], (4 * hidden,), lim),
        bhh_f=u(ks[3], (4 * hidden,), lim),
        wih_r=u(ks[4], (4 * hidden, ip_size), lim),   # weight_ih_l0_reverse
        whh_r=u(ks[5], (4 * hidden, hidden), lim),    # weight_hh_l0_reverse
        bih_r=u(ks[6], (4 * hidden,), lim),
        bhh_r=u(ks[7], (4 * hidden,), lim),
        ctx=u(ks[8], (R, 1), 0.1),                    # bin_context_vector
    )


if __name__ == "__main__":
    key = jax.random.PRNGKey(0)
    k_seq, k_par = jax.random.split(key)

    batch, n_bins, ip_bin_size, bin_rnn_size = 2, 8, 4, 32    # B, S, I, H
    seq = jax.random.normal(k_seq, (batch, n_bins, ip_bin_size), jnp.float32)
    params = init_params(k_par, ip_bin_size, bin_rnn_size)

    nt_rep, hidden_reshape, bin_alpha = recurrent_encoder_forward(seq, params)
    jax.block_until_ready((nt_rep, hidden_reshape, bin_alpha))

    assert nt_rep.shape == (batch, 1, 2 * bin_rnn_size)
    assert hidden_reshape.shape == (batch, 2 * bin_rnn_size)
    assert bin_alpha.shape == (n_bins, batch)
    assert bool(jnp.all(jnp.isfinite(nt_rep)))
    assert bool(jnp.all(jnp.isfinite(bin_alpha)))
    print("KERNEL_OK")
</pallas_src>

<mosaic_0001>
module attributes {stable_mosaic.version = 11 : i64} {
  func.func @_recurrent_encoder_kernel(%arg0: i32, %arg1: memref<16x4xf32, #tpu.memory_space<vmem>>, %arg2: memref<4x4x32xf32, #tpu.memory_space<vmem>>, %arg3: memref<4x32x32xf32, #tpu.memory_space<vmem>>, %arg4: memref<4x1x32xf32, #tpu.memory_space<vmem>>, %arg5: memref<4x4x32xf32, #tpu.memory_space<vmem>>, %arg6: memref<4x32x32xf32, #tpu.memory_space<vmem>>, %arg7: memref<4x1x32xf32, #tpu.memory_space<vmem>>, %arg8: memref<1x64xf32, #tpu.memory_space<vmem>>, %arg9: memref<2x64xf32, #tpu.memory_space<vmem>>, %arg10: memref<2x2x32xf32, #tpu.memory_space<vmem>>, %arg11: memref<8x2xf32, #tpu.memory_space<vmem>>, %arg12: memref<4x16x32xf32, #tpu.memory_space<vmem>>, %arg13: memref<4x16x32xf32, #tpu.memory_space<vmem>>, %arg14: memref<8x2x32xf32, #tpu.memory_space<vmem>>, %arg15: memref<8x2x32xf32, #tpu.memory_space<vmem>>) attributes {dimension_semantics = [#tpu.dimension_semantics<arbitrary>], iteration_bounds = array<i64: 1>, scalar_prefetch = 0 : i64, scratch_operands = 4 : i64, tpu.core_type = #tpu.core_type<tc>, window_params = [{pipeline_mode = #tpu.pipeline_mode<synchronous>, transform_indices = @transform_0, window_bounds = array<i64: 16, 4>}, {pipeline_mode = #tpu.pipeline_mode<synchronous>, transform_indices = @transform_1, window_bounds = array<i64: 4, 4, 32>}, {pipeline_mode = #tpu.pipeline_mode<synchronous>, transform_indices = @transform_2, window_bounds = array<i64: 4, 32, 32>}, {pipeline_mode = #tpu.pipeline_mode<synchronous>, transform_indices = @transform_3, window_bounds = array<i64: 4, 1, 32>}, {pipeline_mode = #tpu.pipeline_mode<synchronous>, transform_indices = @transform_4, window_bounds = array<i64: 4, 4, 32>}, {pipeline_mode = #tpu.pipeline_mode<synchronous>, transform_indices = @transform_5, window_bounds = array<i64: 4, 32, 32>}, {pipeline_mode = #tpu.pipeline_mode<synchronous>, transform_indices = @transform_6, window_bounds = array<i64: 4, 1, 32>}, {pipeline_mode = #tpu.pipeline_mode<synchronous>, transform_indices = @transform_7, window_bounds = array<i64: 1, 64>}, {pipeline_mode = #tpu.pipeline_mode<synchronous>, transform_indices = @transform_8, window_bounds = array<i64: 2, 64>}, {pipeline_mode = #tpu.pipeline_mode<synchronous>, transform_indices = @transform_9, window_bounds = array<i64: 2, 2, 32>}, {pipeline_mode = #tpu.pipeline_mode<synchronous>, transform_indices = @transform_10, window_bounds = array<i64: 8, 2>}]} {
    %c0 = arith.constant 0 : index
    %c0_0 = arith.constant 0 : index
    %0 = vector.load %arg1[%c0, %c0_0] : memref<16x4xf32, #tpu.memory_space<vmem>>, vector<16x4xf32>
    %c0_1 = arith.constant 0 : index
    %c0_2 = arith.constant 0 : index
    %c0_3 = arith.constant 0 : index
    %1 = vector.load %arg2[%c0_1, %c0_2, %c0_3] : memref<4x4x32xf32, #tpu.memory_space<vmem>>, vector<1x4x32xf32>
    %2 = vector.shape_cast %1 : vector<1x4x32xf32> to vector<4x32xf32>
    %cst = arith.constant dense<0.000000e+00> : vector<16x32xf32>
    %3 = tpu.matmul %0, %2, %cst {dimension_numbers = #tpu.dot_dimension_numbers<[1], [0], [0], [1], [0, 0, 1, 1], [], []>} : vector<16x4xf32>, vector<4x32xf32>, vector<16x32xf32> -> vector<16x32xf32>
    %c0_4 = arith.constant 0 : index
    %c0_5 = arith.constant 0 : index
    %c0_6 = arith.constant 0 : index
    %4 = vector.load %arg4[%c0_4, %c0_5, %c0_6] : memref<4x1x32xf32, #tpu.memory_space<vmem>>, vector<1x1x32xf32>
    %5 = vector.shape_cast %4 : vector<1x1x32xf32> to vector<1x32xf32>
    %6 = vector.broadcast %5 : vector<1x32xf32> to vector<16x32xf32>
    %7 = arith.addf %3, %6 : vector<16x32xf32>
    %c0_7 = arith.constant 0 : index
    %c0_8 = arith.constant 0 : index
    %c0_9 = arith.constant 0 : index
    %8 = vector.load %arg12[%c0_7, %c0_8, %c0_9] : memref<4x16x32xf32, #tpu.memory_space<vmem>>, vector<1x16x32xf32>
    %9 = vector.shape_cast %8 : vector<1x16x32xf32> to vector<16x32xf32>
    %10 = vector.shape_cast %7 : vector<16x32xf32> to vector<1x16x32xf32>
    tpu.vector_store %arg12[%c0_7, %c0_8, %c0_9], %10 {strides = array<i32>} : memref<4x16x32xf32, #tpu.memory_space<vmem>>, vector<1x16x32xf32>,
    %c0_10 = arith.constant 0 : index
    %c0_11 = arith.constant 0 : index
    %c0_12 = arith.constant 0 : index
    %11 = vector.load %arg5[%c0_10, %c0_11, %c0_12] : memref<4x4x32xf32, #tpu.memory_space<vmem>>, vector<1x4x32xf32>
    %12 = vector.shape_cast %11 : vector<1x4x32xf32> to vector<4x32xf32>
    %cst_13 = arith.constant dense<0.000000e+00> : vector<16x32xf32>
    %13 = tpu.matmul %0, %12, %cst_13 {dimension_numbers = #tpu.dot_dimension_numbers<[1], [0], [0], [1], [0, 0, 1, 1], [], []>} : vector<16x4xf32>, vector<4x32xf32>, vector<16x32xf32> -> vector<16x32xf32>
    %c0_14 = arith.constant 0 : index
    %c0_15 = arith.constant 0 : index
    %c0_16 = arith.constant 0 : index
    %14 = vector.load %arg7[%c0_14, %c0_15, %c0_16] : memref<4x1x32xf32, #tpu.memory_space<vmem>>, vector<1x1x32xf32>
    %15 = vector.shape_cast %14 : vector<1x1x32xf32> to vector<1x32xf32>
    %16 = vector.broadcast %15 : vector<1x32xf32> to vector<16x32xf32>
    %17 = arith.addf %13, %16 : vector<16x32xf32>
    %c0_17 = arith.constant 0 : index
    %c0_18 = arith.constant 0 : index
    %c0_19 = arith.constant 0 : index
    %18 = vector.load %arg13[%c0_17, %c0_18, %c0_19] : memref<4x16x32xf32, #tpu.memory_space<vmem>>, vector<1x16x32xf32>
    %19 = vector.shape_cast %18 : vector<1x16x32xf32> to vector<16x32xf32>
    %20 = vector.shape_cast %17 : vector<16x32xf32> to vector<1x16x32xf32>
    tpu.vector_store %arg13[%c0_17, %c0_18, %c0_19], %20 {strides = array<i32>} : memref<4x16x32xf32, #tpu.memory_space<vmem>>, vector<1x16x32xf32>,
    %c1 = arith.constant 1 : index
    %c0_20 = arith.constant 0 : index
    %c0_21 = arith.constant 0 : index
    %21 = vector.load %arg2[%c1, %c0_20, %c0_21] : memref<4x4x32xf32, #tpu.memory_space<vmem>>, vector<1x4x32xf32>
    %22 = vector.shape_cast %21 : vector<1x4x32xf32> to vector<4x32xf32>
    %cst_22 = arith.constant dense<0.000000e+00> : vector<16x32xf32>
    %23 = tpu.matmul %0, %22, %cst_22 {dimension_numbers = #tpu.dot_dimension_numbers<[1], [0], [0], [1], [0, 0, 1, 1], [], []>} : vector<16x4xf32>, vector<4x32xf32>, vector<16x32xf32> -> vector<16x32xf32>
    %c1_23 = arith.constant 1 : index
    %c0_24 = arith.constant 0 : index
    %c0_25 = arith.constant 0 : index
    %24 = vector.load %arg4[%c1_23, %c0_24, %c0_25] : memref<4x1x32xf32, #tpu.memory_space<vmem>>, vector<1x1x32xf32>
    %25 = vector.shape_cast %24 : vector<1x1x32xf32> to vector<1x32xf32>
    %26 = vector.broadcast %25 : vector<1x32xf32> to vector<16x32xf32>
    %27 = arith.addf %23, %26 : vector<16x32xf32>
    %c1_26 = arith.constant 1 : index
    %c0_27 = arith.constant 0 : index
    %c0_28 = arith.constant 0 : index
    %28 = vector.load %arg12[%c1_26, %c0_27, %c0_28] : memref<4x16x32xf32, #tpu.memory_space<vmem>>, vector<1x16x32xf32>
    %29 = vector.shape_cast %28 : vector<1x16x32xf32> to vector<16x32xf32>
    %30 = vector.shape_cast %27 : vector<16x32xf32> to vector<1x16x32xf32>
    tpu.vector_store %arg12[%c1_26, %c0_27, %c0_28], %30 {strides = array<i32>} : memref<4x16x32xf32, #tpu.memory_space<vmem>>, vector<1x16x32xf32>,
    %c1_29 = arith.constant 1 : index
    %c0_30 = arith.constant 0 : index
    %c0_31 = arith.constant 0 : index
    %31 = vector.load %arg5[%c1_29, %c0_30, %c0_31] : memref<4x4x32xf32, #tpu.memory_space<vmem>>, vector<1x4x32xf32>
    %32 = vector.shape_cast %31 : vector<1x4x32xf32> to vector<4x32xf32>
    %cst_32 = arith.constant dense<0.000000e+00> : vector<16x32xf32>
    %33 = tpu.matmul %0, %32, %cst_32 {dimension_numbers = #tpu.dot_dimension_numbers<[1], [0], [0], [1], [0, 0, 1, 1], [], []>} : vector<16x4xf32>, vector<4x32xf32>, vector<16x32xf32> -> vector<16x32xf32>
    %c1_33 = arith.constant 1 : index
    %c0_34 = arith.constant 0 : index
    %c0_35 = arith.constant 0 : index
    %34 = vector.load %arg7[%c1_33, %c0_34, %c0_35] : memref<4x1x32xf32, #tpu.memory_space<vmem>>, vector<1x1x32xf32>
    %35 = vector.shape_cast %34 : vector<1x1x32xf32> to vector<1x32xf32>
    %36 = vector.broadcast %35 : vector<1x32xf32> to vector<16x32xf32>
    %37 = arith.addf %33, %36 : vector<16x32xf32>
    %c1_36 = arith.constant 1 : index
    %c0_37 = arith.constant 0 : index
    %c0_38 = arith.constant 0 : index
    %38 = vector.load %arg13[%c1_36, %c0_37, %c0_38] : memref<4x16x32xf32, #tpu.memory_space<vmem>>, vector<1x16x32xf32>
    %39 = vector.shape_cast %38 : vector<1x16x32xf32> to vector<16x32xf32>
    %40 = vector.shape_cast %37 : vector<16x32xf32> to vector<1x16x32xf32>
    tpu.vector_store %arg13[%c1_36, %c0_37, %c0_38], %40 {strides = array<i32>} : memref<4x16x32xf32, #tpu.memory_space<vmem>>, vector<1x16x32xf32>,
    %c2 = arith.constant 2 : index
    %c0_39 = arith.constant 0 : index
    %c0_40 = arith.constant 0 : index
    %41 = vector.load %arg2[%c2, %c0_39, %c0_40] : memref<4x4x32xf32, #tpu.memory_space<vmem>>, vector<1x4x32xf32>
    %42 = vector.shape_cast %41 : vector<1x4x32xf32> to vector<4x32xf32>
    %cst_41 = arith.constant dense<0.000000e+00> : vector<16x32xf32>
    %43 = tpu.matmul %0, %42, %cst_41 {dimension_numbers = #tpu.dot_dimension_numbers<[1], [0], [0], [1], [0, 0, 1, 1], [], []>} : vector<16x4xf32>, vector<4x32xf32>, vector<16x32xf32> -> vector<16x32xf32>
    %c2_42 = arith.constant 2 : index
    %c0_43 = arith.constant 0 : index
    %c0_44 = arith.constant 0 : index
    %44 = vector.load %arg4[%c2_42, %c0_43, %c0_44] : memref<4x1x32xf32, #tpu.memory_space<vmem>>, vector<1x1x32xf32>
    %45 = vector.shape_cast %44 : vector<1x1x32xf32> to vector<1x32xf32>
    %46 = vector.broadcast %45 : vector<1x32xf32> to vector<16x32xf32>
    %47 = arith.addf %43, %46 : vector<16x32xf32>
    %c2_45 = arith.constant 2 : index
    %c0_46 = arith.constant 0 : index
    %c0_47 = arith.constant 0 : index
    %48 = vector.load %arg12[%c2_45, %c0_46, %c0_47] : memref<4x16x32xf32, #tpu.memory_space<vmem>>, vector<1x16x32xf32>
    %49 = vector.shape_cast %48 : vector<1x16x32xf32> to vector<16x32xf32>
    %50 = vector.shape_cast %47 : vector<16x32xf32> to vector<1x16x32xf32>
    tpu.vector_store %arg12[%c2_45, %c0_46, %c0_47], %50 {strides = array<i32>} : memref<4x16x32xf32, #tpu.memory_space<vmem>>, vector<1x16x32xf32>,
    %c2_48 = arith.constant 2 : index
    %c0_49 = arith.constant 0 : index
    %c0_50 = arith.constant 0 : index
    %51 = vector.load %arg5[%c2_48, %c0_49, %c0_50] : memref<4x4x32xf32, #tpu.memory_space<vmem>>, vector<1x4x32xf32>
    %52 = vector.shape_cast %51 : vector<1x4x32xf32> to vector<4x32xf32>
    %cst_51 = arith.constant dense<0.000000e+00> : vector<16x32xf32>
    %53 = tpu.matmul %0, %52, %cst_51 {dimension_numbers = #tpu.dot_dimension_numbers<[1], [0], [0], [1], [0, 0, 1, 1], [], []>} : vector<16x4xf32>, vector<4x32xf32>, vector<16x32xf32> -> vector<16x32xf32>
    %c2_52 = arith.constant 2 : index
    %c0_53 = arith.constant 0 : index
    %c0_54 = arith.constant 0 : index
    %54 = vector.load %arg7[%c2_52, %c0_53, %c0_54] : memref<4x1x32xf32, #tpu.memory_space<vmem>>, vector<1x1x32xf32>
    %55 = vector.shape_cast %54 : vector<1x1x32xf32> to vector<1x32xf32>
    %56 = vector.broadcast %55 : vector<1x32xf32> to vector<16x32xf32>
    %57 = arith.addf %53, %56 : vector<16x32xf32>
    %c2_55 = arith.constant 2 : index
    %c0_56 = arith.constant 0 : index
    %c0_57 = arith.constant 0 : index
    %58 = vector.load %arg13[%c2_55, %c0_56, %c0_57] : memref<4x16x32xf32, #tpu.memory_space<vmem>>, vector<1x16x32xf32>
    %59 = vector.shape_cast %58 : vector<1x16x32xf32> to vector<16x32xf32>
    %60 = vector.shape_cast %57 : vector<16x32xf32> to vector<1x16x32xf32>
    tpu.vector_store %arg13[%c2_55, %c0_56, %c0_57], %60 {strides = array<i32>} : memref<4x16x32xf32, #tpu.memory_space<vmem>>, vector<1x16x32xf32>,
    %c3 = arith.constant 3 : index
    %c0_58 = arith.constant 0 : index
    %c0_59 = arith.constant 0 : index
    %61 = vector.load %arg2[%c3, %c0_58, %c0_59] : memref<4x4x32xf32, #tpu.memory_space<vmem>>, vector<1x4x32xf32>
    %62 = vector.shape_cast %61 : vector<1x4x32xf32> to vector<4x32xf32>
    %cst_60 = arith.constant dense<0.000000e+00> : vector<16x32xf32>
    %63 = tpu.matmul %0, %62, %cst_60 {dimension_numbers = #tpu.dot_dimension_numbers<[1], [0], [0], [1], [0, 0, 1, 1], [], []>} : vector<16x4xf32>, vector<4x32xf32>, vector<16x32xf32> -> vector<16x32xf32>
    %c3_61 = arith.constant 3 : index
    %c0_62 = arith.constant 0 : index
    %c0_63 = arith.constant 0 : index
    %64 = vector.load %arg4[%c3_61, %c0_62, %c0_63] : memref<4x1x32xf32, #tpu.memory_space<vmem>>, vector<1x1x32xf32>
    %65 = vector.shape_cast %64 : vector<1x1x32xf32> to vector<1x32xf32>
    %66 = vector.broadcast %65 : vector<1x32xf32> to vector<16x32xf32>
    %67 = arith.addf %63, %66 : vector<16x32xf32>
    %c3_64 = arith.constant 3 : index
    %c0_65 = arith.constant 0 : index
    %c0_66 = arith.constant 0 : index
    %68 = vector.load %arg12[%c3_64, %c0_65, %c0_66] : memref<4x16x32xf32, #tpu.memory_space<vmem>>, vector<1x16x32xf32>
    %69 = vector.shape_cast %68 : vector<1x16x32xf32> to vector<16x32xf32>
    %70 = vector.shape_cast %67 : vector<16x32xf32> to vector<1x16x32xf32>
    tpu.vector_store %arg12[%c3_64, %c0_65, %c0_66], %70 {strides = array<i32>} : memref<4x16x32xf32, #tpu.memory_space<vmem>>, vector<1x16x32xf32>,
    %c3_67 = arith.constant 3 : index
    %c0_68 = arith.constant 0 : index
    %c0_69 = arith.constant 0 : index
    %71 = vector.load %arg5[%c3_67, %c0_68, %c0_69] : memref<4x4x32xf32, #tpu.memory_space<vmem>>, vector<1x4x32xf32>
    %72 = vector.shape_cast %71 : vector<1x4x32xf32> to vector<4x32xf32>
    %cst_70 = arith.constant dense<0.000000e+00> : vector<16x32xf32>
    %73 = tpu.matmul %0, %72, %cst_70 {dimension_numbers = #tpu.dot_dimension_numbers<[1], [0], [0], [1], [0, 0, 1, 1], [], []>} : vector<16x4xf32>, vector<4x32xf32>, vector<16x32xf32> -> vector<16x32xf32>
    %c3_71 = arith.constant 3 : index
    %c0_72 = arith.constant 0 : index
    %c0_73 = arith.constant 0 : index
    %74 = vector.load %arg7[%c3_71, %c0_72, %c0_73] : memref<4x1x32xf32, #tpu.memory_space<vmem>>, vector<1x1x32xf32>
    %75 = vector.shape_cast %74 : vector<1x1x32xf32> to vector<1x32xf32>
    %76 = vector.broadcast %75 : vector<1x32xf32> to vector<16x32xf32>
    %77 = arith.addf %73, %76 : vector<16x32xf32>
    %c3_74 = arith.constant 3 : index
    %c0_75 = arith.constant 0 : index
    %c0_76 = arith.constant 0 : index
    %78 = vector.load %arg13[%c3_74, %c0_75, %c0_76] : memref<4x16x32xf32, #tpu.memory_space<vmem>>, vector<1x16x32xf32>
    %79 = vector.shape_cast %78 : vector<1x16x32xf32> to vector<16x32xf32>
    %80 = vector.shape_cast %77 : vector<16x32xf32> to vector<1x16x32xf32>
    tpu.vector_store %arg13[%c3_74, %c0_75, %c0_76], %80 {strides = array<i32>} : memref<4x16x32xf32, #tpu.memory_space<vmem>>, vector<1x16x32xf32>,
    %c0_77 = arith.constant 0 : index
    %c0_78 = arith.constant 0 : index
    %c0_79 = arith.constant 0 : index
    %81 = vector.load %arg3[%c0_77, %c0_78, %c0_79] : memref<4x32x32xf32, #tpu.memory_space<vmem>>, vector<1x32x32xf32>
    %82 = vector.shape_cast %81 : vector<1x32x32xf32> to vector<32x32xf32>
    %c1_80 = arith.constant 1 : index
    %c0_81 = arith.constant 0 : index
    %c0_82 = arith.constant 0 : index
    %83 = vector.load %arg3[%c1_80, %c0_81, %c0_82] : memref<4x32x32xf32, #tpu.memory_space<vmem>>, vector<1x32x32xf32>
    %84 = vector.shape_cast %83 : vector<1x32x32xf32> to vector<32x32xf32>
    %c2_83 = arith.constant 2 : index
    %c0_84 = arith.constant 0 : index
    %c0_85 = arith.constant 0 : index
    %85 = vector.load %arg3[%c2_83, %c0_84, %c0_85] : memref<4x32x32xf32, #tpu.memory_space<vmem>>, vector<1x32x32xf32>
    %86 = vector.shape_cast %85 : vector<1x32x32xf32> to vector<32x32xf32>
    %c3_86 = arith.constant 3 : index
    %c0_87 = arith.constant 0 : index
    %c0_88 = arith.constant 0 : index
    %87 = vector.load %arg3[%c3_86, %c0_87, %c0_88] : memref<4x32x32xf32, #tpu.memory_space<vmem>>, vector<1x32x32xf32>
    %88 = vector.shape_cast %87 : vector<1x32x32xf32> to vector<32x32xf32>
    %c0_89 = arith.constant 0 : index
    %c0_90 = arith.constant 0 : index
    %c0_91 = arith.constant 0 : index
    %89 = vector.load %arg6[%c0_89, %c0_90, %c0_91] : memref<4x32x32xf32, #tpu.memory_space<vmem>>, vector<1x32x32xf32>
    %90 = vector.shape_cast %89 : vector<1x32x32xf32> to vector<32x32xf32>
    %c1_92 = arith.constant 1 : index
    %c0_93 = arith.constant 0 : index
    %c0_94 = arith.constant 0 : index
    %91 = vector.load %arg6[%c1_92, %c0_93, %c0_94] : memref<4x32x32xf32, #tpu.memory_space<vmem>>, vector<1x32x32xf32>
    %92 = vector.shape_cast %91 : vector<1x32x32xf32> to vector<32x32xf32>
    %c2_95 = arith.constant 2 : index
    %c0_96 = arith.constant 0 : index
    %c0_97 = arith.constant 0 : index
    %93 = vector.load %arg6[%c2_95, %c0_96, %c0_97] : memref<4x32x32xf32, #tpu.memory_space<vmem>>, vector<1x32x32xf32>
    %94 = vector.shape_cast %93 : vector<1x32x32xf32> to vector<32x32xf32>
    %c3_98 = arith.constant 3 : index
    %c0_99 = arith.constant 0 : index
    %c0_100 = arith.constant 0 : index
    %95 = vector.load %arg6[%c3_98, %c0_99, %c0_100] : memref<4x32x32xf32, #tpu.memory_space<vmem>>, vector<1x32x32xf32>
    %96 = vector.shape_cast %95 : vector<1x32x32xf32> to vector<32x32xf32>
    %cst_101 = arith.constant 0.000000e+00 : f32
    %97 = vector.broadcast %cst_101 : f32 to vector<2x32xf32>
    %c0_i32 = arith.constant 0 : i32
    %c7_i32 = arith.constant 7 : i32
    %98 = arith.subi %c7_i32, %c0_i32 : i32
    %c2_i32 = arith.constant 2 : i32
    %99 = arith.muli %c0_i32, %c2_i32 : i32
    %c0_102 = arith.constant 0 : index
    %100 = arith.index_cast %99 : i32 to index
    %c0_103 = arith.constant 0 : index
    %101 = vector.load %arg12[%c0_102, %100, %c0_103] : memref<4x16x32xf32, #tpu.memory_space<vmem>>, vector<1x2x32xf32>
    %102 = vector.shape_cast %101 : vector<1x2x32xf32> to vector<2x32xf32>
    %cst_104 = arith.constant dense<0.000000e+00> : vector<2x32xf32>
    %103 = tpu.matmul %97, %82, %cst_104 {dimension_numbers = #tpu.dot_dimension_numbers<[1], [0], [0], [1], [0, 0, 1, 1], [], []>} : vector<2x32xf32>, vector<32x32xf32>, vector<2x32xf32> -> vector<2x32xf32>
    %104 = arith.addf %102, %103 : vector<2x32xf32>
    %c1_105 = arith.constant 1 : index
    %105 = arith.index_cast %99 : i32 to index
    %c0_106 = arith.constant 0 : index
    %106 = vector.load %arg12[%c1_105, %105, %c0_106] : memref<4x16x32xf32, #tpu.memory_space<vmem>>, vector<1x2x32xf32>
    %107 = vector.shape_cast %106 : vector<1x2x32xf32> to vector<2x32xf32>
    %cst_107 = arith.constant dense<0.000000e+00> : vector<2x32xf32>
    %108 = tpu.matmul %97, %84, %cst_107 {dimension_numbers = #tpu.dot_dimension_numbers<[1], [0], [0], [1], [0, 0, 1, 1], [], []>} : vector<2x32xf32>, vector<32x32xf32>, vector<2x32xf32> -> vector<2x32xf32>
    %109 = arith.addf %107, %108 : vector<2x32xf32>
    %c2_108 = arith.constant 2 : index
    %110 = arith.index_cast %99 : i32 to index
    %c0_109 = arith.constant 0 : index
    %111 = vector.load %arg12[%c2_108, %110, %c0_109] : memref<4x16x32xf32, #tpu.memory_space<vmem>>, vector<1x2x32xf32>
    %112 = vector.shape_cast %111 : vector<1x2x32xf32> to vector<2x32xf32>
    %cst_110 = arith.constant dense<0.000000e+00> : vector<2x32xf32>
    %113 = tpu.matmul %97, %86, %cst_110 {dimension_numbers = #tpu.dot_dimension_numbers<[1], [0], [0], [1], [0, 0, 1, 1], [], []>} : vector<2x32xf32>, vector<32x32xf32>, vector<2x32xf32> -> vector<2x32xf32>
    %114 = arith.addf %112, %113 : vector<2x32xf32>
    %c3_111 = arith.constant 3 : index
    %115 = arith.index_cast %99 : i32 to index
    %c0_112 = arith.constant 0 : index
    %116 = vector.load %arg12[%c3_111, %115, %c0_112] : memref<4x16x32xf32, #tpu.memory_space<vmem>>, vector<1x2x32xf32>
    %117 = vector.shape_cast %116 : vector<1x2x32xf32> to vector<2x32xf32>
    %cst_113 = arith.constant dense<0.000000e+00> : vector<2x32xf32>
    %118 = tpu.matmul %97, %88, %cst_113 {dimension_numbers = #tpu.dot_dimension_numbers<[1], [0], [0], [1], [0, 0, 1, 1], [], []>} : vector<2x32xf32>, vector<32x32xf32>, vector<2x32xf32> -> vector<2x32xf32>
    %119 = arith.addf %117, %118 : vector<2x32xf32>
    %cst_114 = arith.constant 5.000000e-01 : f32
    %120 = vector.broadcast %cst_114 : f32 to vector<2x32xf32>
    %121 = arith.mulf %120, %104 : vector<2x32xf32>
    %122 = math.tanh %121 : vector<2x32xf32>
    %cst_115 = arith.constant 5.000000e-01 : f32
    %123 = vector.broadcast %cst_115 : f32 to vector<2x32xf32>
    %124 = arith.mulf %123, %122 : vector<2x32xf32>
    %cst_116 = arith.constant 5.000000e-01 : f32
    %125 = vector.broadcast %cst_116 : f32 to vector<2x32xf32>
    %126 = arith.addf %124, %125 : vector<2x32xf32>
    %cst_117 = arith.constant 5.000000e-01 : f32
    %127 = vector.broadcast %cst_117 : f32 to vector<2x32xf32>
    %128 = arith.mulf %127, %109 : vector<2x32xf32>
    %129 = math.tanh %128 : vector<2x32xf32>
    %cst_118 = arith.constant 5.000000e-01 : f32
    %130 = vector.broadcast %cst_118 : f32 to vector<2x32xf32>
    %131 = arith.mulf %130, %129 : vector<2x32xf32>
    %cst_119 = arith.constant 5.000000e-01 : f32
    %132 = vector.broadcast %cst_119 : f32 to vector<2x32xf32>
    %133 = arith.addf %131, %132 : vector<2x32xf32>
    %134 = math.tanh %114 : vector<2x32xf32>
    %cst_120 = arith.constant 5.000000e-01 : f32
    %135 = vector.broadcast %cst_120 : f32 to vector<2x32xf32>
    %136 = arith.mulf %135, %119 : vector<2x32xf32>
    %137 = math.tanh %136 : vector<2x32xf32>
    %cst_121 = arith.constant 5.000000e-01 : f32
    %138 = vector.broadcast %cst_121 : f32 to vector<2x32xf32>
    %139 = arith.mulf %138, %137 : vector<2x32xf32>
    %cst_122 = arith.constant 5.000000e-01 : f32
    %140 = vector.broadcast %cst_122 : f32 to vector<2x32xf32>
    %141 = arith.addf %139, %140 : vector<2x32xf32>
    %142 = arith.mulf %133, %97 : vector<2x32xf32>
    %143 = arith.mulf %126, %134 : vector<2x32xf32>
    %144 = arith.addf %142, %143 : vector<2x32xf32>
    %145 = math.tanh %144 : vector<2x32xf32>
    %146 = arith.mulf %141, %145 : vector<2x32xf32>
    %c2_i32_123 = arith.constant 2 : i32
    %147 = arith.muli %98, %c2_i32_123 : i32
    %c0_124 = arith.constant 0 : index
    %148 = arith.index_cast %147 : i32 to index
    %c0_125 = arith.constant 0 : index
    %149 = vector.load %arg13[%c0_124, %148, %c0_125] : memref<4x16x32xf32, #tpu.memory_space<vmem>>, vector<1x2x32xf32>
    %150 = vector.shape_cast %149 : vector<1x2x32xf32> to vector<2x32xf32>
    %cst_126 = arith.constant dense<0.000000e+00> : vector<2x32xf32>
    %151 = tpu.matmul %97, %90, %cst_126 {dimension_numbers = #tpu.dot_dimension_numbers<[1], [0], [0], [1], [0, 0, 1, 1], [], []>} : vector<2x32xf32>, vector<32x32xf32>, vector<2x32xf32> -> vector<2x32xf32>
    %152 = arith.addf %150, %151 : vector<2x32xf32>
    %c1_127 = arith.constant 1 : index
    %153 = arith.index_cast %147 : i32 to index
    %c0_128 = arith.constant 0 : index
    %154 = vector.load %arg13[%c1_127, %153, %c0_128] : memref<4x16x32xf32, #tpu.memory_space<vmem>>, vector<1x2x32xf32>
    %155 = vector.shape_cast %154 : vector<1x2x32xf32> to vector<2x32xf32>
    %cst_129 = arith.constant dense<0.000000e+00> : vector<2x32xf32>
    %156 = tpu.matmul %97, %92, %cst_129 {dimension_numbers = #tpu.dot_dimension_numbers<[1], [0], [0], [1], [0, 0, 1, 1], [], []>} : vector<2x32xf32>, vector<32x32xf32>, vector<2x32xf32> -> vector<2x32xf32>
    %157 = arith.addf %155, %156 : vector<2x32xf32>
    %c2_130 = arith.constant 2 : index
    %158 = arith.index_cast %147 : i32 to index
    %c0_131 = arith.constant 0 : index
    %159 = vector.load %arg13[%c2_130, %158, %c0_131] : memref<4x16x32xf32, #tpu.memory_space<vmem>>, vector<1x2x32xf32>
    %160 = vector.shape_cast %159 : vector<1x2x32xf32> to vector<2x32xf32>
    %cst_132 = arith.constant dense<0.000000e+00> : vector<2x32xf32>
    %161 = tpu.matmul %97, %94, %cst_132 {dimension_numbers = #tpu.dot_dimension_numbers<[1], [0], [0], [1], [0, 0, 1, 1], [], []>} : vector<2x32xf32>, vector<32x32xf32>, vector<2x32xf32> -> vector<2x32xf32>
    %162 = arith.addf %160, %161 : vector<2x32xf32>
    %c3_133 = arith.constant 3 : index
    %163 = arith.index_cast %147 : i32 to index
    %c0_134 = arith.constant 0 : index
    %164 = vector.load %arg13[%c3_133, %163, %c0_134] : memref<4x16x32xf32, #tpu.memory_space<vmem>>, vector<1x2x32xf32>
    %165 = vector.shape_cast %164 : vector<1x2x32xf32> to vector<2x32xf32>
    %cst_135 = arith.constant dense<0.000000e+00> : vector<2x32xf32>
    %166 = tpu.matmul %97, %96, %cst_135 {dimension_numbers = #tpu.dot_dimension_numbers<[1], [0], [0], [1], [0, 0, 1, 1], [], []>} : vector<2x32xf32>, vector<32x32xf32>, vector<2x32xf32> -> vector<2x32xf32>
    %167 = arith.addf %165, %166 : vector<2x32xf32>
    %cst_136 = arith.constant 5.000000e-01 : f32
    %168 = vector.broadcast %cst_136 : f32 to vector<2x32xf32>
    %169 = arith.mulf %168, %152 : vector<2x32xf32>
    %170 = math.tanh %169 : vector<2x32xf32>
    %cst_137 = arith.constant 5.000000e-01 : f32
    %171 = vector.broadcast %cst_137 : f32 to vector<2x32xf32>
    %172 = arith.mulf %171, %170 : vector<2x32xf32>
    %cst_138 = arith.constant 5.000000e-01 : f32
    %173 = vector.broadcast %cst_138 : f32 to vector<2x32xf32>
    %174 = arith.addf %172, %173 : vector<2x32xf32>
    %cst_139 = arith.constant 5.000000e-01 : f32
    %175 = vector.broadcast %cst_139 : f32 to vector<2x32xf32>
    %176 = arith.mulf %175, %157 : vector<2x32xf32>
    %177 = math.tanh %176 : vector<2x32xf32>
    %cst_140 = arith.constant 5.000000e-01 : f32
    %178 = vector.broadcast %cst_140 : f32 to vector<2x32xf32>
    %179 = arith.mulf %178, %177 : vector<2x32xf32>
    %cst_141 = arith.constant 5.000000e-01 : f32
    %180 = vector.broadcast %cst_141 : f32 to vector<2x32xf32>
    %181 = arith.addf %179, %180 : vector<2x32xf32>
    %182 = math.tanh %162 : vector<2x32xf32>
    %cst_142 = arith.constant 5.000000e-01 : f32
    %183 = vector.broadcast %cst_142 : f32 to vector<2x32xf32>
    %184 = arith.mulf %183, %167 : vector<2x32xf32>
    %185 = math.tanh %184 : vector<2x32xf32>
    %cst_143 = arith.constant 5.000000e-01 : f32
    %186 = vector.broadcast %cst_143 : f32 to vector<2x32xf32>
    %187 = arith.mulf %186, %185 : vector<2x32xf32>
    %cst_144 = arith.constant 5.000000e-01 : f32
    %188 = vector.broadcast %cst_144 : f32 to vector<2x32xf32>
    %189 = arith.addf %187, %188 : vector<2x32xf32>
    %190 = arith.mulf %181, %97 : vector<2x32xf32>
    %191 = arith.mulf %174, %182 : vector<2x32xf32>
    %192 = arith.addf %190, %191 : vector<2x32xf32>
    %193 = math.tanh %192 : vector<2x32xf32>
    %194 = arith.mulf %189, %193 : vector<2x32xf32>
    %195 = arith.index_cast %c0_i32 : i32 to index
    %c0_145 = arith.constant 0 : index
    %c0_146 = arith.constant 0 : index
    %196 = vector.load %arg14[%195, %c0_145, %c0_146] : memref<8x2x32xf32, #tpu.memory_space<vmem>>, vector<1x2x32xf32>
    %197 = vector.shape_cast %196 : vector<1x2x32xf32> to vector<2x32xf32>
    %198 = vector.shape_cast %146 : vector<2x32xf32> to vector<1x2x32xf32>
    tpu.vector_store %arg14[%195, %c0_145, %c0_146], %198 {strides = array<i32>} : memref<8x2x32xf32, #tpu.memory_space<vmem>>, vector<1x2x32xf32>,
    %199 = arith.index_cast %98 : i32 to index
    %c0_147 = arith.constant 0 : index
    %c0_148 = arith.constant 0 : index
    %200 = vector.load %arg15[%199, %c0_147, %c0_148] : memref<8x2x32xf32, #tpu.memory_space<vmem>>, vector<1x2x32xf32>
    %201 = vector.shape_cast %200 : vector<1x2x32xf32> to vector<2x32xf32>
    %202 = vector.shape_cast %194 : vector<2x32xf32> to vector<1x2x32xf32>
    tpu.vector_store %arg15[%199, %c0_147, %c0_148], %202 {strides = array<i32>} : memref<8x2x32xf32, #tpu.memory_space<vmem>>, vector<1x2x32xf32>,
    %c1_i32 = arith.constant 1 : i32
    %c7_i32_149 = arith.constant 7 : i32
    %203 = arith.subi %c7_i32_149, %c1_i32 : i32
    %c2_i32_150 = arith.constant 2 : i32
    %204 = arith.muli %c1_i32, %c2_i32_150 : i32
    %c0_151 = arith.constant 0 : index
    %205 = arith.index_cast %204 : i32 to index
    %c0_152 = arith.constant 0 : index
    %206 = vector.load %arg12[%c0_151, %205, %c0_152] : memref<4x16x32xf32, #tpu.memory_space<vmem>>, vector<1x2x32xf32>
    %207 = vector.shape_cast %206 : vector<1x2x32xf32> to vector<2x32xf32>
    %cst_153 = arith.constant dense<0.000000e+00> : vector<2x32xf32>
    %208 = tpu.matmul %146, %82, %cst_153 {dimension_numbers = #tpu.dot_dimension_numbers<[1], [0], [0], [1], [0, 0, 1, 1], [], []>} : vector<2x32xf32>, vector<32x32xf32>, vector<2x32xf32> -> vector<2x32xf32>
    %209 = arith.addf %207, %208 : vector<2x32xf32>
    %c1_154 = arith.constant 1 : index
    %210 = arith.index_cast %204 : i32 to index
    %c0_155 = arith.constant 0 : index
    %211 = vector.load %arg12[%c1_154, %210, %c0_155] : memref<4x16x32xf32, #tpu.memory_space<vmem>>, vector<1x2x32xf32>
    %212 = vector.shape_cast %211 : vector<1x2x32xf32> to vector<2x32xf32>
    %cst_156 = arith.constant dense<0.000000e+00> : vector<2x32xf32>
    %213 = tpu.matmul %146, %84, %cst_156 {dimension_numbers = #tpu.dot_dimension_numbers<[1], [0], [0], [1], [0, 0, 1, 1], [], []>} : vector<2x32xf32>, vector<32x32xf32>, vector<2x32xf32> -> vector<2x32xf32>
    %214 = arith.addf %212, %213 : vector<2x32xf32>
    %c2_157 = arith.constant 2 : index
    %215 = arith.index_cast %204 : i32 to index
    %c0_158 = arith.constant 0 : index
    %216 = vector.load %arg12[%c2_157, %215, %c0_158] : memref<4x16x32xf32, #tpu.memory_space<vmem>>, vector<1x2x32xf32>
    %217 = vector.shape_cast %216 : vector<1x2x32xf32> to vector<2x32xf32>
    %cst_159 = arith.constant dense<0.000000e+00> : vector<2x32xf32>
    %218 = tpu.matmul %146, %86, %cst_159 {dimension_numbers = #tpu.dot_dimension_numbers<[1], [0], [0], [1], [0, 0, 1, 1], [], []>} : vector<2x32xf32>, vector<32x32xf32>, vector<2x32xf32> -> vector<2x32xf32>
    %219 = arith.addf %217, %218 : vector<2x32xf32>
    %c3_160 = arith.constant 3 : index
    %220 = arith.index_cast %204 : i32 to index
    %c0_161 = arith.constant 0 : index
    %221 = vector.load %arg12[%c3_160, %220, %c0_161] : memref<4x16x32xf32, #tpu.memory_space<vmem>>, vector<1x2x32xf32>
    %222 = vector.shape_cast %221 : vector<1x2x32xf32> to vector<2x32xf32>
    %cst_162 = arith.constant dense<0.000000e+00> : vector<2x32xf32>
    %223 = tpu.matmul %146, %88, %cst_162 {dimension_numbers = #tpu.dot_dimension_numbers<[1], [0], [0], [1], [0, 0, 1, 1], [], []>} : vector<2x32xf32>, vector<32x32xf32>, vector<2x32xf32> -> vector<2x32xf32>
    %224 = arith.addf %222, %223 : vector<2x32xf32>
    %cst_163 = arith.constant 5.000000e-01 : f32
    %225 = vector.broadcast %cst_163 : f32 to vector<2x32xf32>
    %226 = arith.mulf %225, %209 : vector<2x32xf32>
    %227 = math.tanh %226 : vector<2x32xf32>
    %cst_164 = arith.constant 5.000000e-01 : f32
    %228 = vector.broadcast %cst_164 : f32 to vector<2x32xf32>
    %229 = arith.mulf %228, %227 : vector<2x32xf32>
    %cst_165 = arith.constant 5.000000e-01 : f32
    %230 = vector.broadcast %cst_165 : f32 to vector<2x32xf32>
    %231 = arith.addf %229, %230 : vector<2x32xf32>
    %cst_166 = arith.constant 5.000000e-01 : f32
    %232 = vector.broadcast %cst_166 : f32 to vector<2x32xf32>
    %233 = arith.mulf %232, %214 : vector<2x32xf32>
    %234 = math.tanh %233 : vector<2x32xf32>
    %cst_167 = arith.constant 5.000000e-01 : f32
    %235 = vector.broadcast %cst_167 : f32 to vector<2x32xf32>
    %236 = arith.mulf %235, %234 : vector<2x32xf32>
    %cst_168 = arith.constant 5.000000e-01 : f32
    %237 = vector.broadcast %cst_168 : f32 to vector<2x32xf32>
    %238 = arith.addf %236, %237 : vector<2x32xf32>
    %239 = math.tanh %219 : vector<2x32xf32>
    %cst_169 = arith.constant 5.000000e-01 : f32
    %240 = vector.broadcast %cst_169 : f32 to vector<2x32xf32>
    %241 = arith.mulf %240, %224 : vector<2x32xf32>
    %242 = math.tanh %241 : vector<2x32xf32>
    %cst_170 = arith.constant 5.000000e-01 : f32
    %243 = vector.broadcast %cst_170 : f32 to vector<2x32xf32>
    %244 = arith.mulf %243, %242 : vector<2x32xf32>
    %cst_171 = arith.constant 5.000000e-01 : f32
    %245 = vector.broadcast %cst_171 : f32 to vector<2x32xf32>
    %246 = arith.addf %244, %245 : vector<2x32xf32>
    %247 = arith.mulf %238, %144 : vector<2x32xf32>
    %248 = arith.mulf %231, %239 : vector<2x32xf32>
    %249 = arith.addf %247, %248 : vector<2x32xf32>
    %250 = math.tanh %249 : vector<2x32xf32>
    %251 = arith.mulf %246, %250 : vector<2x32xf32>
    %c2_i32_172 = arith.constant 2 : i32
    %252 = arith.muli %203, %c2_i32_172 : i32
    %c0_173 = arith.constant 0 : index
    %253 = arith.index_cast %252 : i32 to index
    %c0_174 = arith.constant 0 : index
    %254 = vector.load %arg13[%c0_173, %253, %c0_174] : memref<4x16x32xf32, #tpu.memory_space<vmem>>, vector<1x2x32xf32>
    %255 = vector.shape_cast %254 : vector<1x2x32xf32> to vector<2x32xf32>
    %cst_175 = arith.constant dense<0.000000e+00> : vector<2x32xf32>
    %256 = tpu.matmul %194, %90, %cst_175 {dimension_numbers = #tpu.dot_dimension_numbers<[1], [0], [0], [1], [0, 0, 1, 1], [], []>} : vector<2x32xf32>, vector<32x32xf32>, vector<2x32xf32> -> vector<2x32xf32>
    %257 = arith.addf %255, %256 : vector<2x32xf32>
    %c1_176 = arith.constant 1 : index
    %258 = arith.index_cast %252 : i32 to index
    %c0_177 = arith.constant 0 : index
    %259 = vector.load %arg13[%c1_176, %258, %c0_177] : memref<4x16x32xf32, #tpu.memory_space<vmem>>, vector<1x2x32xf32>
    %260 = vector.shape_cast %259 : vector<1x2x32xf32> to vector<2x32xf32>
    %cst_178 = arith.constant dense<0.000000e+00> : vector<2x32xf32>
    %261 = tpu.matmul %194, %92, %cst_178 {dimension_numbers = #tpu.dot_dimension_numbers<[1], [0], [0], [1], [0, 0, 1, 1], [], []>} : vector<2x32xf32>, vector<32x32xf32>, vector<2x32xf32> -> vector<2x32xf32>
    %262 = arith.addf %260, %261 : vector<2x32xf32>
    %c2_179 = arith.constant 2 : index
    %263 = arith.index_cast %252 : i32 to index
    %c0_180 = arith.constant 0 : index
    %264 = vector.load %arg13[%c2_179, %263, %c0_180] : memref<4x16x32xf32, #tpu.memory_space<vmem>>, vector<1x2x32xf32>
    %265 = vector.shape_cast %264 : vector<1x2x32xf32> to vector<2x32xf32>
    %cst_181 = arith.constant dense<0.000000e+00> : vector<2x32xf32>
    %266 = tpu.matmul %194, %94, %cst_181 {dimension_numbers = #tpu.dot_dimension_numbers<[1], [0], [0], [1], [0, 0, 1, 1], [], []>} : vector<2x32xf32>, vector<32x32xf32>, vector<2x32xf32> -> vector<2x32xf32>
    %267 = arith.addf %265, %266 : vector<2x32xf32>
    %c3_182 = arith.constant 3 : index
    %268 = arith.index_cast %252 : i32 to index
    %c0_183 = arith.constant 0 : index
    %269 = vector.load %arg13[%c3_182, %268, %c0_183] : memref<4x16x32xf32, #tpu.memory_space<vmem>>, vector<1x2x32xf32>
    %270 = vector.shape_cast %269 : vector<1x2x32xf32> to vector<2x32xf32>
    %cst_184 = arith.constant dense<0.000000e+00> : vector<2x32xf32>
    %271 = tpu.matmul %194, %96, %cst_184 {dimension_numbers = #tpu.dot_dimension_numbers<[1], [0], [0], [1], [0, 0, 1, 1], [], []>} : vector<2x32xf32>, vector<32x32xf32>, vector<2x32xf32> -> vector<2x32xf32>
    %272 = arith.addf %270, %271 : vector<2x32xf32>
    %cst_185 = arith.constant 5.000000e-01 : f32
    %273 = vector.broadcast %cst_185 : f32 to vector<2x32xf32>
    %274 = arith.mulf %273, %257 : vector<2x32xf32>
    %275 = math.tanh %274 : vector<2x32xf32>
    %cst_186 = arith.constant 5.000000e-01 : f32
    %276 = vector.broadcast %cst_186 : f32 to vector<2x32xf32>
    %277 = arith.mulf %276, %275 : vector<2x32xf32>
    %cst_187 = arith.constant 5.000000e-01 : f32
    %278 = vector.broadcast %cst_187 : f32 to vector<2x32xf32>
    %279 = arith.addf %277, %278 : vector<2x32xf32>
    %cst_188 = arith.constant 5.000000e-01 : f32
    %280 = vector.broadcast %cst_188 : f32 to vector<2x32xf32>
    %281 = arith.mulf %280, %262 : vector<2x32xf32>
    %282 = math.tanh %281 : vector<2x32xf32>
    %cst_189 = arith.constant 5.000000e-01 : f32
    %283 = vector.broadcast %cst_189 : f32 to vector<2x32xf32>
    %284 = arith.mulf %283, %282 : vector<2x32xf32>
    %cst_190 = arith.constant 5.000000e-01 : f32
    %285 = vector.broadcast %cst_190 : f32 to vector<2x32xf32>
    %286 = arith.addf %284, %285 : vector<2x32xf32>
    %287 = math.tanh %267 : vector<2x32xf32>
    %cst_191 = arith.constant 5.000000e-01 : f32
    %288 = vector.broadcast %cst_191 : f32 to vector<2x32xf32>
    %289 = arith.mulf %288, %272 : vector<2x32xf32>
    %290 = math.tanh %289 : vector<2x32xf32>
    %cst_192 = arith.constant 5.000000e-01 : f32
    %291 = vector.broadcast %cst_192 : f32 to vector<2x32xf32>
    %292 = arith.mulf %291, %290 : vector<2x32xf32>
    %cst_193 = arith.constant 5.000000e-01 : f32
    %293 = vector.broadcast %cst_193 : f32 to vector<2x32xf32>
    %294 = arith.addf %292, %293 : vector<2x32xf32>
    %295 = arith.mulf %286, %192 : vector<2x32xf32>
    %296 = arith.mulf %279, %287 : vector<2x32xf32>
    %297 = arith.addf %295, %296 : vector<2x32xf32>
    %298 = math.tanh %297 : vector<2x32xf32>
    %299 = arith.mulf %294, %298 : vector<2x32xf32>
    %300 = arith.index_cast %c1_i32 : i32 to index
    %c0_194 = arith.constant 0 : index
    %c0_195 = arith.constant 0 : index
    %301 = vector.load %arg14[%300, %c0_194, %c0_195] : memref<8x2x32xf32, #tpu.memory_space<vmem>>, vector<1x2x32xf32>
    %302 = vector.shape_cast %301 : vector<1x2x32xf32> to vector<2x32xf32>
    %303 = vector.shape_cast %251 : vector<2x32xf32> to vector<1x2x32xf32>
    tpu.vector_store %arg14[%300, %c0_194, %c0_195], %303 {strides = array<i32>} : memref<8x2x32xf32, #tpu.memory_space<vmem>>, vector<1x2x32xf32>,
    %304 = arith.index_cast %203 : i32 to index
    %c0_196 = arith.constant 0 : index
    %c0_197 = arith.constant 0 : index
    %305 = vector.load %arg15[%304, %c0_196, %c0_197] : memref<8x2x32xf32, #tpu.memory_space<vmem>>, vector<1x2x32xf32>
    %306 = vector.shape_cast %305 : vector<1x2x32xf32> to vector<2x32xf32>
    %307 = vector.shape_cast %299 : vector<2x32xf32> to vector<1x2x32xf32>
    tpu.vector_store %arg15[%304, %c0_196, %c0_197], %307 {strides = array<i32>} : memref<8x2x32xf32, #tpu.memory_space<vmem>>, vector<1x2x32xf32>,
    %c2_i32_198 = arith.constant 2 : i32
    %c7_i32_199 = arith.constant 7 : i32
    %308 = arith.subi %c7_i32_199, %c2_i32_198 : i32
    %c2_i32_200 = arith.constant 2 : i32
    %309 = arith.muli %c2_i32_198, %c2_i32_200 : i32
    %c0_201 = arith.constant 0 : index
    %310 = arith.index_cast %309 : i32 to index
    %c0_202 = arith.constant 0 : index
    %311 = vector.load %arg12[%c0_201, %310, %c0_202] : memref<4x16x32xf32, #tpu.memory_space<vmem>>, vector<1x2x32xf32>
    %312 = vector.shape_cast %311 : vector<1x2x32xf32> to vector<2x32xf32>
    %cst_203 = arith.constant dense<0.000000e+00> : vector<2x32xf32>
    %313 = tpu.matmul %251, %82, %cst_203 {dimension_numbers = #tpu.dot_dimension_numbers<[1], [0], [0], [1], [0, 0, 1, 1], [], []>} : vector<2x32xf32>, vector<32x32xf32>, vector<2x32xf32> -> vector<2x32xf32>
    %314 = arith.addf %312, %313 : vector<2x32xf32>
    %c1_204 = arith.constant 1 : index
    %315 = arith.index_cast %309 : i32 to index
    %c0_205 = arith.constant 0 : index
    %316 = vector.load %arg12[%c1_204, %315, %c0_205] : memref<4x16x32xf32, #tpu.memory_space<vmem>>, vector<1x2x32xf32>
    %317 = vector.shape_cast %316 : vector<1x2x32xf32> to vector<2x32xf32>
    %cst_206 = arith.constant dense<0.000000e+00> : vector<2x32xf32>
    %318 = tpu.matmul %251, %84, %cst_206 {dimension_numbers = #tpu.dot_dimension_numbers<[1], [0], [0], [1], [0, 0, 1, 1], [], []>} : vector<2x32xf32>, vector<32x32xf32>, vector<2x32xf32> -> vector<2x32xf32>
    %319 = arith.addf %317, %318 : vector<2x32xf32>
    %c2_207 = arith.constant 2 : index
    %320 = arith.index_cast %309 : i32 to index
    %c0_208 = arith.constant 0 : index
    %321 = vector.load %arg12[%c2_207, %320, %c0_208] : memref<4x16x32xf32, #tpu.memory_space<vmem>>, vector<1x2x32xf32>
    %322 = vector.shape_cast %321 : vector<1x2x32xf32> to vector<2x32xf32>
    %cst_209 = arith.constant dense<0.000000e+00> : vector<2x32xf32>
    %323 = tpu.matmul %251, %86, %cst_209 {dimension_numbers = #tpu.dot_dimension_numbers<[1], [0], [0], [1], [0, 0, 1, 1], [], []>} : vector<2x32xf32>, vector<32x32xf32>, vector<2x32xf32> -> vector<2x32xf32>
    %324 = arith.addf %322, %323 : vector<2x32xf32>
    %c3_210 = arith.constant 3 : index
    %325 = arith.index_cast %309 : i32 to index
    %c0_211 = arith.constant 0 : index
    %326 = vector.load %arg12[%c3_210, %325, %c0_211] : memref<4x16x32xf32, #tpu.memory_space<vmem>>, vector<1x2x32xf32>
    %327 = vector.shape_cast %326 : vector<1x2x32xf32> to vector<2x32xf32>
    %cst_212 = arith.constant dense<0.000000e+00> : vector<2x32xf32>
    %328 = tpu.matmul %251, %88, %cst_212 {dimension_numbers = #tpu.dot_dimension_numbers<[1], [0], [0], [1], [0, 0, 1, 1], [], []>} : vector<2x32xf32>, vector<32x32xf32>, vector<2x32xf32> -> vector<2x32xf32>
    %329 = arith.addf %327, %328 : vector<2x32xf32>
    %cst_213 = arith.constant 5.000000e-01 : f32
    %330 = vector.broadcast %cst_213 : f32 to vector<2x32xf32>
    %331 = arith.mulf %330, %314 : vector<2x32xf32>
    %332 = math.tanh %331 : vector<2x32xf32>
    %cst_214 = arith.constant 5.000000e-01 : f32
    %333 = vector.broadcast %cst_214 : f32 to vector<2x32xf32>
    %334 = arith.mulf %333, %332 : vector<2x32xf32>
    %cst_215 = arith.constant 5.000000e-01 : f32
    %335 = vector.broadcast %cst_215 : f32 to vector<2x32xf32>
    %336 = arith.addf %334, %335 : vector<2x32xf32>
    %cst_216 = arith.constant 5.000000e-01 : f32
    %337 = vector.broadcast %cst_216 : f32 to vector<2x32xf32>
    %338 = arith.mulf %337, %319 : vector<2x32xf32>
    %339 = math.tanh %338 : vector<2x32xf32>
    %cst_217 = arith.constant 5.000000e-01 : f32
    %340 = vector.broadcast %cst_217 : f32 to vector<2x32xf32>
    %341 = arith.mulf %340, %339 : vector<2x32xf32>
    %cst_218 = arith.constant 5.000000e-01 : f32
    %342 = vector.broadcast %cst_218 : f32 to vector<2x32xf32>
    %343 = arith.addf %341, %342 : vector<2x32xf32>
    %344 = math.tanh %324 : vector<2x32xf32>
    %cst_219 = arith.constant 5.000000e-01 : f32
    %345 = vector.broadcast %cst_219 : f32 to vector<2x32xf32>
    %346 = arith.mulf %345, %329 : vector<2x32xf32>
    %347 = math.tanh %346 : vector<2x32xf32>
    %cst_220 = arith.constant 5.000000e-01 : f32
    %348 = vector.broadcast %cst_220 : f32 to vector<2x32xf32>
    %349 = arith.mulf %348, %347 : vector<2x32xf32>
    %cst_221 = arith.constant 5.000000e-01 : f32
    %350 = vector.broadcast %cst_221 : f32 to vector<2x32xf32>
    %351 = arith.addf %349, %350 : vector<2x32xf32>
    %352 = arith.mulf %343, %249 : vector<2x32xf32>
    %353 = arith.mulf %336, %344 : vector<2x32xf32>
    %354 = arith.addf %352, %353 : vector<2x32xf32>
    %355 = math.tanh %354 : vector<2x32xf32>
    %356 = arith.mulf %351, %355 : vector<2x32xf32>
    %c2_i32_222 = arith.constant 2 : i32
    %357 = arith.muli %308, %c2_i32_222 : i32
    %c0_223 = arith.constant 0 : index
    %358 = arith.index_cast %357 : i32 to index
    %c0_224 = arith.constant 0 : index
    %359 = vector.load %arg13[%c0_223, %358, %c0_224] : memref<4x16x32xf32, #tpu.memory_space<vmem>>, vector<1x2x32xf32>
    %360 = vector.shape_cast %359 : vector<1x2x32xf32> to vector<2x32xf32>
    %cst_225 = arith.constant dense<0.000000e+00> : vector<2x32xf32>
    %361 = tpu.matmul %299, %90, %cst_225 {dimension_numbers = #tpu.dot_dimension_numbers<[1], [0], [0], [1], [0, 0, 1, 1], [], []>} : vector<2x32xf32>, vector<32x32xf32>, vector<2x32xf32> -> vector<2x32xf32>
    %362 = arith.addf %360, %361 : vector<2x32xf32>
    %c1_226 = arith.constant 1 : index
    %363 = arith.index_cast %357 : i32 to index
    %c0_227 = arith.constant 0 : index
    %364 = vector.load %arg13[%c1_226, %363, %c0_227] : memref<4x16x32xf32, #tpu.memory_space<vmem>>, vector<1x2x32xf32>
    %365 = vector.shape_cast %364 : vector<1x2x32xf32> to vector<2x32xf32>
    %cst_228 = arith.constant dense<0.000000e+00> : vector<2x32xf32>
    %366 = tpu.matmul %299, %92, %cst_228 {dimension_numbers = #tpu.dot_dimension_numbers<[1], [0], [0], [1], [0, 0, 1, 1], [], []>} : vector<2x32xf32>, vector<32x32xf32>, vector<2x32xf32> -> vector<2x32xf32>
    %367 = arith.addf %365, %366 : vector<2x32xf32>
    %c2_229 = arith.constant 2 : index
    %368 = arith.index_cast %357 : i32 to index
    %c0_230 = arith.constant 0 : index
    %369 = vector.load %arg13[%c2_229, %368, %c0_230] : memref<4x16x32xf32, #tpu.memory_space<vmem>>, vector<1x2x32xf32>
    %370 = vector.shape_cast %369 : vector<1x2x32xf32> to vector<2x32xf32>
    %cst_231 = arith.constant dense<0.000000e+00> : vector<2x32xf32>
    %371 = tpu.matmul %299, %94, %cst_231 {dimension_numbers = #tpu.dot_dimension_numbers<[1], [0], [0], [1], [0, 0, 1, 1], [], []>} : vector<2x32xf32>, vector<32x32xf32>, vector<2x32xf32> -> vector<2x32xf32>
    %372 = arith.addf %370, %371 : vector<2x32xf32>
    %c3_232 = arith.constant 3 : index
    %373 = arith.index_cast %357 : i32 to index
    %c0_233 = arith.constant 0 : index
    %374 = vector.load %arg13[%c3_232, %373, %c0_233] : memref<4x16x32xf32, #tpu.memory_space<vmem>>, vector<1x2x32xf32>
    %375 = vector.shape_cast %374 : vector<1x2x32xf32> to vector<2x32xf32>
    %cst_234 = arith.constant dense<0.000000e+00> : vector<2x32xf32>
    %376 = tpu.matmul %299, %96, %cst_234 {dimension_numbers = #tpu.dot_dimension_numbers<[1], [0], [0], [1], [0, 0, 1, 1], [], []>} : vector<2x32xf32>, vector<32x32xf32>, vector<2x32xf32> -> vector<2x32xf32>
    %377 = arith.addf %375, %376 : vector<2x32xf32>
    %cst_235 = arith.constant 5.000000e-01 : f32
    %378 = vector.broadcast %cst_235 : f32 to vector<2x32xf32>
    %379 = arith.mulf %378, %362 : vector<2x32xf32>
    %380 = math.tanh %379 : vector<2x32xf32>
    %cst_236 = arith.constant 5.000000e-01 : f32
    %381 = vector.broadcast %cst_236 : f32 to vector<2x32xf32>
    %382 = arith.mulf %381, %380 : vector<2x32xf32>
    %cst_237 = arith.constant 5.000000e-01 : f32
    %383 = vector.broadcast %cst_237 : f32 to vector<2x32xf32>
    %384 = arith.addf %382, %383 : vector<2x32xf32>
    %cst_238 = arith.constant 5.000000e-01 : f32
    %385 = vector.broadcast %cst_238 : f32 to vector<2x32xf32>
    %386 = arith.mulf %385, %367 : vector<2x32xf32>
    %387 = math.tanh %386 : vector<2x32xf32>
    %cst_239 = arith.constant 5.000000e-01 : f32
    %388 = vector.broadcast %cst_239 : f32 to vector<2x32xf32>
    %389 = arith.mulf %388, %387 : vector<2x32xf32>
    %cst_240 = arith.constant 5.000000e-01 : f32
    %390 = vector.broadcast %cst_240 : f32 to vector<2x32xf32>
    %391 = arith.addf %389, %390 : vector<2x32xf32>
    %392 = math.tanh %372 : vector<2x32xf32>
    %cst_241 = arith.constant 5.000000e-01 : f32
    %393 = vector.broadcast %cst_241 : f32 to vector<2x32xf32>
    %394 = arith.mulf %393, %377 : vector<2x32xf32>
    %395 = math.tanh %394 : vector<2x32xf32>
    %cst_242 = arith.constant 5.000000e-01 : f32
    %396 = vector.broadcast %cst_242 : f32 to vector<2x32xf32>
    %397 = arith.mulf %396, %395 : vector<2x32xf32>
    %cst_243 = arith.constant 5.000000e-01 : f32
    %398 = vector.broadcast %cst_243 : f32 to vector<2x32xf32>
    %399 = arith.addf %397, %398 : vector<2x32xf32>
    %400 = arith.mulf %391, %297 : vector<2x32xf32>
    %401 = arith.mulf %384, %392 : vector<2x32xf32>
    %402 = arith.addf %400, %401 : vector<2x32xf32>
    %403 = math.tanh %402 : vector<2x32xf32>
    %404 = arith.mulf %399, %403 : vector<2x32xf32>
    %405 = arith.index_cast %c2_i32_198 : i32 to index
    %c0_244 = arith.constant 0 : index
    %c0_245 = arith.constant 0 : index
    %406 = vector.load %arg14[%405, %c0_244, %c0_245] : memref<8x2x32xf32, #tpu.memory_space<vmem>>, vector<1x2x32xf32>
    %407 = vector.shape_cast %406 : vector<1x2x32xf32> to vector<2x32xf32>
    %408 = vector.shape_cast %356 : vector<2x32xf32> to vector<1x2x32xf32>
    tpu.vector_store %arg14[%405, %c0_244, %c0_245], %408 {strides = array<i32>} : memref<8x2x32xf32, #tpu.memory_space<vmem>>, vector<1x2x32xf32>,
    %409 = arith.index_cast %308 : i32 to index
    %c0_246 = arith.constant 0 : index
    %c0_247 = arith.constant 0 : index
    %410 = vector.load %arg15[%409, %c0_246, %c0_247] : memref<8x2x32xf32, #tpu.memory_space<vmem>>, vector<1x2x32xf32>
    %411 = vector.shape_cast %410 : vector<1x2x32xf32> to vector<2x32xf32>
    %412 = vector.shape_cast %404 : vector<2x32xf32> to vector<1x2x32xf32>
    tpu.vector_store %arg15[%409, %c0_246, %c0_247], %412 {strides = array<i32>} : memref<8x2x32xf32, #tpu.memory_space<vmem>>, vector<1x2x32xf32>,
    %c3_i32 = arith.constant 3 : i32
    %c7_i32_248 = arith.constant 7 : i32
    %413 = arith.subi %c7_i32_248, %c3_i32 : i32
    %c2_i32_249 = arith.constant 2 : i32
    %414 = arith.muli %c3_i32, %c2_i32_249 : i32
    %c0_250 = arith.constant 0 : index
    %415 = arith.index_cast %414 : i32 to index
    %c0_251 = arith.constant 0 : index
    %416 = vector.load %arg12[%c0_250, %415, %c0_251] : memref<4x16x32xf32, #tpu.memory_space<vmem>>, vector<1x2x32xf32>
    %417 = vector.shape_cast %416 : vector<1x2x32xf32> to vector<2x32xf32>
    %cst_252 = arith.constant dense<0.000000e+00> : vector<2x32xf32>
    %418 = tpu.matmul %356, %82, %cst_252 {dimension_numbers = #tpu.dot_dimension_numbers<[1], [0], [0], [1], [0, 0, 1, 1], [], []>} : vector<2x32xf32>, vector<32x32xf32>, vector<2x32xf32> -> vector<2x32xf32>
    %419 = arith.addf %417, %418 : vector<2x32xf32>
    %c1_253 = arith.constant 1 : index
    %420 = arith.index_cast %414 : i32 to index
    %c0_254 = arith.constant 0 : index
    %421 = vector.load %arg12[%c1_253, %420, %c0_254] : memref<4x16x32xf32, #tpu.memory_space<vmem>>, vector<1x2x32xf32>
    %422 = vector.shape_cast %421 : vector<1x2x32xf32> to vector<2x32xf32>
    %cst_255 = arith.constant dense<0.000000e+00> : vector<2x32xf32>
    %423 = tpu.matmul %356, %84, %cst_255 {dimension_numbers = #tpu.dot_dimension_numbers<[1], [0], [0], [1], [0, 0, 1, 1], [], []>} : vector<2x32xf32>, vector<32x32xf32>, vector<2x32xf32> -> vector<2x32xf32>
    %424 = arith.addf %422, %423 : vector<2x32xf32>
    %c2_256 = arith.constant 2 : index
    %425 = arith.index_cast %414 : i32 to index
    %c0_257 = arith.constant 0 : index
    %426 = vector.load %arg12[%c2_256, %425, %c0_257] : memref<4x16x32xf32, #tpu.memory_space<vmem>>, vector<1x2x32xf32>
    %427 = vector.shape_cast %426 : vector<1x2x32xf32> to vector<2x32xf32>
    %cst_258 = arith.constant dense<0.000000e+00> : vector<2x32xf32>
    %428 = tpu.matmul %356, %86, %cst_258 {dimension_numbers = #tpu.dot_dimension_numbers<[1], [0], [0], [1], [0, 0, 1, 1], [], []>} : vector<2x32xf32>, vector<32x32xf32>, vector<2x32xf32> -> vector<2x32xf32>
    %429 = arith.addf %427, %428 : vector<2x32xf32>
    %c3_259 = arith.constant 3 : index
    %430 = arith.index_cast %414 : i32 to index
    %c0_260 = arith.constant 0 : index
    %431 = vector.load %arg12[%c3_259, %430, %c0_260] : memref<4x16x32xf32, #tpu.memory_space<vmem>>, vector<1x2x32xf32>
    %432 = vector.shape_cast %431 : vector<1x2x32xf32> to vector<2x32xf32>
    %cst_261 = arith.constant dense<0.000000e+00> : vector<2x32xf32>
    %433 = tpu.matmul %356, %88, %cst_261 {dimension_numbers = #tpu.dot_dimension_numbers<[1], [0], [0], [1], [0, 0, 1, 1], [], []>} : vector<2x32xf32>, vector<32x32xf32>, vector<2x32xf32> -> vector<2x32xf32>
    %434 = arith.addf %432, %433 : vector<2x32xf32>
    %cst_262 = arith.constant 5.000000e-01 : f32
    %435 = vector.broadcast %cst_262 : f32 to vector<2x32xf32>
    %436 = arith.mulf %435, %419 : vector<2x32xf32>
    %437 = math.tanh %436 : vector<2x32xf32>
    %cst_263 = arith.constant 5.000000e-01 : f32
    %438 = vector.broadcast %cst_263 : f32 to vector<2x32xf32>
    %439 = arith.mulf %438, %437 : vector<2x32xf32>
    %cst_264 = arith.constant 5.000000e-01 : f32
    %440 = vector.broadcast %cst_264 : f32 to vector<2x32xf32>
    %441 = arith.addf %439, %440 : vector<2x32xf32>
    %cst_265 = arith.constant 5.000000e-01 : f32
    %442 = vector.broadcast %cst_265 : f32 to vector<2x32xf32>
    %443 = arith.mulf %442, %424 : vector<2x32xf32>
    %444 = math.tanh %443 : vector<2x32xf32>
    %cst_266 = arith.constant 5.000000e-01 : f32
    %445 = vector.broadcast %cst_266 : f32 to vector<2x32xf32>
    %446 = arith.mulf %445, %444 : vector<2x32xf32>
    %cst_267 = arith.constant 5.000000e-01 : f32
    %447 = vector.broadcast %cst_267 : f32 to vector<2x32xf32>
    %448 = arith.addf %446, %447 : vector<2x32xf32>
    %449 = math.tanh %429 : vector<2x32xf32>
    %cst_268 = arith.constant 5.000000e-01 : f32
    %450 = vector.broadcast %cst_268 : f32 to vector<2x32xf32>
    %451 = arith.mulf %450, %434 : vector<2x32xf32>
    %452 = math.tanh %451 : vector<2x32xf32>
    %cst_269 = arith.constant 5.000000e-01 : f32
    %453 = vector.broadcast %cst_269 : f32 to vector<2x32xf32>
    %454 = arith.mulf %453, %452 : vector<2x32xf32>
    %cst_270 = arith.constant 5.000000e-01 : f32
    %455 = vector.broadcast %cst_270 : f32 to vector<2x32xf32>
    %456 = arith.addf %454, %455 : vector<2x32xf32>
    %457 = arith.mulf %448, %354 : vector<2x32xf32>
    %458 = arith.mulf %441, %449 : vector<2x32xf32>
    %459 = arith.addf %457, %458 : vector<2x32xf32>
    %460 = math.tanh %459 : vector<2x32xf32>
    %461 = arith.mulf %456, %460 : vector<2x32xf32>
    %c2_i32_271 = arith.constant 2 : i32
    %462 = arith.muli %413, %c2_i32_271 : i32
    %c0_272 = arith.constant 0 : index
    %463 = arith.index_cast %462 : i32 to index
    %c0_273 = arith.constant 0 : index
    %464 = vector.load %arg13[%c0_272, %463, %c0_273] : memref<4x16x32xf32, #tpu.memory_space<vmem>>, vector<1x2x32xf32>
    %465 = vector.shape_cast %464 : vector<1x2x32xf32> to vector<2x32xf32>
    %cst_274 = arith.constant dense<0.000000e+00> : vector<2x32xf32>
    %466 = tpu.matmul %404, %90, %cst_274 {dimension_numbers = #tpu.dot_dimension_numbers<[1], [0], [0], [1], [0, 0, 1, 1], [], []>} : vector<2x32xf32>, vector<32x32xf32>, vector<2x32xf32> -> vector<2x32xf32>
    %467 = arith.addf %465, %466 : vector<2x32xf32>
    %c1_275 = arith.constant 1 : index
    %468 = arith.index_cast %462 : i32 to index
    %c0_276 = arith.constant 0 : index
    %469 = vector.load %arg13[%c1_275, %468, %c0_276] : memref<4x16x32xf32, #tpu.memory_space<vmem>>, vector<1x2x32xf32>
    %470 = vector.shape_cast %469 : vector<1x2x32xf32> to vector<2x32xf32>
    %cst_277 = arith.constant dense<0.000000e+00> : vector<2x32xf32>
    %471 = tpu.matmul %404, %92, %cst_277 {dimension_numbers = #tpu.dot_dimension_numbers<[1], [0], [0], [1], [0, 0, 1, 1], [], []>} : vector<2x32xf32>, vector<32x32xf32>, vector<2x32xf32> -> vector<2x32xf32>
    %472 = arith.addf %470, %471 : vector<2x32xf32>
    %c2_278 = arith.constant 2 : index
    %473 = arith.index_cast %462 : i32 to index
    %c0_279 = arith.constant 0 : index
    %474 = vector.load %arg13[%c2_278, %473, %c0_279] : memref<4x16x32xf32, #tpu.memory_space<vmem>>, vector<1x2x32xf32>
    %475 = vector.shape_cast %474 : vector<1x2x32xf32> to vector<2x32xf32>
    %cst_280 = arith.constant dense<0.000000e+00> : vector<2x32xf32>
    %476 = tpu.matmul %404, %94, %cst_280 {dimension_numbers = #tpu.dot_dimension_numbers<[1], [0], [0], [1], [0, 0, 1, 1], [], []>} : vector<2x32xf32>, vector<32x32xf32>, vector<2x32xf32> -> vector<2x32xf32>
    %477 = arith.addf %475, %476 : vector<2x32xf32>
    %c3_281 = arith.constant 3 : index
    %478 = arith.index_cast %462 : i32 to index
    %c0_282 = arith.constant 0 : index
    %479 = vector.load %arg13[%c3_281, %478, %c0_282] : memref<4x16x32xf32, #tpu.memory_space<vmem>>, vector<1x2x32xf32>
    %480 = vector.shape_cast %479 : vector<1x2x32xf32> to vector<2x32xf32>
    %cst_283 = arith.constant dense<0.000000e+00> : vector<2x32xf32>
    %481 = tpu.matmul %404, %96, %cst_283 {dimension_numbers = #tpu.dot_dimension_numbers<[1], [0], [0], [1], [0, 0, 1, 1], [], []>} : vector<2x32xf32>, vector<32x32xf32>, vector<2x32xf32> -> vector<2x32xf32>
    %482 = arith.addf %480, %481 : vector<2x32xf32>
    %cst_284 = arith.constant 5.000000e-01 : f32
    %483 = vector.broadcast %cst_284 : f32 to vector<2x32xf32>
    %484 = arith.mulf %483, %467 : vector<2x32xf32>
    %485 = math.tanh %484 : vector<2x32xf32>
    %cst_285 = arith.constant 5.000000e-01 : f32
    %486 = vector.broadcast %cst_285 : f32 to vector<2x32xf32>
    %487 = arith.mulf %486, %485 : vector<2x32xf32>
    %cst_286 = arith.constant 5.000000e-01 : f32
    %488 = vector.broadcast %cst_286 : f32 to vector<2x32xf32>
    %489 = arith.addf %487, %488 : vector<2x32xf32>
    %cst_287 = arith.constant 5.000000e-01 : f32
    %490 = vector.broadcast %cst_287 : f32 to vector<2x32xf32>
    %491 = arith.mulf %490, %472 : vector<2x32xf32>
    %492 = math.tanh %491 : vector<2x32xf32>
    %cst_288 = arith.constant 5.000000e-01 : f32
    %493 = vector.broadcast %cst_288 : f32 to vector<2x32xf32>
    %494 = arith.mulf %493, %492 : vector<2x32xf32>
    %cst_289 = arith.constant 5.000000e-01 : f32
    %495 = vector.broadcast %cst_289 : f32 to vector<2x32xf32>
    %496 = arith.addf %494, %495 : vector<2x32xf32>
    %497 = math.tanh %477 : vector<2x32xf32>
    %cst_290 = arith.constant 5.000000e-01 : f32
    %498 = vector.broadcast %cst_290 : f32 to vector<2x32xf32>
    %499 = arith.mulf %498, %482 : vector<2x32xf32>
    %500 = math.tanh %499 : vector<2x32xf32>
    %cst_291 = arith.constant 5.000000e-01 : f32
    %501 = vector.broadcast %cst_291 : f32 to vector<2x32xf32>
    %502 = arith.mulf %501, %500 : vector<2x32xf32>
    %cst_292 = arith.constant 5.000000e-01 : f32
    %503 = vector.broadcast %cst_292 : f32 to vector<2x32xf32>
    %504 = arith.addf %502, %503 : vector<2x32xf32>
    %505 = arith.mulf %496, %402 : vector<2x32xf32>
    %506 = arith.mulf %489, %497 : vector<2x32xf32>
    %507 = arith.addf %505, %506 : vector<2x32xf32>
    %508 = math.tanh %507 : vector<2x32xf32>
    %509 = arith.mulf %504, %508 : vector<2x32xf32>
    %510 = arith.index_cast %c3_i32 : i32 to index
    %c0_293 = arith.constant 0 : index
    %c0_294 = arith.constant 0 : index
    %511 = vector.load %arg14[%510, %c0_293, %c0_294] : memref<8x2x32xf32, #tpu.memory_space<vmem>>, vector<1x2x32xf32>
    %512 = vector.shape_cast %511 : vector<1x2x32xf32> to vector<2x32xf32>
    %513 = vector.shape_cast %461 : vector<2x32xf32> to vector<1x2x32xf32>
    tpu.vector_store %arg14[%510, %c0_293, %c0_294], %513 {strides = array<i32>} : memref<8x2x32xf32, #tpu.memory_space<vmem>>, vector<1x2x32xf32>,
    %514 = arith.index_cast %413 : i32 to index
    %c0_295 = arith.constant 0 : index
    %c0_296 = arith.constant 0 : index
    %515 = vector.load %arg15[%514, %c0_295, %c0_296] : memref<8x2x32xf32, #tpu.memory_space<vmem>>, vector<1x2x32xf32>
    %516 = vector.shape_cast %515 : vector<1x2x32xf32> to vector<2x32xf32>
    %517 = vector.shape_cast %509 : vector<2x32xf32> to vector<1x2x32xf32>
    tpu.vector_store %arg15[%514, %c0_295, %c0_296], %517 {strides = array<i32>} : memref<8x2x32xf32, #tpu.memory_space<vmem>>, vector<1x2x32xf32>,
    %c4_i32 = arith.constant 4 : i32
    %c7_i32_297 = arith.constant 7 : i32
    %518 = arith.subi %c7_i32_297, %c4_i32 : i32
    %c2_i32_298 = arith.constant 2 : i32
    %519 = arith.muli %c4_i32, %c2_i32_298 : i32
    %c0_299 = arith.constant 0 : index
    %520 = arith.index_cast %519 : i32 to index
    %c0_300 = arith.constant 0 : index
    %521 = vector.load %arg12[%c0_299, %520, %c0_300] : memref<4x16x32xf32, #tpu.memory_space<vmem>>, vector<1x2x32xf32>
    %522 = vector.shape_cast %521 : vector<1x2x32xf32> to vector<2x32xf32>
    %cst_301 = arith.constant dense<0.000000e+00> : vector<2x32xf32>
    %523 = tpu.matmul %461, %82, %cst_301 {dimension_numbers = #tpu.dot_dimension_numbers<[1], [0], [0], [1], [0, 0, 1, 1], [], []>} : vector<2x32xf32>, vector<32x32xf32>, vector<2x32xf32> -> vector<2x32xf32>
    %524 = arith.addf %522, %523 : vector<2x32xf32>
    %c1_302 = arith.constant 1 : index
    %525 = arith.index_cast %519 : i32 to index
    %c0_303 = arith.constant 0 : index
    %526 = vector.load %arg12[%c1_302, %525, %c0_303] : memref<4x16x32xf32, #tpu.memory_space<vmem>>, vector<1x2x32xf32>
    %527 = vector.shape_cast %526 : vector<1x2x32xf32> to vector<2x32xf32>
    %cst_304 = arith.constant dense<0.000000e+00> : vector<2x32xf32>
    %528 = tpu.matmul %461, %84, %cst_304 {dimension_numbers = #tpu.dot_dimension_numbers<[1], [0], [0], [1], [0, 0, 1, 1], [], []>} : vector<2x32xf32>, vector<32x32xf32>, vector<2x32xf32> -> vector<2x32xf32>
    %529 = arith.addf %527, %528 : vector<2x32xf32>
    %c2_305 = arith.constant 2 : index
    %530 = arith.index_cast %519 : i32 to index
    %c0_306 = arith.constant 0 : index
    %531 = vector.load %arg12[%c2_305, %530, %c0_306] : memref<4x16x32xf32, #tpu.memory_space<vmem>>, vector<1x2x32xf32>
    %532 = vector.shape_cast %531 : vector<1x2x32xf32> to vector<2x32xf32>
    %cst_307 = arith.constant dense<0.000000e+00> : vector<2x32xf32>
    %533 = tpu.matmul %461, %86, %cst_307 {dimension_numbers = #tpu.dot_dimension_numbers<[1], [0], [0], [1], [0, 0, 1, 1], [], []>} : vector<2x32xf32>, vector<32x32xf32>, vector<2x32xf32> -> vector<2x32xf32>
    %534 = arith.addf %532, %533 : vector<2x32xf32>
    %c3_308 = arith.constant 3 : index
    %535 = arith.index_cast %519 : i32 to index
    %c0_309 = arith.constant 0 : index
    %536 = vector.load %arg12[%c3_308, %535, %c0_309] : memref<4x16x32xf32, #tpu.memory_space<vmem>>, vector<1x2x32xf32>
    %537 = vector.shape_cast %536 : vector<1x2x32xf32> to vector<2x32xf32>
    %cst_310 = arith.constant dense<0.000000e+00> : vector<2x32xf32>
    %538 = tpu.matmul %461, %88, %cst_310 {dimension_numbers = #tpu.dot_dimension_numbers<[1], [0], [0], [1], [0, 0, 1, 1], [], []>} : vector<2x32xf32>, vector<32x32xf32>, vector<2x32xf32> -> vector<2x32xf32>
    %539 = arith.addf %537, %538 : vector<2x32xf32>
    %cst_311 = arith.constant 5.000000e-01 : f32
    %540 = vector.broadcast %cst_311 : f32 to vector<2x32xf32>
    %541 = arith.mulf %540, %524 : vector<2x32xf32>
    %542 = math.tanh %541 : vector<2x32xf32>
    %cst_312 = arith.constant 5.000000e-01 : f32
    %543 = vector.broadcast %cst_312 : f32 to vector<2x32xf32>
    %544 = arith.mulf %543, %542 : vector<2x32xf32>
    %cst_313 = arith.constant 5.000000e-01 : f32
    %545 = vector.broadcast %cst_313 : f32 to vector<2x32xf32>
    %546 = arith.addf %544, %545 : vector<2x32xf32>
    %cst_314 = arith.constant 5.000000e-01 : f32
    %547 = vector.broadcast %cst_314 : f32 to vector<2x32xf32>
    %548 = arith.mulf %547, %529 : vector<2x32xf32>
    %549 = math.tanh %548 : vector<2x32xf32>
    %cst_315 = arith.constant 5.000000e-01 : f32
    %550 = vector.broadcast %cst_315 : f32 to vector<2x32xf32>
    %551 = arith.mulf %550, %549 : vector<2x32xf32>
    %cst_316 = arith.constant 5.000000e-01 : f32
    %552 = vector.broadcast %cst_316 : f32 to vector<2x32xf32>
    %553 = arith.addf %551, %552 : vector<2x32xf32>
    %554 = math.tanh %534 : vector<2x32xf32>
    %cst_317 = arith.constant 5.000000e-01 : f32
    %555 = vector.broadcast %cst_317 : f32 to vector<2x32xf32>
    %556 = arith.mulf %555, %539 : vector<2x32xf32>
    %557 = math.tanh %556 : vector<2x32xf32>
    %cst_318 = arith.constant 5.000000e-01 : f32
    %558 = vector.broadcast %cst_318 : f32 to vector<2x32xf32>
    %559 = arith.mulf %558, %557 : vector<2x32xf32>
    %cst_319 = arith.constant 5.000000e-01 : f32
    %560 = vector.broadcast %cst_319 : f32 to vector<2x32xf32>
    %561 = arith.addf %559, %560 : vector<2x32xf32>
    %562 = arith.mulf %553, %459 : vector<2x32xf32>
    %563 = arith.mulf %546, %554 : vector<2x32xf32>
    %564 = arith.addf %562, %563 : vector<2x32xf32>
    %565 = math.tanh %564 : vector<2x32xf32>
    %566 = arith.mulf %561, %565 : vector<2x32xf32>
    %c2_i32_320 = arith.constant 2 : i32
    %567 = arith.muli %518, %c2_i32_320 : i32
    %c0_321 = arith.constant 0 : index
    %568 = arith.index_cast %567 : i32 to index
    %c0_322 = arith.constant 0 : index
    %569 = vector.load %arg13[%c0_321, %568, %c0_322] : memref<4x16x32xf32, #tpu.memory_space<vmem>>, vector<1x2x32xf32>
    %570 = vector.shape_cast %569 : vector<1x2x32xf32> to vector<2x32xf32>
    %cst_323 = arith.constant dense<0.000000e+00> : vector<2x32xf32>
    %571 = tpu.matmul %509, %90, %cst_323 {dimension_numbers = #tpu.dot_dimension_numbers<[1], [0], [0], [1], [0, 0, 1, 1], [], []>} : vector<2x32xf32>, vector<32x32xf32>, vector<2x32xf32> -> vector<2x32xf32>
    %572 = arith.addf %570, %571 : vector<2x32xf32>
    %c1_324 = arith.constant 1 : index
    %573 = arith.index_cast %567 : i32 to index
    %c0_325 = arith.constant 0 : index
    %574 = vector.load %arg13[%c1_324, %573, %c0_325] : memref<4x16x32xf32, #tpu.memory_space<vmem>>, vector<1x2x32xf32>
    %575 = vector.shape_cast %574 : vector<1x2x32xf32> to vector<2x32xf32>
    %cst_326 = arith.constant dense<0.000000e+00> : vector<2x32xf32>
    %576 = tpu.matmul %509, %92, %cst_326 {dimension_numbers = #tpu.dot_dimension_numbers<[1], [0], [0], [1], [0, 0, 1, 1], [], []>} : vector<2x32xf32>, vector<32x32xf32>, vector<2x32xf32> -> vector<2x32xf32>
    %577 = arith.addf %575, %576 : vector<2x32xf32>
    %c2_327 = arith.constant 2 : index
    %578 = arith.index_cast %567 : i32 to index
    %c0_328 = arith.constant 0 : index
    %579 = vector.load %arg13[%c2_327, %578, %c0_328] : memref<4x16x32xf32, #tpu.memory_space<vmem>>, vector<1x2x32xf32>
    %580 = vector.shape_cast %579 : vector<1x2x32xf32> to vector<2x32xf32>
    %cst_329 = arith.constant dense<0.000000e+00> : vector<2x32xf32>
    %581 = tpu.matmul %509, %94, %cst_329 {dimension_numbers = #tpu.dot_dimension_numbers<[1], [0], [0], [1], [0, 0, 1, 1], [], []>} : vector<2x32xf32>, vector<32x32xf32>, vector<2x32xf32> -> vector<2x32xf32>
    %582 = arith.addf %580, %581 : vector<2x32xf32>
    %c3_330 = arith.constant 3 : index
    %583 = arith.index_cast %567 : i32 to index
    %c0_331 = arith.constant 0 : index
    %584 = vector.load %arg13[%c3_330, %583, %c0_331] : memref<4x16x32xf32, #tpu.memory_space<vmem>>, vector<1x2x32xf32>
    %585 = vector.shape_cast %584 : vector<1x2x32xf32> to vector<2x32xf32>
    %cst_332 = arith.constant dense<0.000000e+00> : vector<2x32xf32>
    %586 = tpu.matmul %509, %96, %cst_332 {dimension_numbers = #tpu.dot_dimension_numbers<[1], [0], [0], [1], [0, 0, 1, 1], [], []>} : vector<2x32xf32>, vector<32x32xf32>, vector<2x32xf32> -> vector<2x32xf32>
    %587 = arith.addf %585, %586 : vector<2x32xf32>
    %cst_333 = arith.constant 5.000000e-01 : f32
    %588 = vector.broadcast %cst_333 : f32 to vector<2x32xf32>
    %589 = arith.mulf %588, %572 : vector<2x32xf32>
    %590 = math.tanh %589 : vector<2x32xf32>
    %cst_334 = arith.constant 5.000000e-01 : f32
    %591 = vector.broadcast %cst_334 : f32 to vector<2x32xf32>
    %592 = arith.mulf %591, %590 : vector<2x32xf32>
    %cst_335 = arith.constant 5.000000e-01 : f32
    %593 = vector.broadcast %cst_335 : f32 to vector<2x32xf32>
    %594 = arith.addf %592, %593 : vector<2x32xf32>
    %cst_336 = arith.constant 5.000000e-01 : f32
    %595 = vector.broadcast %cst_336 : f32 to vector<2x32xf32>
    %596 = arith.mulf %595, %577 : vector<2x32xf32>
    %597 = math.tanh %596 : vector<2x32xf32>
    %cst_337 = arith.constant 5.000000e-01 : f32
    %598 = vector.broadcast %cst_337 : f32 to vector<2x32xf32>
    %599 = arith.mulf %598, %597 : vector<2x32xf32>
    %cst_338 = arith.constant 5.000000e-01 : f32
    %600 = vector.broadcast %cst_338 : f32 to vector<2x32xf32>
    %601 = arith.addf %599, %600 : vector<2x32xf32>
    %602 = math.tanh %582 : vector<2x32xf32>
    %cst_339 = arith.constant 5.000000e-01 : f32
    %603 = vector.broadcast %cst_339 : f32 to vector<2x32xf32>
    %604 = arith.mulf %603, %587 : vector<2x32xf32>
    %605 = math.tanh %604 : vector<2x32xf32>
    %cst_340 = arith.constant 5.000000e-01 : f32
    %606 = vector.broadcast %cst_340 : f32 to vector<2x32xf32>
    %607 = arith.mulf %606, %605 : vector<2x32xf32>
    %cst_341 = arith.constant 5.000000e-01 : f32
    %608 = vector.broadcast %cst_341 : f32 to vector<2x32xf32>
    %609 = arith.addf %607, %608 : vector<2x32xf32>
    %610 = arith.mulf %601, %507 : vector<2x32xf32>
    %611 = arith.mulf %594, %602 : vector<2x32xf32>
    %612 = arith.addf %610, %611 : vector<2x32xf32>
    %613 = math.tanh %612 : vector<2x32xf32>
    %614 = arith.mulf %609, %613 : vector<2x32xf32>
    %615 = arith.index_cast %c4_i32 : i32 to index
    %c0_342 = arith.constant 0 : index
    %c0_343 = arith.constant 0 : index
    %616 = vector.load %arg14[%615, %c0_342, %c0_343] : memref<8x2x32xf32, #tpu.memory_space<vmem>>, vector<1x2x32xf32>
    %617 = vector.shape_cast %616 : vector<1x2x32xf32> to vector<2x32xf32>
    %618 = vector.shape_cast %566 : vector<2x32xf32> to vector<1x2x32xf32>
    tpu.vector_store %arg14[%615, %c0_342, %c0_343], %618 {strides = array<i32>} : memref<8x2x32xf32, #tpu.memory_space<vmem>>, vector<1x2x32xf32>,
    %619 = arith.index_cast %518 : i32 to index
    %c0_344 = arith.constant 0 : index
    %c0_345 = arith.constant 0 : index
    %620 = vector.load %arg15[%619, %c0_344, %c0_345] : memref<8x2x32xf32, #tpu.memory_space<vmem>>, vector<1x2x32xf32>
    %621 = vector.shape_cast %620 : vector<1x2x32xf32> to vector<2x32xf32>
    %622 = vector.shape_cast %614 : vector<2x32xf32> to vector<1x2x32xf32>
    tpu.vector_store %arg15[%619, %c0_344, %c0_345], %622 {strides = array<i32>} : memref<8x2x32xf32, #tpu.memory_space<vmem>>, vector<1x2x32xf32>,
    %c5_i32 = arith.constant 5 : i32
    %c7_i32_346 = arith.constant 7 : i32
    %623 = arith.subi %c7_i32_346, %c5_i32 : i32
    %c2_i32_347 = arith.constant 2 : i32
    %624 = arith.muli %c5_i32, %c2_i32_347 : i32
    %c0_348 = arith.constant 0 : index
    %625 = arith.index_cast %624 : i32 to index
    %c0_349 = arith.constant 0 : index
    %626 = vector.load %arg12[%c0_348, %625, %c0_349] : memref<4x16x32xf32, #tpu.memory_space<vmem>>, vector<1x2x32xf32>
    %627 = vector.shape_cast %626 : vector<1x2x32xf32> to vector<2x32xf32>
    %cst_350 = arith.constant dense<0.000000e+00> : vector<2x32xf32>
    %628 = tpu.matmul %566, %82, %cst_350 {dimension_numbers = #tpu.dot_dimension_numbers<[1], [0], [0], [1], [0, 0, 1, 1], [], []>} : vector<2x32xf32>, vector<32x32xf32>, vector<2x32xf32> -> vector<2x32xf32>
    %629 = arith.addf %627, %628 : vector<2x32xf32>
    %c1_351 = arith.constant 1 : index
    %630 = arith.index_cast %624 : i32 to index
    %c0_352 = arith.constant 0 : index
    %631 = vector.load %arg12[%c1_351, %630, %c0_352] : memref<4x16x32xf32, #tpu.memory_space<vmem>>, vector<1x2x32xf32>
    %632 = vector.shape_cast %631 : vector<1x2x32xf32> to vector<2x32xf32>
    %cst_353 = arith.constant dense<0.000000e+00> : vector<2x32xf32>
    %633 = tpu.matmul %566, %84, %cst_353 {dimension_numbers = #tpu.dot_dimension_numbers<[1], [0], [0], [1], [0, 0, 1, 1], [], []>} : vector<2x32xf32>, vector<32x32xf32>, vector<2x32xf32> -> vector<2x32xf32>
    %634 = arith.addf %632, %633 : vector<2x32xf32>
    %c2_354 = arith.constant 2 : index
    %635 = arith.index_cast %624 : i32 to index
    %c0_355 = arith.constant 0 : index
    %636 = vector.load %arg12[%c2_354, %635, %c0_355] : memref<4x16x32xf32, #tpu.memory_space<vmem>>, vector<1x2x32xf32>
    %637 = vector.shape_cast %636 : vector<1x2x32xf32> to vector<2x32xf32>
    %cst_356 = arith.constant dense<0.000000e+00> : vector<2x32xf32>
    %638 = tpu.matmul %566, %86, %cst_356 {dimension_numbers = #tpu.dot_dimension_numbers<[1], [0], [0], [1], [0, 0, 1, 1], [], []>} : vector<2x32xf32>, vector<32x32xf32>, vector<2x32xf32> -> vector<2x32xf32>
    %639 = arith.addf %637, %638 : vector<2x32xf32>
    %c3_357 = arith.constant 3 : index
    %640 = arith.index_cast %624 : i32 to index
    %c0_358 = arith.constant 0 : index
    %641 = vector.load %arg12[%c3_357, %640, %c0_358] : memref<4x16x32xf32, #tpu.memory_space<vmem>>, vector<1x2x32xf32>
    %642 = vector.shape_cast %641 : vector<1x2x32xf32> to vector<2x32xf32>
    %cst_359 = arith.constant dense<0.000000e+00> : vector<2x32xf32>
    %643 = tpu.matmul %566, %88, %cst_359 {dimension_numbers = #tpu.dot_dimension_numbers<[1], [0], [0], [1], [0, 0, 1, 1], [], []>} : vector<2x32xf32>, vector<32x32xf32>, vector<2x32xf32> -> vector<2x32xf32>
    %644 = arith.addf %642, %643 : vector<2x32xf32>
    %cst_360 = arith.constant 5.000000e-01 : f32
    %645 = vector.broadcast %cst_360 : f32 to vector<2x32xf32>
    %646 = arith.mulf %645, %629 : vector<2x32xf32>
    %647 = math.tanh %646 : vector<2x32xf32>
    %cst_361 = arith.constant 5.000000e-01 : f32
    %648 = vector.broadcast %cst_361 : f32 to vector<2x32xf32>
    %649 = arith.mulf %648, %647 : vector<2x32xf32>
    %cst_362 = arith.constant 5.000000e-01 : f32
    %650 = vector.broadcast %cst_362 : f32 to vector<2x32xf32>
    %651 = arith.addf %649, %650 : vector<2x32xf32>
    %cst_363 = arith.constant 5.000000e-01 : f32
    %652 = vector.broadcast %cst_363 : f32 to vector<2x32xf32>
    %653 = arith.mulf %652, %634 : vector<2x32xf32>
    %654 = math.tanh %653 : vector<2x32xf32>
    %cst_364 = arith.constant 5.000000e-01 : f32
    %655 = vector.broadcast %cst_364 : f32 to vector<2x32xf32>
    %656 = arith.mulf %655, %654 : vector<2x32xf32>
    %cst_365 = arith.constant 5.000000e-01 : f32
    %657 = vector.broadcast %cst_365 : f32 to vector<2x32xf32>
    %658 = arith.addf %656, %657 : vector<2x32xf32>
    %659 = math.tanh %639 : vector<2x32xf32>
    %cst_366 = arith.constant 5.000000e-01 : f32
    %660 = vector.broadcast %cst_366 : f32 to vector<2x32xf32>
    %661 = arith.mulf %660, %644 : vector<2x32xf32>
    %662 = math.tanh %661 : vector<2x32xf32>
    %cst_367 = arith.constant 5.000000e-01 : f32
    %663 = vector.broadcast %cst_367 : f32 to vector<2x32xf32>
    %664 = arith.mulf %663, %662 : vector<2x32xf32>
    %cst_368 = arith.constant 5.000000e-01 : f32
    %665 = vector.broadcast %cst_368 : f32 to vector<2x32xf32>
    %666 = arith.addf %664, %665 : vector<2x32xf32>
    %667 = arith.mulf %658, %564 : vector<2x32xf32>
    %668 = arith.mulf %651, %659 : vector<2x32xf32>
    %669 = arith.addf %667, %668 : vector<2x32xf32>
    %670 = math.tanh %669 : vector<2x32xf32>
    %671 = arith.mulf %666, %670 : vector<2x32xf32>
    %c2_i32_369 = arith.constant 2 : i32
    %672 = arith.muli %623, %c2_i32_369 : i32
    %c0_370 = arith.constant 0 : index
    %673 = arith.index_cast %672 : i32 to index
    %c0_371 = arith.constant 0 : index
    %674 = vector.load %arg13[%c0_370, %673, %c0_371] : memref<4x16x32xf32, #tpu.memory_space<vmem>>, vector<1x2x32xf32>
    %675 = vector.shape_cast %674 : vector<1x2x32xf32> to vector<2x32xf32>
    %cst_372 = arith.constant dense<0.000000e+00> : vector<2x32xf32>
    %676 = tpu.matmul %614, %90, %cst_372 {dimension_numbers = #tpu.dot_dimension_numbers<[1], [0], [0], [1], [0, 0, 1, 1], [], []>} : vector<2x32xf32>, vector<32x32xf32>, vector<2x32xf32> -> vector<2x32xf32>
    %677 = arith.addf %675, %676 : vector<2x32xf32>
    %c1_373 = arith.constant 1 : index
    %678 = arith.index_cast %672 : i32 to index
    %c0_374 = arith.constant 0 : index
    %679 = vector.load %arg13[%c1_373, %678, %c0_374] : memref<4x16x32xf32, #tpu.memory_space<vmem>>, vector<1x2x32xf32>
    %680 = vector.shape_cast %679 : vector<1x2x32xf32> to vector<2x32xf32>
    %cst_375 = arith.constant dense<0.000000e+00> : vector<2x32xf32>
    %681 = tpu.matmul %614, %92, %cst_375 {dimension_numbers = #tpu.dot_dimension_numbers<[1], [0], [0], [1], [0, 0, 1, 1], [], []>} : vector<2x32xf32>, vector<32x32xf32>, vector<2x32xf32> -> vector<2x32xf32>
    %682 = arith.addf %680, %681 : vector<2x32xf32>
    %c2_376 = arith.constant 2 : index
    %683 = arith.index_cast %672 : i32 to index
    %c0_377 = arith.constant 0 : index
    %684 = vector.load %arg13[%c2_376, %683, %c0_377] : memref<4x16x32xf32, #tpu.memory_space<vmem>>, vector<1x2x32xf32>
    %685 = vector.shape_cast %684 : vector<1x2x32xf32> to vector<2x32xf32>
    %cst_378 = arith.constant dense<0.000000e+00> : vector<2x32xf32>
    %686 = tpu.matmul %614, %94, %cst_378 {dimension_numbers = #tpu.dot_dimension_numbers<[1], [0], [0], [1], [0, 0, 1, 1], [], []>} : vector<2x32xf32>, vector<32x32xf32>, vector<2x32xf32> -> vector<2x32xf32>
    %687 = arith.addf %685, %686 : vector<2x32xf32>
    %c3_379 = arith.constant 3 : index
    %688 = arith.index_cast %672 : i32 to index
    %c0_380 = arith.constant 0 : index
    %689 = vector.load %arg13[%c3_379, %688, %c0_380] : memref<4x16x32xf32, #tpu.memory_space<vmem>>, vector<1x2x32xf32>
    %690 = vector.shape_cast %689 : vector<1x2x32xf32> to vector<2x32xf32>
    %cst_381 = arith.constant dense<0.000000e+00> : vector<2x32xf32>
    %691 = tpu.matmul %614, %96, %cst_381 {dimension_numbers = #tpu.dot_dimension_numbers<[1], [0], [0], [1], [0, 0, 1, 1], [], []>} : vector<2x32xf32>, vector<32x32xf32>, vector<2x32xf32> -> vector<2x32xf32>
    %692 = arith.addf %690, %691 : vector<2x32xf32>
    %cst_382 = arith.constant 5.000000e-01 : f32
    %693 = vector.broadcast %cst_382 : f32 to vector<2x32xf32>
    %694 = arith.mulf %693, %677 : vector<2x32xf32>
    %695 = math.tanh %694 : vector<2x32xf32>
    %cst_383 = arith.constant 5.000000e-01 : f32
    %696 = vector.broadcast %cst_383 : f32 to vector<2x32xf32>
    %697 = arith.mulf %696, %695 : vector<2x32xf32>
    %cst_384 = arith.constant 5.000000e-01 : f32
    %698 = vector.broadcast %cst_384 : f32 to vector<2x32xf32>
    %699 = arith.addf %697, %698 : vector<2x32xf32>
    %cst_385 = arith.constant 5.000000e-01 : f32
    %700 = vector.broadcast %cst_385 : f32 to vector<2x32xf32>
    %701 = arith.mulf %700, %682 : vector<2x32xf32>
    %702 = math.tanh %701 : vector<2x32xf32>
    %cst_386 = arith.constant 5.000000e-01 : f32
    %703 = vector.broadcast %cst_386 : f32 to vector<2x32xf32>
    %704 = arith.mulf %703, %702 : vector<2x32xf32>
    %cst_387 = arith.constant 5.000000e-01 : f32
    %705 = vector.broadcast %cst_387 : f32 to vector<2x32xf32>
    %706 = arith.addf %704, %705 : vector<2x32xf32>
    %707 = math.tanh %687 : vector<2x32xf32>
    %cst_388 = arith.constant 5.000000e-01 : f32
    %708 = vector.broadcast %cst_388 : f32 to vector<2x32xf32>
    %709 = arith.mulf %708, %692 : vector<2x32xf32>
    %710 = math.tanh %709 : vector<2x32xf32>
    %cst_389 = arith.constant 5.000000e-01 : f32
    %711 = vector.broadcast %cst_389 : f32 to vector<2x32xf32>
    %712 = arith.mulf %711, %710 : vector<2x32xf32>
    %cst_390 = arith.constant 5.000000e-01 : f32
    %713 = vector.broadcast %cst_390 : f32 to vector<2x32xf32>
    %714 = arith.addf %712, %713 : vector<2x32xf32>
    %715 = arith.mulf %706, %612 : vector<2x32xf32>
    %716 = arith.mulf %699, %707 : vector<2x32xf32>
    %717 = arith.addf %715, %716 : vector<2x32xf32>
    %718 = math.tanh %717 : vector<2x32xf32>
    %719 = arith.mulf %714, %718 : vector<2x32xf32>
    %720 = arith.index_cast %c5_i32 : i32 to index
    %c0_391 = arith.constant 0 : index
    %c0_392 = arith.constant 0 : index
    %721 = vector.load %arg14[%720, %c0_391, %c0_392] : memref<8x2x32xf32, #tpu.memory_space<vmem>>, vector<1x2x32xf32>
    %722 = vector.shape_cast %721 : vector<1x2x32xf32> to vector<2x32xf32>
    %723 = vector.shape_cast %671 : vector<2x32xf32> to vector<1x2x32xf32>
    tpu.vector_store %arg14[%720, %c0_391, %c0_392], %723 {strides = array<i32>} : memref<8x2x32xf32, #tpu.memory_space<vmem>>, vector<1x2x32xf32>,
    %724 = arith.index_cast %623 : i32 to index
    %c0_393 = arith.constant 0 : index
    %c0_394 = arith.constant 0 : index
    %725 = vector.load %arg15[%724, %c0_393, %c0_394] : memref<8x2x32xf32, #tpu.memory_space<vmem>>, vector<1x2x32xf32>
    %726 = vector.shape_cast %725 : vector<1x2x32xf32> to vector<2x32xf32>
    %727 = vector.shape_cast %719 : vector<2x32xf32> to vector<1x2x32xf32>
    tpu.vector_store %arg15[%724, %c0_393, %c0_394], %727 {strides = array<i32>} : memref<8x2x32xf32, #tpu.memory_space<vmem>>, vector<1x2x32xf32>,
    %c6_i32 = arith.constant 6 : i32
    %c7_i32_395 = arith.constant 7 : i32
    %728 = arith.subi %c7_i32_395, %c6_i32 : i32
    %c2_i32_396 = arith.constant 2 : i32
    %729 = arith.muli %c6_i32, %c2_i32_396 : i32
    %c0_397 = arith.constant 0 : index
    %730 = arith.index_cast %729 : i32 to index
    %c0_398 = arith.constant 0 : index
    %731 = vector.load %arg12[%c0_397, %730, %c0_398] : memref<4x16x32xf32, #tpu.memory_space<vmem>>, vector<1x2x32xf32>
    %732 = vector.shape_cast %731 : vector<1x2x32xf32> to vector<2x32xf32>
    %cst_399 = arith.constant dense<0.000000e+00> : vector<2x32xf32>
    %733 = tpu.matmul %671, %82, %cst_399 {dimension_numbers = #tpu.dot_dimension_numbers<[1], [0], [0], [1], [0, 0, 1, 1], [], []>} : vector<2x32xf32>, vector<32x32xf32>, vector<2x32xf32> -> vector<2x32xf32>
    %734 = arith.addf %732, %733 : vector<2x32xf32>
    %c1_400 = arith.constant 1 : index
    %735 = arith.index_cast %729 : i32 to index
    %c0_401 = arith.constant 0 : index
    %736 = vector.load %arg12[%c1_400, %735, %c0_401] : memref<4x16x32xf32, #tpu.memory_space<vmem>>, vector<1x2x32xf32>
    %737 = vector.shape_cast %736 : vector<1x2x32xf32> to vector<2x32xf32>
    %cst_402 = arith.constant dense<0.000000e+00> : vector<2x32xf32>
    %738 = tpu.matmul %671, %84, %cst_402 {dimension_numbers = #tpu.dot_dimension_numbers<[1], [0], [0], [1], [0, 0, 1, 1], [], []>} : vector<2x32xf32>, vector<32x32xf32>, vector<2x32xf32> -> vector<2x32xf32>
    %739 = arith.addf %737, %738 : vector<2x32xf32>
    %c2_403 = arith.constant 2 : index
    %740 = arith.index_cast %729 : i32 to index
    %c0_404 = arith.constant 0 : index
    %741 = vector.load %arg12[%c2_403, %740, %c0_404] : memref<4x16x32xf32, #tpu.memory_space<vmem>>, vector<1x2x32xf32>
    %742 = vector.shape_cast %741 : vector<1x2x32xf32> to vector<2x32xf32>
    %cst_405 = arith.constant dense<0.000000e+00> : vector<2x32xf32>
    %743 = tpu.matmul %671, %86, %cst_405 {dimension_numbers = #tpu.dot_dimension_numbers<[1], [0], [0], [1], [0, 0, 1, 1], [], []>} : vector<2x32xf32>, vector<32x32xf32>, vector<2x32xf32> -> vector<2x32xf32>
    %744 = arith.addf %742, %743 : vector<2x32xf32>
    %c3_406 = arith.constant 3 : index
    %745 = arith.index_cast %729 : i32 to index
    %c0_407 = arith.constant 0 : index
    %746 = vector.load %arg12[%c3_406, %745, %c0_407] : memref<4x16x32xf32, #tpu.memory_space<vmem>>, vector<1x2x32xf32>
    %747 = vector.shape_cast %746 : vector<1x2x32xf32> to vector<2x32xf32>
    %cst_408 = arith.constant dense<0.000000e+00> : vector<2x32xf32>
    %748 = tpu.matmul %671, %88, %cst_408 {dimension_numbers = #tpu.dot_dimension_numbers<[1], [0], [0], [1], [0, 0, 1, 1], [], []>} : vector<2x32xf32>, vector<32x32xf32>, vector<2x32xf32> -> vector<2x32xf32>
    %749 = arith.addf %747, %748 : vector<2x32xf32>
    %cst_409 = arith.constant 5.000000e-01 : f32
    %750 = vector.broadcast %cst_409 : f32 to vector<2x32xf32>
    %751 = arith.mulf %750, %734 : vector<2x32xf32>
    %752 = math.tanh %751 : vector<2x32xf32>
    %cst_410 = arith.constant 5.000000e-01 : f32
    %753 = vector.broadcast %cst_410 : f32 to vector<2x32xf32>
    %754 = arith.mulf %753, %752 : vector<2x32xf32>
    %cst_411 = arith.constant 5.000000e-01 : f32
    %755 = vector.broadcast %cst_411 : f32 to vector<2x32xf32>
    %756 = arith.addf %754, %755 : vector<2x32xf32>
    %cst_412 = arith.constant 5.000000e-01 : f32
    %757 = vector.broadcast %cst_412 : f32 to vector<2x32xf32>
    %758 = arith.mulf %757, %739 : vector<2x32xf32>
    %759 = math.tanh %758 : vector<2x32xf32>
    %cst_413 = arith.constant 5.000000e-01 : f32
    %760 = vector.broadcast %cst_413 : f32 to vector<2x32xf32>
    %761 = arith.mulf %760, %759 : vector<2x32xf32>
    %cst_414 = arith.constant 5.000000e-01 : f32
    %762 = vector.broadcast %cst_414 : f32 to vector<2x32xf32>
    %763 = arith.addf %761, %762 : vector<2x32xf32>
    %764 = math.tanh %744 : vector<2x32xf32>
    %cst_415 = arith.constant 5.000000e-01 : f32
    %765 = vector.broadcast %cst_415 : f32 to vector<2x32xf32>
    %766 = arith.mulf %765, %749 : vector<2x32xf32>
    %767 = math.tanh %766 : vector<2x32xf32>
    %cst_416 = arith.constant 5.000000e-01 : f32
    %768 = vector.broadcast %cst_416 : f32 to vector<2x32xf32>
    %769 = arith.mulf %768, %767 : vector<2x32xf32>
    %cst_417 = arith.constant 5.000000e-01 : f32
    %770 = vector.broadcast %cst_417 : f32 to vector<2x32xf32>
    %771 = arith.addf %769, %770 : vector<2x32xf32>
    %772 = arith.mulf %763, %669 : vector<2x32xf32>
    %773 = arith.mulf %756, %764 : vector<2x32xf32>
    %774 = arith.addf %772, %773 : vector<2x32xf32>
    %775 = math.tanh %774 : vector<2x32xf32>
    %776 = arith.mulf %771, %775 : vector<2x32xf32>
    %c2_i32_418 = arith.constant 2 : i32
    %777 = arith.muli %728, %c2_i32_418 : i32
    %c0_419 = arith.constant 0 : index
    %778 = arith.index_cast %777 : i32 to index
    %c0_420 = arith.constant 0 : index
    %779 = vector.load %arg13[%c0_419, %778, %c0_420] : memref<4x16x32xf32, #tpu.memory_space<vmem>>, vector<1x2x32xf32>
    %780 = vector.shape_cast %779 : vector<1x2x32xf32> to vector<2x32xf32>
    %cst_421 = arith.constant dense<0.000000e+00> : vector<2x32xf32>
    %781 = tpu.matmul %719, %90, %cst_421 {dimension_numbers = #tpu.dot_dimension_numbers<[1], [0], [0], [1], [0, 0, 1, 1], [], []>} : vector<2x32xf32>, vector<32x32xf32>, vector<2x32xf32> -> vector<2x32xf32>
    %782 = arith.addf %780, %781 : vector<2x32xf32>
    %c1_422 = arith.constant 1 : index
    %783 = arith.index_cast %777 : i32 to index
    %c0_423 = arith.constant 0 : index
    %784 = vector.load %arg13[%c1_422, %783, %c0_423] : memref<4x16x32xf32, #tpu.memory_space<vmem>>, vector<1x2x32xf32>
    %785 = vector.shape_cast %784 : vector<1x2x32xf32> to vector<2x32xf32>
    %cst_424 = arith.constant dense<0.000000e+00> : vector<2x32xf32>
    %786 = tpu.matmul %719, %92, %cst_424 {dimension_numbers = #tpu.dot_dimension_numbers<[1], [0], [0], [1], [0, 0, 1, 1], [], []>} : vector<2x32xf32>, vector<32x32xf32>, vector<2x32xf32> -> vector<2x32xf32>
    %787 = arith.addf %785, %786 : vector<2x32xf32>
    %c2_425 = arith.constant 2 : index
    %788 = arith.index_cast %777 : i32 to index
    %c0_426 = arith.constant 0 : index
    %789 = vector.load %arg13[%c2_425, %788, %c0_426] : memref<4x16x32xf32, #tpu.memory_space<vmem>>, vector<1x2x32xf32>
    %790 = vector.shape_cast %789 : vector<1x2x32xf32> to vector<2x32xf32>
    %cst_427 = arith.constant dense<0.000000e+00> : vector<2x32xf32>
    %791 = tpu.matmul %719, %94, %cst_427 {dimension_numbers = #tpu.dot_dimension_numbers<[1], [0], [0], [1], [0, 0, 1, 1], [], []>} : vector<2x32xf32>, vector<32x32xf32>, vector<2x32xf32> -> vector<2x32xf32>
    %792 = arith.addf %790, %791 : vector<2x32xf32>
    %c3_428 = arith.constant 3 : index
    %793 = arith.index_cast %777 : i32 to index
    %c0_429 = arith.constant 0 : index
    %794 = vector.load %arg13[%c3_428, %793, %c0_429] : memref<4x16x32xf32, #tpu.memory_space<vmem>>, vector<1x2x32xf32>
    %795 = vector.shape_cast %794 : vector<1x2x32xf32> to vector<2x32xf32>
    %cst_430 = arith.constant dense<0.000000e+00> : vector<2x32xf32>
    %796 = tpu.matmul %719, %96, %cst_430 {dimension_numbers = #tpu.dot_dimension_numbers<[1], [0], [0], [1], [0, 0, 1, 1], [], []>} : vector<2x32xf32>, vector<32x32xf32>, vector<2x32xf32> -> vector<2x32xf32>
    %797 = arith.addf %795, %796 : vector<2x32xf32>
    %cst_431 = arith.constant 5.000000e-01 : f32
    %798 = vector.broadcast %cst_431 : f32 to vector<2x32xf32>
    %799 = arith.mulf %798, %782 : vector<2x32xf32>
    %800 = math.tanh %799 : vector<2x32xf32>
    %cst_432 = arith.constant 5.000000e-01 : f32
    %801 = vector.broadcast %cst_432 : f32 to vector<2x32xf32>
    %802 = arith.mulf %801, %800 : vector<2x32xf32>
    %cst_433 = arith.constant 5.000000e-01 : f32
    %803 = vector.broadcast %cst_433 : f32 to vector<2x32xf32>
    %804 = arith.addf %802, %803 : vector<2x32xf32>
    %cst_434 = arith.constant 5.000000e-01 : f32
    %805 = vector.broadcast %cst_434 : f32 to vector<2x32xf32>
    %806 = arith.mulf %805, %787 : vector<2x32xf32>
    %807 = math.tanh %806 : vector<2x32xf32>
    %cst_435 = arith.constant 5.000000e-01 : f32
    %808 = vector.broadcast %cst_435 : f32 to vector<2x32xf32>
    %809 = arith.mulf %808, %807 : vector<2x32xf32>
    %cst_436 = arith.constant 5.000000e-01 : f32
    %810 = vector.broadcast %cst_436 : f32 to vector<2x32xf32>
    %811 = arith.addf %809, %810 : vector<2x32xf32>
    %812 = math.tanh %792 : vector<2x32xf32>
    %cst_437 = arith.constant 5.000000e-01 : f32
    %813 = vector.broadcast %cst_437 : f32 to vector<2x32xf32>
    %814 = arith.mulf %813, %797 : vector<2x32xf32>
    %815 = math.tanh %814 : vector<2x32xf32>
    %cst_438 = arith.constant 5.000000e-01 : f32
    %816 = vector.broadcast %cst_438 : f32 to vector<2x32xf32>
    %817 = arith.mulf %816, %815 : vector<2x32xf32>
    %cst_439 = arith.constant 5.000000e-01 : f32
    %818 = vector.broadcast %cst_439 : f32 to vector<2x32xf32>
    %819 = arith.addf %817, %818 : vector<2x32xf32>
    %820 = arith.mulf %811, %717 : vector<2x32xf32>
    %821 = arith.mulf %804, %812 : vector<2x32xf32>
    %822 = arith.addf %820, %821 : vector<2x32xf32>
    %823 = math.tanh %822 : vector<2x32xf32>
    %824 = arith.mulf %819, %823 : vector<2x32xf32>
    %825 = arith.index_cast %c6_i32 : i32 to index
    %c0_440 = arith.constant 0 : index
    %c0_441 = arith.constant 0 : index
    %826 = vector.load %arg14[%825, %c0_440, %c0_441] : memref<8x2x32xf32, #tpu.memory_space<vmem>>, vector<1x2x32xf32>
    %827 = vector.shape_cast %826 : vector<1x2x32xf32> to vector<2x32xf32>
    %828 = vector.shape_cast %776 : vector<2x32xf32> to vector<1x2x32xf32>
    tpu.vector_store %arg14[%825, %c0_440, %c0_441], %828 {strides = array<i32>} : memref<8x2x32xf32, #tpu.memory_space<vmem>>, vector<1x2x32xf32>,
    %829 = arith.index_cast %728 : i32 to index
    %c0_442 = arith.constant 0 : index
    %c0_443 = arith.constant 0 : index
    %830 = vector.load %arg15[%829, %c0_442, %c0_443] : memref<8x2x32xf32, #tpu.memory_space<vmem>>, vector<1x2x32xf32>
    %831 = vector.shape_cast %830 : vector<1x2x32xf32> to vector<2x32xf32>
    %832 = vector.shape_cast %824 : vector<2x32xf32> to vector<1x2x32xf32>
    tpu.vector_store %arg15[%829, %c0_442, %c0_443], %832 {strides = array<i32>} : memref<8x2x32xf32, #tpu.memory_space<vmem>>, vector<1x2x32xf32>,
    %c7_i32_444 = arith.constant 7 : i32
    %c7_i32_445 = arith.constant 7 : i32
    %833 = arith.subi %c7_i32_445, %c7_i32_444 : i32
    %c2_i32_446 = arith.constant 2 : i32
    %834 = arith.muli %c7_i32_444, %c2_i32_446 : i32
    %c0_447 = arith.constant 0 : index
    %835 = arith.index_cast %834 : i32 to index
    %c0_448 = arith.constant 0 : index
    %836 = vector.load %arg12[%c0_447, %835, %c0_448] : memref<4x16x32xf32, #tpu.memory_space<vmem>>, vector<1x2x32xf32>
    %837 = vector.shape_cast %836 : vector<1x2x32xf32> to vector<2x32xf32>
    %cst_449 = arith.constant dense<0.000000e+00> : vector<2x32xf32>
    %838 = tpu.matmul %776, %82, %cst_449 {dimension_numbers = #tpu.dot_dimension_numbers<[1], [0], [0], [1], [0, 0, 1, 1], [], []>} : vector<2x32xf32>, vector<32x32xf32>, vector<2x32xf32> -> vector<2x32xf32>
    %839 = arith.addf %837, %838 : vector<2x32xf32>
    %c1_450 = arith.constant 1 : index
    %840 = arith.index_cast %834 : i32 to index
    %c0_451 = arith.constant 0 : index
    %841 = vector.load %arg12[%c1_450, %840, %c0_451] : memref<4x16x32xf32, #tpu.memory_space<vmem>>, vector<1x2x32xf32>
    %842 = vector.shape_cast %841 : vector<1x2x32xf32> to vector<2x32xf32>
    %cst_452 = arith.constant dense<0.000000e+00> : vector<2x32xf32>
    %843 = tpu.matmul %776, %84, %cst_452 {dimension_numbers = #tpu.dot_dimension_numbers<[1], [0], [0], [1], [0, 0, 1, 1], [], []>} : vector<2x32xf32>, vector<32x32xf32>, vector<2x32xf32> -> vector<2x32xf32>
    %844 = arith.addf %842, %843 : vector<2x32xf32>
    %c2_453 = arith.constant 2 : index
    %845 = arith.index_cast %834 : i32 to index
    %c0_454 = arith.constant 0 : index
    %846 = vector.load %arg12[%c2_453, %845, %c0_454] : memref<4x16x32xf32, #tpu.memory_space<vmem>>, vector<1x2x32xf32>
    %847 = vector.shape_cast %846 : vector<1x2x32xf32> to vector<2x32xf32>
    %cst_455 = arith.constant dense<0.000000e+00> : vector<2x32xf32>
    %848 = tpu.matmul %776, %86, %cst_455 {dimension_numbers = #tpu.dot_dimension_numbers<[1], [0], [0], [1], [0, 0, 1, 1], [], []>} : vector<2x32xf32>, vector<32x32xf32>, vector<2x32xf32> -> vector<2x32xf32>
    %849 = arith.addf %847, %848 : vector<2x32xf32>
    %c3_456 = arith.constant 3 : index
    %850 = arith.index_cast %834 : i32 to index
    %c0_457 = arith.constant 0 : index
    %851 = vector.load %arg12[%c3_456, %850, %c0_457] : memref<4x16x32xf32, #tpu.memory_space<vmem>>, vector<1x2x32xf32>
    %852 = vector.shape_cast %851 : vector<1x2x32xf32> to vector<2x32xf32>
    %cst_458 = arith.constant dense<0.000000e+00> : vector<2x32xf32>
    %853 = tpu.matmul %776, %88, %cst_458 {dimension_numbers = #tpu.dot_dimension_numbers<[1], [0], [0], [1], [0, 0, 1, 1], [], []>} : vector<2x32xf32>, vector<32x32xf32>, vector<2x32xf32> -> vector<2x32xf32>
    %854 = arith.addf %852, %853 : vector<2x32xf32>
    %cst_459 = arith.constant 5.000000e-01 : f32
    %855 = vector.broadcast %cst_459 : f32 to vector<2x32xf32>
    %856 = arith.mulf %855, %839 : vector<2x32xf32>
    %857 = math.tanh %856 : vector<2x32xf32>
    %cst_460 = arith.constant 5.000000e-01 : f32
    %858 = vector.broadcast %cst_460 : f32 to vector<2x32xf32>
    %859 = arith.mulf %858, %857 : vector<2x32xf32>
    %cst_461 = arith.constant 5.000000e-01 : f32
    %860 = vector.broadcast %cst_461 : f32 to vector<2x32xf32>
    %861 = arith.addf %859, %860 : vector<2x32xf32>
    %cst_462 = arith.constant 5.000000e-01 : f32
    %862 = vector.broadcast %cst_462 : f32 to vector<2x32xf32>
    %863 = arith.mulf %862, %844 : vector<2x32xf32>
    %864 = math.tanh %863 : vector<2x32xf32>
    %cst_463 = arith.constant 5.000000e-01 : f32
    %865 = vector.broadcast %cst_463 : f32 to vector<2x32xf32>
    %866 = arith.mulf %865, %864 : vector<2x32xf32>
    %cst_464 = arith.constant 5.000000e-01 : f32
    %867 = vector.broadcast %cst_464 : f32 to vector<2x32xf32>
    %868 = arith.addf %866, %867 : vector<2x32xf32>
    %869 = math.tanh %849 : vector<2x32xf32>
    %cst_465 = arith.constant 5.000000e-01 : f32
    %870 = vector.broadcast %cst_465 : f32 to vector<2x32xf32>
    %871 = arith.mulf %870, %854 : vector<2x32xf32>
    %872 = math.tanh %871 : vector<2x32xf32>
    %cst_466 = arith.constant 5.000000e-01 : f32
    %873 = vector.broadcast %cst_466 : f32 to vector<2x32xf32>
    %874 = arith.mulf %873, %872 : vector<2x32xf32>
    %cst_467 = arith.constant 5.000000e-01 : f32
    %875 = vector.broadcast %cst_467 : f32 to vector<2x32xf32>
    %876 = arith.addf %874, %875 : vector<2x32xf32>
    %877 = arith.mulf %868, %774 : vector<2x32xf32>
    %878 = arith.mulf %861, %869 : vector<2x32xf32>
    %879 = arith.addf %877, %878 : vector<2x32xf32>
    %880 = math.tanh %879 : vector<2x32xf32>
    %881 = arith.mulf %876, %880 : vector<2x32xf32>
    %c2_i32_468 = arith.constant 2 : i32
    %882 = arith.muli %833, %c2_i32_468 : i32
    %c0_469 = arith.constant 0 : index
    %883 = arith.index_cast %882 : i32 to index
    %c0_470 = arith.constant 0 : index
    %884 = vector.load %arg13[%c0_469, %883, %c0_470] : memref<4x16x32xf32, #tpu.memory_space<vmem>>, vector<1x2x32xf32>
    %885 = vector.shape_cast %884 : vector<1x2x32xf32> to vector<2x32xf32>
    %cst_471 = arith.constant dense<0.000000e+00> : vector<2x32xf32>
    %886 = tpu.matmul %824, %90, %cst_471 {dimension_numbers = #tpu.dot_dimension_numbers<[1], [0], [0], [1], [0, 0, 1, 1], [], []>} : vector<2x32xf32>, vector<32x32xf32>, vector<2x32xf32> -> vector<2x32xf32>
    %887 = arith.addf %885, %886 : vector<2x32xf32>
    %c1_472 = arith.constant 1 : index
    %888 = arith.index_cast %882 : i32 to index
    %c0_473 = arith.constant 0 : index
    %889 = vector.load %arg13[%c1_472, %888, %c0_473] : memref<4x16x32xf32, #tpu.memory_space<vmem>>, vector<1x2x32xf32>
    %890 = vector.shape_cast %889 : vector<1x2x32xf32> to vector<2x32xf32>
    %cst_474 = arith.constant dense<0.000000e+00> : vector<2x32xf32>
    %891 = tpu.matmul %824, %92, %cst_474 {dimension_numbers = #tpu.dot_dimension_numbers<[1], [0], [0], [1], [0, 0, 1, 1], [], []>} : vector<2x32xf32>, vector<32x32xf32>, vector<2x32xf32> -> vector<2x32xf32>
    %892 = arith.addf %890, %891 : vector<2x32xf32>
    %c2_475 = arith.constant 2 : index
    %893 = arith.index_cast %882 : i32 to index
    %c0_476 = arith.constant 0 : index
    %894 = vector.load %arg13[%c2_475, %893, %c0_476] : memref<4x16x32xf32, #tpu.memory_space<vmem>>, vector<1x2x32xf32>
    %895 = vector.shape_cast %894 : vector<1x2x32xf32> to vector<2x32xf32>
    %cst_477 = arith.constant dense<0.000000e+00> : vector<2x32xf32>
    %896 = tpu.matmul %824, %94, %cst_477 {dimension_numbers = #tpu.dot_dimension_numbers<[1], [0], [0], [1], [0, 0, 1, 1], [], []>} : vector<2x32xf32>, vector<32x32xf32>, vector<2x32xf32> -> vector<2x32xf32>
    %897 = arith.addf %895, %896 : vector<2x32xf32>
    %c3_478 = arith.constant 3 : index
    %898 = arith.index_cast %882 : i32 to index
    %c0_479 = arith.constant 0 : index
    %899 = vector.load %arg13[%c3_478, %898, %c0_479] : memref<4x16x32xf32, #tpu.memory_space<vmem>>, vector<1x2x32xf32>
    %900 = vector.shape_cast %899 : vector<1x2x32xf32> to vector<2x32xf32>
    %cst_480 = arith.constant dense<0.000000e+00> : vector<2x32xf32>
    %901 = tpu.matmul %824, %96, %cst_480 {dimension_numbers = #tpu.dot_dimension_numbers<[1], [0], [0], [1], [0, 0, 1, 1], [], []>} : vector<2x32xf32>, vector<32x32xf32>, vector<2x32xf32> -> vector<2x32xf32>
    %902 = arith.addf %900, %901 : vector<2x32xf32>
    %cst_481 = arith.constant 5.000000e-01 : f32
    %903 = vector.broadcast %cst_481 : f32 to vector<2x32xf32>
    %904 = arith.mulf %903, %887 : vector<2x32xf32>
    %905 = math.tanh %904 : vector<2x32xf32>
    %cst_482 = arith.constant 5.000000e-01 : f32
    %906 = vector.broadcast %cst_482 : f32 to vector<2x32xf32>
    %907 = arith.mulf %906, %905 : vector<2x32xf32>
    %cst_483 = arith.constant 5.000000e-01 : f32
    %908 = vector.broadcast %cst_483 : f32 to vector<2x32xf32>
    %909 = arith.addf %907, %908 : vector<2x32xf32>
    %cst_484 = arith.constant 5.000000e-01 : f32
    %910 = vector.broadcast %cst_484 : f32 to vector<2x32xf32>
    %911 = arith.mulf %910, %892 : vector<2x32xf32>
    %912 = math.tanh %911 : vector<2x32xf32>
    %cst_485 = arith.constant 5.000000e-01 : f32
    %913 = vector.broadcast %cst_485 : f32 to vector<2x32xf32>
    %914 = arith.mulf %913, %912 : vector<2x32xf32>
    %cst_486 = arith.constant 5.000000e-01 : f32
    %915 = vector.broadcast %cst_486 : f32 to vector<2x32xf32>
    %916 = arith.addf %914, %915 : vector<2x32xf32>
    %917 = math.tanh %897 : vector<2x32xf32>
    %cst_487 = arith.constant 5.000000e-01 : f32
    %918 = vector.broadcast %cst_487 : f32 to vector<2x32xf32>
    %919 = arith.mulf %918, %902 : vector<2x32xf32>
    %920 = math.tanh %919 : vector<2x32xf32>
    %cst_488 = arith.constant 5.000000e-01 : f32
    %921 = vector.broadcast %cst_488 : f32 to vector<2x32xf32>
    %922 = arith.mulf %921, %920 : vector<2x32xf32>
    %cst_489 = arith.constant 5.000000e-01 : f32
    %923 = vector.broadcast %cst_489 : f32 to vector<2x32xf32>
    %924 = arith.addf %922, %923 : vector<2x32xf32>
    %925 = arith.mulf %916, %822 : vector<2x32xf32>
    %926 = arith.mulf %909, %917 : vector<2x32xf32>
    %927 = arith.addf %925, %926 : vector<2x32xf32>
    %928 = math.tanh %927 : vector<2x32xf32>
    %929 = arith.mulf %924, %928 : vector<2x32xf32>
    %930 = arith.index_cast %c7_i32_444 : i32 to index
    %c0_490 = arith.constant 0 : index
    %c0_491 = arith.constant 0 : index
    %931 = vector.load %arg14[%930, %c0_490, %c0_491] : memref<8x2x32xf32, #tpu.memory_space<vmem>>, vector<1x2x32xf32>
    %932 = vector.shape_cast %931 : vector<1x2x32xf32> to vector<2x32xf32>
    %933 = vector.shape_cast %881 : vector<2x32xf32> to vector<1x2x32xf32>
    tpu.vector_store %arg14[%930, %c0_490, %c0_491], %933 {strides = array<i32>} : memref<8x2x32xf32, #tpu.memory_space<vmem>>, vector<1x2x32xf32>,
    %934 = arith.index_cast %833 : i32 to index
    %c0_492 = arith.constant 0 : index
    %c0_493 = arith.constant 0 : index
    %935 = vector.load %arg15[%934, %c0_492, %c0_493] : memref<8x2x32xf32, #tpu.memory_space<vmem>>, vector<1x2x32xf32>
    %936 = vector.shape_cast %935 : vector<1x2x32xf32> to vector<2x32xf32>
    %937 = vector.shape_cast %929 : vector<2x32xf32> to vector<1x2x32xf32>
    tpu.vector_store %arg15[%934, %c0_492, %c0_493], %937 {strides = array<i32>} : memref<8x2x32xf32, #tpu.memory_space<vmem>>, vector<1x2x32xf32>,
    %c8_i32 = arith.constant 8 : i32
    %c0_494 = arith.constant 0 : index
    %c0_495 = arith.constant 0 : index
    %c0_496 = arith.constant 0 : index
    %938 = vector.load %arg10[%c0_494, %c0_495, %c0_496] : memref<2x2x32xf32, #tpu.memory_space<vmem>>, vector<1x2x32xf32>
    %939 = vector.shape_cast %938 : vector<1x2x32xf32> to vector<2x32xf32>
    %940 = vector.shape_cast %881 : vector<2x32xf32> to vector<1x2x32xf32>
    tpu.vector_store %arg10[%c0_494, %c0_495, %c0_496], %940 {strides = array<i32>} : memref<2x2x32xf32, #tpu.memory_space<vmem>>, vector<1x2x32xf32>,
    %c1_497 = arith.constant 1 : index
    %c0_498 = arith.constant 0 : index
    %c0_499 = arith.constant 0 : index
    %941 = vector.load %arg10[%c1_497, %c0_498, %c0_499] : memref<2x2x32xf32, #tpu.memory_space<vmem>>, vector<1x2x32xf32>
    %942 = vector.shape_cast %941 : vector<1x2x32xf32> to vector<2x32xf32>
    %943 = vector.shape_cast %929 : vector<2x32xf32> to vector<1x2x32xf32>
    tpu.vector_store %arg10[%c1_497, %c0_498, %c0_499], %943 {strides = array<i32>} : memref<2x2x32xf32, #tpu.memory_space<vmem>>, vector<1x2x32xf32>,
    %c0_500 = arith.constant 0 : index
    %c0_501 = arith.constant 0 : index
    %c0_502 = arith.constant 0 : index
    %944 = vector.load %arg14[%c0_500, %c0_501, %c0_502] : memref<8x2x32xf32, #tpu.memory_space<vmem>>, vector<8x2x32xf32>
    %c0_503 = arith.constant 0 : index
    %c0_504 = arith.constant 0 : index
    %c0_505 = arith.constant 0 : index
    %945 = vector.load %arg15[%c0_503, %c0_504, %c0_505] : memref<8x2x32xf32, #tpu.memory_space<vmem>>, vector<8x2x32xf32>
    %c0_506 = arith.constant 0 : index
    %c0_507 = arith.constant 0 : index
    %946 = vector.load %arg8[%c0_506, %c0_507] : memref<1x64xf32, #tpu.memory_space<vmem>>, vector<1x64xf32>
    %947 = vector.extract_strided_slice %946 {offsets = [0, 0], sizes = [1, 32], strides = [1, 1]} : vector<1x64xf32> to vector<1x32xf32>
    %948 = vector.extract_strided_slice %946 {offsets = [0, 32], sizes = [1, 32], strides = [1, 1]} : vector<1x64xf32> to vector<1x32xf32>
    %949 = vector.shape_cast %947 : vector<1x32xf32> to vector<1x1x32xf32>
    %950 = vector.broadcast %949 : vector<1x1x32xf32> to vector<8x2x32xf32>
    %951 = arith.mulf %944, %950 : vector<8x2x32xf32>
    %cst_508 = arith.constant dense<0.000000e+00> : vector<8x2xf32>
    %952 = vector.multi_reduction <add>, %951, %cst_508 [2] : vector<8x2x32xf32> to vector<8x2xf32>
    %953 = vector.shape_cast %948 : vector<1x32xf32> to vector<1x1x32xf32>
    %954 = vector.broadcast %953 : vector<1x1x32xf32> to vector<8x2x32xf32>
    %955 = arith.mulf %945, %954 : vector<8x2x32xf32>
    %cst_509 = arith.constant dense<0.000000e+00> : vector<8x2xf32>
    %956 = vector.multi_reduction <add>, %955, %cst_509 [2] : vector<8x2x32xf32> to vector<8x2xf32>
    %957 = arith.addf %952, %956 : vector<8x2xf32>
    %cst_510 = arith.constant dense<0xFF800000> : vector<8xf32>
    %958 = vector.multi_reduction <maximumf>, %957, %cst_510 [1] : vector<8x2xf32> to vector<8xf32>
    %959 = vector.shape_cast %958 : vector<8xf32> to vector<8x1xf32>
    %960 = vector.broadcast %959 : vector<8x1xf32> to vector<8x2xf32>
    %961 = arith.subf %957, %960 : vector<8x2xf32>
    %962 = math.exp %961 : vector<8x2xf32>
    %cst_511 = arith.constant dense<0.000000e+00> : vector<8xf32>
    %963 = vector.multi_reduction <add>, %962, %cst_511 [1] : vector<8x2xf32> to vector<8xf32>
    %964 = vector.shape_cast %963 : vector<8xf32> to vector<8x1xf32>
    %965 = vector.broadcast %964 : vector<8x1xf32> to vector<8x2xf32>
    %966 = arith.divf %962, %965 : vector<8x2xf32>
    %c0_512 = arith.constant 0 : index
    %c0_513 = arith.constant 0 : index
    %967 = vector.load %arg11[%c0_512, %c0_513] : memref<8x2xf32, #tpu.memory_space<vmem>>, vector<8x2xf32>
    tpu.vector_store %arg11[%c0_512, %c0_513], %966 {strides = array<i32>} : memref<8x2xf32, #tpu.memory_space<vmem>>, vector<8x2xf32>,
    %968 = tpu.iota {dimensions = array<i32: 0>} : vector<8x2x2xi32>
    %969 = tpu.iota {dimensions = array<i32: 1>} : vector<8x2x2xi32>
    %970 = tpu.iota {dimensions = array<i32: 2>} : vector<8x2x2xi32>
    %c2_i32_514 = arith.constant 2 : i32
    %971 = vector.broadcast %c2_i32_514 : i32 to vector<8x2x2xi32>
    %972 = arith.muli %968, %971 : vector<8x2x2xi32>
    %973 = arith.addi %972, %970 : vector<8x2x2xi32>
    %c8_i32_515 = arith.constant 8 : i32
    %974 = vector.broadcast %c8_i32_515 : i32 to vector<8x2x2xi32>
    %975 = arith.muli %969, %974 : vector<8x2x2xi32>
    %976 = arith.cmpi sge, %973, %975 : vector<8x2x2xi32>
    %c8_i32_516 = arith.constant 8 : i32
    %977 = vector.broadcast %c8_i32_516 : i32 to vector<8x2x2xi32>
    %978 = arith.muli %969, %977 : vector<8x2x2xi32>
    %c8_i32_517 = arith.constant 8 : i32
    %979 = vector.broadcast %c8_i32_517 : i32 to vector<8x2x2xi32>
    %980 = arith.addi %978, %979 : vector<8x2x2xi32>
    %981 = arith.cmpi slt, %973, %980 : vector<8x2x2xi32>
    %982 = arith.andi %976, %981 : vector<8x2x2xi1>
    %983 = vector.shape_cast %966 : vector<8x2xf32> to vector<8x1x2xf32>
    %cst_518 = arith.constant 0.000000e+00 : f32
    %984 = vector.shape_cast %983 : vector<8x1x2xf32> to vector<8x1x2xf32>
    %985 = vector.broadcast %984 : vector<8x1x2xf32> to vector<8x2x2xf32>
    %986 = vector.broadcast %cst_518 : f32 to vector<8x2x2xf32>
    %987 = arith.select %982, %985, %986 : vector<8x2x2xi1>, vector<8x2x2xf32>
    "tpu.trace_start"() <{level = 10 : i32, message = "spb,sbh->sph"}> : () -> ()
    %cst_519 = arith.constant dense<0.000000e+00> : vector<8x2x32xf32>
    %988 = tpu.matmul %987, %944, %cst_519 {dimension_numbers = #tpu.dot_dimension_numbers<[2], [1], [1], [2], [0, 0, 0, 1, 1, 2], [0], [0]>} : vector<8x2x2xf32>, vector<8x2x32xf32>, vector<8x2x32xf32> -> vector<8x2x32xf32>
    "tpu.trace_stop"() : () -> ()
    %cst_520 = arith.constant dense<0.000000e+00> : vector<2x32xf32>
    %989 = vector.multi_reduction <add>, %988, %cst_520 [0] : vector<8x2x32xf32> to vector<2x32xf32>
    "tpu.trace_start"() <{level = 10 : i32, message = "spb,sbh->sph"}> : () -> ()
    %cst_521 = arith.constant dense<0.000000e+00> : vector<8x2x32xf32>
    %990 = tpu.matmul %987, %945, %cst_521 {dimension_numbers = #tpu.dot_dimension_numbers<[2], [1], [1], [2], [0, 0, 0, 1, 1, 2], [0], [0]>} : vector<8x2x2xf32>, vector<8x2x32xf32>, vector<8x2x32xf32> -> vector<8x2x32xf32>
    "tpu.trace_stop"() : () -> ()
    %cst_522 = arith.constant dense<0.000000e+00> : vector<2x32xf32>
    %991 = vector.multi_reduction <add>, %990, %cst_522 [0] : vector<8x2x32xf32> to vector<2x32xf32>
    %992 = tpu.concatenate %989, %991 in 1 : vector<2x32xf32>, vector<2x32xf32> -> vector<2x64xf32>
    %c0_523 = arith.constant 0 : index
    %c0_524 = arith.constant 0 : index
    %993 = vector.load %arg9[%c0_523, %c0_524] : memref<2x64xf32, #tpu.memory_space<vmem>>, vector<2x64xf32>
    tpu.vector_store %arg9[%c0_523, %c0_524], %992 {strides = array<i32>} : memref<2x64xf32, #tpu.memory_space<vmem>>, vector<2x64xf32>,
    return
  }
  func.func @transform_0(%arg0: i32) -> (i32, i32) {
    %c0_i32 = arith.constant 0 : i32
    %c0_i32_0 = arith.constant 0 : i32
    %c0_i32_1 = arith.constant 0 : i32
    return %c0_i32, %c0_i32_0 : i32, i32
  }
  func.func @transform_1(%arg0: i32) -> (i32, i32, i32) {
    %c0_i32 = arith.constant 0 : i32
    %c0_i32_0 = arith.constant 0 : i32
    %c0_i32_1 = arith.constant 0 : i32
    %c0_i32_2 = arith.constant 0 : i32
    return %c0_i32, %c0_i32_0, %c0_i32_1 : i32, i32, i32
  }
  func.func @transform_2(%arg0: i32) -> (i32, i32, i32) {
    %c0_i32 = arith.constant 0 : i32
    %c0_i32_0 = arith.constant 0 : i32
    %c0_i32_1 = arith.constant 0 : i32
    %c0_i32_2 = arith.constant 0 : i32
    return %c0_i32, %c0_i32_0, %c0_i32_1 : i32, i32, i32
  }
  func.func @transform_3(%arg0: i32) -> (i32, i32, i32) {
    %c0_i32 = arith.constant 0 : i32
    %c0_i32_0 = arith.constant 0 : i32
    %c0_i32_1 = arith.constant 0 : i32
    %c0_i32_2 = arith.constant 0 : i32
    return %c0_i32, %c0_i32_0, %c0_i32_1 : i32, i32, i32
  }
  func.func @transform_4(%arg0: i32) -> (i32, i32, i32) {
    %c0_i32 = arith.constant 0 : i32
    %c0_i32_0 = arith.constant 0 : i32
    %c0_i32_1 = arith.constant 0 : i32
    %c0_i32_2 = arith.constant 0 : i32
    return %c0_i32, %c0_i32_0, %c0_i32_1 : i32, i32, i32
  }
  func.func @transform_5(%arg0: i32) -> (i32, i32, i32) {
    %c0_i32 = arith.constant 0 : i32
    %c0_i32_0 = arith.constant 0 : i32
    %c0_i32_1 = arith.constant 0 : i32
    %c0_i32_2 = arith.constant 0 : i32
    return %c0_i32, %c0_i32_0, %c0_i32_1 : i32, i32, i32
  }
  func.func @transform_6(%arg0: i32) -> (i32, i32, i32) {
    %c0_i32 = arith.constant 0 : i32
    %c0_i32_0 = arith.constant 0 : i32
    %c0_i32_1 = arith.constant 0 : i32
    %c0_i32_2 = arith.constant 0 : i32
    return %c0_i32, %c0_i32_0, %c0_i32_1 : i32, i32, i32
  }
  func.func @transform_7(%arg0: i32) -> (i32, i32) {
    %c0_i32 = arith.constant 0 : i32
    %c0_i32_0 = arith.constant 0 : i32
    %c0_i32_1 = arith.constant 0 : i32
    return %c0_i32, %c0_i32_0 : i32, i32
  }
  func.func @transform_8(%arg0: i32) -> (i32, i32) {
    %c0_i32 = arith.constant 0 : i32
    %c0_i32_0 = arith.constant 0 : i32
    %c0_i32_1 = arith.constant 0 : i32
    return %c0_i32, %c0_i32_0 : i32, i32
  }
  func.func @transform_9(%arg0: i32) -> (i32, i32, i32) {
    %c0_i32 = arith.constant 0 : i32
    %c0_i32_0 = arith.constant 0 : i32
    %c0_i32_1 = arith.constant 0 : i32
    %c0_i32_2 = arith.constant 0 : i32
    return %c0_i32, %c0_i32_0, %c0_i32_1 : i32, i32, i32
  }
  func.func @transform_10(%arg0: i32) -> (i32, i32) {
    %c0_i32 = arith.constant 0 : i32
    %c0_i32_0 = arith.constant 0 : i32
    %c0_i32_1 = arith.constant 0 : i32
    return %c0_i32, %c0_i32_0 : i32, i32
  }
}

</mosaic_0001>

<llo_original>
// kernel: tpu_custom_call.1
$region0: #{tpu_custom_call.1}
  #allocation0 [shape = 'u32[]', space=smem, size = 0x4, offset = 0x4, fixed_abs, tag = 'smem constant byte address 0x4 - core index']
  #allocation1 [shape = 'u32[72,128]{1,0:T(1,128)}', space=vmem, size = 0x9000, scoped, tag = 'internal scratch']
  #allocation2 [shape = 'f32[4,16,32]{2,1,0:T(8,128)}', space=vmem, size = 0x8000, scoped, tag = 'scratch operand']
  #allocation3 [shape = 'f32[4,16,32]{2,1,0:T(8,128)}', space=vmem, size = 0x8000, scoped, tag = 'scratch operand']
  #allocation4 [shape = 'f32[8,2,32]{2,1,0:T(2,128)}', space=vmem, size = 0x2000, scoped, tag = 'scratch operand']
  #allocation5 [shape = 'f32[8,2,32]{2,1,0:T(2,128)}', space=vmem, size = 0x2000, scoped, tag = 'scratch operand']
  %s0 = inlined_call_operand.vmem [shape: f32[16,4], index: 0, kind: input, shape index: {}]
  %s1 = inlined_call_operand.vmem [shape: f32[4,4,32], index: 1, kind: input, shape index: {}]
  %s2 = inlined_call_operand.hbm [shape: f32[4,32,32], index: 2, kind: input, shape index: {}]
  %s3 = inlined_call_operand.vmem [shape: f32[4,1,32], index: 3, kind: input, shape index: {}]
  %s4 = inlined_call_operand.hbm [shape: f32[4,4,32], index: 4, kind: input, shape index: {}]
  %s5 = inlined_call_operand.hbm [shape: f32[4,32,32], index: 5, kind: input, shape index: {}]
  %s6 = inlined_call_operand.vmem [shape: f32[4,1,32], index: 6, kind: input, shape index: {}]
  %s7 = inlined_call_operand.vmem [shape: f32[1,64], index: 7, kind: input, shape index: {}]
  %s8 = inlined_call_operand.hbm [shape: f32[2,64], index: 8, kind: output, shape index: {0}]
  %s9 = inlined_call_operand.hbm [shape: f32[2,2,32], index: 9, kind: output, shape index: {1}]
  %s10 = inlined_call_operand.vmem [shape: f32[8,2], index: 10, kind: output, shape index: {2}]
  %11 = xla_tuple %s8, %s9, %s10
  %s12 = sld [smem:[#allocation0]]
  $region70: #{tpu_custom_call.1} parent=0
    _
  %s14 = ssub.s32 1, %s12
  %s15 = scalar_select 0, %s14, %s12
  $region1: #{tpu_custom_call.1} parent=0
    #allocation6 [shape = 'u8[65536]{0}', space=vmem, size = 0x10000, scoped, tag = 'input window, operand 2, single buffered']
    #allocation7 [shape = 's32[1]{0}', space=sflag, size = 0x4, scoped, tag = 'scoped memory for tpu_custom_call.1']
    #allocation8 [shape = 's32[1]{0}', space=sflag, size = 0x4, scoped, tag = 'scoped memory for tpu_custom_call.1']
    #allocation9 [shape = 'u8[8192]{0}', space=vmem, size = 0x2000, scoped, tag = 'input window, operand 4, single buffered']
    #allocation10 [shape = 's32[1]{0}', space=sflag, size = 0x4, scoped, tag = 'scoped memory for tpu_custom_call.1']
    #allocation11 [shape = 'u8[65536]{0}', space=vmem, size = 0x10000, scoped, tag = 'input window, operand 5, single buffered']
    #allocation12 [shape = 'u8[1024]{0}', space=vmem, size = 0x400, scoped, tag = 'output window, operand 0, single buffered']
    #allocation13 [shape = 'u8[2048]{0}', space=vmem, size = 0x800, scoped, tag = 'output window, operand 1, single buffered']
    #allocation14 [shape = 's32[1]{0}', space=sflag, size = 0x4, scoped, tag = 'scoped memory for tpu_custom_call.1']
    %16 = vsyncpa [#allocation7], 0
    %17 = vsyncpa [#allocation10], 0
    %18 = vsyncpa [#allocation8], 0
    %19 = vsyncpa [#allocation14], 0
    // Predicated region
    $region2: #{tpu_custom_call.1} parent=1 // pred_check
      _
    $region3: #{tpu_custom_call.1} parent=1 // pred_check_branch
      %21 = sbr.rel (0) target = $region5
    $region4: #{tpu_custom_call.1} parent=1 // pred_region
      _
    $region5: #{tpu_custom_call.1} parent=1 // pred_fallthru
      _
    // Predicated region
    $region6: #{tpu_custom_call.1} parent=1 // pred_check
      _
    $region7: #{tpu_custom_call.1} parent=1 // pred_check_branch
      %23 = sbr.rel (0) target = $region9
    $region8: #{tpu_custom_call.1} parent=1 // pred_region
      _
    $region9: #{tpu_custom_call.1} parent=1 // pred_fallthru
      _
    // Predicated region
    $region10: #{tpu_custom_call.1} parent=1 // pred_check
      _
    $region11: #{tpu_custom_call.1} parent=1 // pred_check_branch
      %25 = sbr.rel (0) target = $region13
    $region12: #{tpu_custom_call.1} parent=1 // pred_region
      %27 = vsyncadd [#allocation7], 0
      %s28 = sshll.u32 %s2, 4
      %s29 = int_to_ptr.hbm [resolvable:$true] %s28
      %s30 = sshll.u32 [#allocation6], 4
      %s31 = int_to_ptr.vmem [resolvable:$true] %s30
      %36 = dma.hbm_to_vmem [thread:$0]  %s29, 2048, %s31, [#allocation7], 128, 128, 8
    $region13: #{tpu_custom_call.1} parent=1 // pred_fallthru
      _
    // Predicated region
    $region14: #{tpu_custom_call.1} parent=1 // pred_check
      _
    $region15: #{tpu_custom_call.1} parent=1 // pred_check_branch
      %38 = sbr.rel (0) target = $region17
    $region16: #{tpu_custom_call.1} parent=1 // pred_region
      _
    $region17: #{tpu_custom_call.1} parent=1 // pred_fallthru
      _
    // Predicated region
    $region18: #{tpu_custom_call.1} parent=1 // pred_check
      _
    $region19: #{tpu_custom_call.1} parent=1 // pred_check_branch
      %40 = sbr.rel (0) target = $region21
    $region20: #{tpu_custom_call.1} parent=1 // pred_region
      %42 = vsyncadd [#allocation10], 0
      %s43 = sshll.u32 %s4, 4
      %s44 = int_to_ptr.hbm [resolvable:$true] %s43
      %s45 = sshll.u32 [#allocation9], 4
      %s46 = int_to_ptr.vmem [resolvable:$true] %s45
      %51 = dma.hbm_to_vmem [thread:$0]  %s44, 256, %s46, [#allocation10], 64, 64, 4
    $region21: #{tpu_custom_call.1} parent=1 // pred_fallthru
      _
    // Predicated region
    $region22: #{tpu_custom_call.1} parent=1 // pred_check
      _
    $region23: #{tpu_custom_call.1} parent=1 // pred_check_branch
      %53 = sbr.rel (0) target = $region25
    $region24: #{tpu_custom_call.1} parent=1 // pred_region
      %55 = vsyncadd [#allocation10], 0
      %s56 = sshll.u32 %s5, 4
      %s57 = int_to_ptr.hbm [resolvable:$true] %s56
      %s58 = sshll.u32 [#allocation11], 4
      %s59 = int_to_ptr.vmem [resolvable:$true] %s58
      %64 = dma.hbm_to_vmem [thread:$0]  %s57, 2048, %s59, [#allocation10], 128, 128, 8
    $region25: #{tpu_custom_call.1} parent=1 // pred_fallthru
      _
    // Predicated region
    $region26: #{tpu_custom_call.1} parent=1 // pred_check
      _
    $region27: #{tpu_custom_call.1} parent=1 // pred_check_branch
      %66 = sbr.rel (0) target = $region29
    $region28: #{tpu_custom_call.1} parent=1 // pred_region
      _
    $region29: #{tpu_custom_call.1} parent=1 // pred_fallthru
      _
    // Predicated region
    $region30: #{tpu_custom_call.1} parent=1 // pred_check
      _
    $region31: #{tpu_custom_call.1} parent=1 // pred_check_branch
      %68 = sbr.rel (0) target = $region33
    $region32: #{tpu_custom_call.1} parent=1 // pred_region
      _
    $region33: #{tpu_custom_call.1} parent=1 // pred_fallthru
      _
    // Predicated region
    $region34: #{tpu_custom_call.1} parent=1 // pred_check
      _
    $region35: #{tpu_custom_call.1} parent=1 // pred_check_branch
      %70 = sbr.rel (0) target = $region37
    $region36: #{tpu_custom_call.1} parent=1 // pred_region
      %72 = dma.done [#allocation7], 2048
    $region37: #{tpu_custom_call.1} parent=1 // pred_fallthru
      _
    // Predicated region
    $region38: #{tpu_custom_call.1} parent=1 // pred_check
      _
    $region39: #{tpu_custom_call.1} parent=1 // pred_check_branch
      %74 = sbr.rel (0) target = $region41
    $region40: #{tpu_custom_call.1} parent=1 // pred_region
      %76 = dma.done [#allocation10], 256
    $region41: #{tpu_custom_call.1} parent=1 // pred_fallthru
      _
    // Predicated region
    $region42: #{tpu_custom_call.1} parent=1 // pred_check
      _
    $region43: #{tpu_custom_call.1} parent=1 // pred_check_branch
      %78 = sbr.rel (0) target = $region45
    $region44: #{tpu_custom_call.1} parent=1 // pred_region
      %80 = dma.done [#allocation10], 2048
    $region45: #{tpu_custom_call.1} parent=1 // pred_fallthru
      _
    %v81 = vld [vmem:[%s0] sm:$0xff]
    %v82 = vld [vmem:[%s0 + $0x8] sm:$0xff]
    %v83 = vld [vmem:[%s1] sm:$0xf]
    %v84 = vld [vmem:[%s3] sm:$0x1]
    %v86 = vperm.slane %v84, 0
    %vm88 = vcmask 31744
    %v90 = vsel %vm88, %v81, 0
    %v93 = vsel %vm88, %v82, 0
    %vm95 = vcmask 1043456
    %v97 = vsel %vm95, %v83, 0
    %99 = vmatpush.msra.mxu0 0.0
    %100 = vmatpush.msra.mxu0 0.0
    %101 = vmatpush.msra.mxu0 0.0
    %102 = vmatpush.msra.mxu0 0.0
    %103 = vmatpush.msra.mxu0 0.0
    %104 = vmatpush.msra.mxu0 0.0
    %105 = vmatpush.msra.mxu0 0.0
    %106 = vmatpush.msra.mxu0 0.0
    %107 = vmatpush.msra.mxu0 0.0
    %108 = vmatpush.msra.mxu0 0.0
    %109 = vmatpush.msra.mxu0 0.0
    %110 = vmatpush.msra.mxu0 0.0
    %111 = vmatpush.msra.mxu0 0.0
    %112 = vmatpush.msra.mxu0 0.0
    %113 = vmatpush.msra.mxu0 0.0
    %114 = vmatpush.msra.mxu0 %v97
    %115 = vmatmul.f32.gmra.mxu0 %v90
    %v116 = vpop.f32.mrf.mxu0
    %v117 = vadd.f32 %v86, %v116
    %118 = vmatmul.f32.gmra.mxu0 %v93
    %v119 = vpop.f32.mrf.mxu0
    %v120 = vadd.f32 %v86, %v119
    %121 = vdwg.mxu0
    %vm122 = vcmask 261120
    %123 = vst.msk [vmem:[#allocation2] sm:$0xff] %vm122, %v117
    %124 = vst.msk [vmem:[#allocation2 + $0x8] sm:$0xff] %vm122, %v120
    %v125 = vld [vmem:[#allocation9] sm:$0xf]
    %v126 = vld [vmem:[%s6] sm:$0x1]
    %v128 = vperm.slane %v126, 0
    %v131 = vsel %vm95, %v125, 0
    %133 = vmatpush.msra.mxu0 0.0
    %134 = vmatpush.msra.mxu0 0.0
    %135 = vmatpush.msra.mxu0 0.0
    %136 = vmatpush.msra.mxu0 0.0
    %137 = vmatpush.msra.mxu0 0.0
    %138 = vmatpush.msra.mxu0 0.0
    %139 = vmatpush.msra.mxu0 0.0
    %140 = vmatpush.msra.mxu0 0.0
    %141 = vmatpush.msra.mxu0 0.0
    %142 = vmatpush.msra.mxu0 0.0
    %143 = vmatpush.msra.mxu0 0.0
    %144 = vmatpush.msra.mxu0 0.0
    %145 = vmatpush.msra.mxu0 0.0
    %146 = vmatpush.msra.mxu0 0.0
    %147 = vmatpush.msra.mxu0 0.0
    %148 = vmatpush.msra.mxu0 %v131
    %149 = vmatmul.f32.gmra.mxu0 %v90
    %v150 = vpop.f32.mrf.mxu0
    %v151 = vadd.f32 %v128, %v150
    %152 = vmatmul.f32.gmra.mxu0 %v93
    %v153 = vpop.f32.mrf.mxu0
    %v154 = vadd.f32 %v128, %v153
    %155 = vdwg.mxu0
    %156 = vst.msk [vmem:[#allocation3] sm:$0xff] %vm122, %v151
    %157 = vst.msk [vmem:[#allocation3 + $0x8] sm:$0xff] %vm122, %v154
    %s158 = scalar_lea.vmem %s1, 4
    %v159 = vld [vmem:[%s158] sm:$0xf]
    %s160 = scalar_lea.vmem %s3, 1
    %v161 = vld [vmem:[%s160] sm:$0x1]
    %v163 = vperm.slane %v161, 0
    %v166 = vsel %vm95, %v159, 0
    %168 = vmatpush.msra.mxu0 0.0
    %169 = vmatpush.msra.mxu0 0.0
    %170 = vmatpush.msra.mxu0 0.0
    %171 = vmatpush.msra.mxu0 0.0
    %172 = vmatpush.msra.mxu0 0.0
    %173 = vmatpush.msra.mxu0 0.0
    %174 = vmatpush.msra.mxu0 0.0
    %175 = vmatpush.msra.mxu0 0.0
    %176 = vmatpush.msra.mxu0 0.0
    %177 = vmatpush.msra.mxu0 0.0
    %178 = vmatpush.msra.mxu0 0.0
    %179 = vmatpush.msra.mxu0 0.0
    %180 = vmatpush.msra.mxu0 0.0
    %181 = vmatpush.msra.mxu0 0.0
    %182 = vmatpush.msra.mxu0 0.0
    %183 = vmatpush.msra.mxu0 %v166
    %184 = vmatmul.f32.gmra.mxu0 %v90
    %v185 = vpop.f32.mrf.mxu0
    %v186 = vadd.f32 %v163, %v185
    %187 = vmatmul.f32.gmra.mxu0 %v93
    %v188 = vpop.f32.mrf.mxu0
    %v189 = vadd.f32 %v163, %v188
    %190 = vdwg.mxu0
    %s191 = scalar_lea.vmem [#allocation2], 16
    %192 = vst.msk [vmem:[%s191] sm:$0xff] %vm122, %v186
    %193 = vst.msk [vmem:[%s191 + $0x8] sm:$0xff] %vm122, %v189
    %s194 = scalar_lea.vmem [#allocation9], 4
    %v195 = vld [vmem:[%s194] sm:$0xf]
    %s196 = scalar_lea.vmem %s6, 1
    %v197 = vld [vmem:[%s196] sm:$0x1]
    %v199 = vperm.slane %v197, 0
    %v202 = vsel %vm95, %v195, 0
    %204 = vmatpush.msra.mxu0 0.0
    %205 = vmatpush.msra.mxu0 0.0
    %206 = vmatpush.msra.mxu0 0.0
    %207 = vmatpush.msra.mxu0 0.0
    %208 = vmatpush.msra.mxu0 0.0
    %209 = vmatpush.msra.mxu0 0.0
    %210 = vmatpush.msra.mxu0 0.0
    %211 = vmatpush.msra.mxu0 0.0
    %212 = vmatpush.msra.mxu0 0.0
    %213 = vmatpush.msra.mxu0 0.0
    %214 = vmatpush.msra.mxu0 0.0
    %215 = vmatpush.msra.mxu0 0.0
    %216 = vmatpush.msra.mxu0 0.0
    %217 = vmatpush.msra.mxu0 0.0
    %218 = vmatpush.msra.mxu0 0.0
    %219 = vmatpush.msra.mxu0 %v202
    %220 = vmatmul.f32.gmra.mxu0 %v90
    %v221 = vpop.f32.mrf.mxu0
    %v222 = vadd.f32 %v199, %v221
    %223 = vmatmul.f32.gmra.mxu0 %v93
    %v224 = vpop.f32.mrf.mxu0
    %v225 = vadd.f32 %v199, %v224
    %226 = vdwg.mxu0
    %s227 = scalar_lea.vmem [#allocation3], 16
    %228 = vst.msk [vmem:[%s227] sm:$0xff] %vm122, %v222
    %229 = vst.msk [vmem:[%s227 + $0x8] sm:$0xff] %vm122, %v225
    %s230 = scalar_lea.vmem %s1, 8
    %v231 = vld [vmem:[%s230] sm:$0xf]
    %s232 = scalar_lea.vmem %s3, 2
    %v233 = vld [vmem:[%s232] sm:$0x1]
    %v235 = vperm.slane %v233, 0
    %v238 = vsel %vm95, %v231, 0
    %240 = vmatpush.msra.mxu0 0.0
    %241 = vmatpush.msra.mxu0 0.0
    %242 = vmatpush.msra.mxu0 0.0
    %243 = vmatpush.msra.mxu0 0.0
    %244 = vmatpush.msra.mxu0 0.0
    %245 = vmatpush.msra.mxu0 0.0
    %246 = vmatpush.msra.mxu0 0.0
    %247 = vmatpush.msra.mxu0 0.0
    %248 = vmatpush.msra.mxu0 0.0
    %249 = vmatpush.msra.mxu0 0.0
    %250 = vmatpush.msra.mxu0 0.0
    %251 = vmatpush.msra.mxu0 0.0
    %252 = vmatpush.msra.mxu0 0.0
    %253 = vmatpush.msra.mxu0 0.0
    %254 = vmatpush.msra.mxu0 0.0
    %255 = vmatpush.msra.mxu0 %v238
    %256 = vmatmul.f32.gmra.mxu0 %v90
    %v257 = vpop.f32.mrf.mxu0
    %v258 = vadd.f32 %v235, %v257
    %259 = vmatmul.f32.gmra.mxu0 %v93
    %v260 = vpop.f32.mrf.mxu0
    %v261 = vadd.f32 %v235, %v260
    %262 = vdwg.mxu0
    %s263 = scalar_lea.vmem [#allocation2], 32
    %264 = vst.msk [vmem:[%s263] sm:$0xff] %vm122, %v258
    %265 = vst.msk [vmem:[%s263 + $0x8] sm:$0xff] %vm122, %v261
    %s266 = scalar_lea.vmem [#allocation9], 8
    %v267 = vld [vmem:[%s266] sm:$0xf]
    %s268 = scalar_lea.vmem %s6, 2
    %v269 = vld [vmem:[%s268] sm:$0x1]
    %v271 = vperm.slane %v269, 0
    %v274 = vsel %vm95, %v267, 0
    %276 = vmatpush.msra.mxu0 0.0
    %277 = vmatpush.msra.mxu0 0.0
    %278 = vmatpush.msra.mxu0 0.0
    %279 = vmatpush.msra.mxu0 0.0
    %280 = vmatpush.msra.mxu0 0.0
    %281 = vmatpush.msra.mxu0 0.0
    %282 = vmatpush.msra.mxu0 0.0
    %283 = vmatpush.msra.mxu0 0.0
    %284 = vmatpush.msra.mxu0 0.0
    %285 = vmatpush.msra.mxu0 0.0
    %286 = vmatpush.msra.mxu0 0.0
    %287 = vmatpush.msra.mxu0 0.0
    %288 = vmatpush.msra.mxu0 0.0
    %289 = vmatpush.msra.mxu0 0.0
    %290 = vmatpush.msra.mxu0 0.0
    %291 = vmatpush.msra.mxu0 %v274
    %292 = vmatmul.f32.gmra.mxu0 %v90
    %v293 = vpop.f32.mrf.mxu0
    %v294 = vadd.f32 %v271, %v293
    %295 = vmatmul.f32.gmra.mxu0 %v93
    %v296 = vpop.f32.mrf.mxu0
    %v297 = vadd.f32 %v271, %v296
    %298 = vdwg.mxu0
    %s299 = scalar_lea.vmem [#allocation3], 32
    %300 = vst.msk [vmem:[%s299] sm:$0xff] %vm122, %v294
    %301 = vst.msk [vmem:[%s299 + $0x8] sm:$0xff] %vm122, %v297
    %s302 = scalar_lea.vmem %s1, 12
    %v303 = vld [vmem:[%s302] sm:$0xf]
    %s304 = scalar_lea.vmem %s3, 3
    %v305 = vld [vmem:[%s304] sm:$0x1]
    %v307 = vperm.slane %v305, 0
    %v310 = vsel %vm95, %v303, 0
    %312 = vmatpush.msra.mxu0 0.0
    %313 = vmatpush.msra.mxu0 0.0
    %314 = vmatpush.msra.mxu0 0.0
    %315 = vmatpush.msra.mxu0 0.0
    %316 = vmatpush.msra.mxu0 0.0
    %317 = vmatpush.msra.mxu0 0.0
    %318 = vmatpush.msra.mxu0 0.0
    %319 = vmatpush.msra.mxu0 0.0
    %320 = vmatpush.msra.mxu0 0.0
    %321 = vmatpush.msra.mxu0 0.0
    %322 = vmatpush.msra.mxu0 0.0
    %323 = vmatpush.msra.mxu0 0.0
    %324 = vmatpush.msra.mxu0 0.0
    %325 = vmatpush.msra.mxu0 0.0
    %326 = vmatpush.msra.mxu0 0.0
    %327 = vmatpush.msra.mxu0 %v310
    %328 = vmatmul.f32.gmra.mxu0 %v90
    %v329 = vpop.f32.mrf.mxu0
    %v330 = vadd.f32 %v307, %v329
    %331 = vmatmul.f32.gmra.mxu0 %v93
    %v332 = vpop.f32.mrf.mxu0
    %v333 = vadd.f32 %v307, %v332
    %334 = vdwg.mxu0
    %s335 = scalar_lea.vmem [#allocation2], 48
    %336 = vst.msk [vmem:[%s335] sm:$0xff] %vm122, %v330
    %337 = vst.msk [vmem:[%s335 + $0x8] sm:$0xff] %vm122, %v333
    %s338 = scalar_lea.vmem [#allocation9], 12
    %v339 = vld [vmem:[%s338] sm:$0xf]
    %s340 = scalar_lea.vmem %s6, 3
    %v341 = vld [vmem:[%s340] sm:$0x1]
    %v343 = vperm.slane %v341, 0
    %v346 = vsel %vm95, %v339, 0
    %348 = vmatpush.msra.mxu0 0.0
    %349 = vmatpush.msra.mxu0 0.0
    %350 = vmatpush.msra.mxu0 0.0
    %351 = vmatpush.msra.mxu0 0.0
    %352 = vmatpush.msra.mxu0 0.0
    %353 = vmatpush.msra.mxu0 0.0
    %354 = vmatpush.msra.mxu0 0.0
    %355 = vmatpush.msra.mxu0 0.0
    %356 = vmatpush.msra.mxu0 0.0
    %357 = vmatpush.msra.mxu0 0.0
    %358 = vmatpush.msra.mxu0 0.0
    %359 = vmatpush.msra.mxu0 0.0
    %360 = vmatpush.msra.mxu0 0.0
    %361 = vmatpush.msra.mxu0 0.0
    %362 = vmatpush.msra.mxu0 0.0
    %363 = vmatpush.msra.mxu0 %v346
    %364 = vmatmul.f32.gmra.mxu0 %v90
    %v365 = vpop.f32.mrf.mxu0
    %v366 = vadd.f32 %v343, %v365
    %367 = vmatmul.f32.gmra.mxu0 %v93
    %v368 = vpop.f32.mrf.mxu0
    %v369 = vadd.f32 %v343, %v368
    %370 = vdwg.mxu0
    %s371 = scalar_lea.vmem [#allocation3], 48
    %372 = vst.msk [vmem:[%s371] sm:$0xff] %vm122, %v366
    %373 = vst.msk [vmem:[%s371 + $0x8] sm:$0xff] %vm122, %v369
    %v374 = vld [vmem:[#allocation6] sm:$0xff]
    %v375 = vld [vmem:[#allocation6 + $0x8] sm:$0xff]
    %v376 = vld [vmem:[#allocation6 + $0x10] sm:$0xff]
    %v377 = vld [vmem:[#allocation6 + $0x18] sm:$0xff]
    %s378 = scalar_lea.vmem [#allocation6], 32
    %v379 = vld [vmem:[%s378] sm:$0xff]
    %v380 = vld [vmem:[%s378 + $0x8] sm:$0xff]
    %v381 = vld [vmem:[%s378 + $0x10] sm:$0xff]
    %v382 = vld [vmem:[%s378 + $0x18] sm:$0xff]
    %s383 = scalar_lea.vmem [#allocation6], 64
    %v384 = vld [vmem:[%s383] sm:$0xff]
    %v385 = vld [vmem:[%s383 + $0x8] sm:$0xff]
    %v386 = vld [vmem:[%s383 + $0x10] sm:$0xff]
    %v387 = vld [vmem:[%s383 + $0x18] sm:$0xff]
    %s388 = scalar_lea.vmem [#allocation6], 96
    %v389 = vld [vmem:[%s388] sm:$0xff]
    %v390 = vld [vmem:[%s388 + $0x8] sm:$0xff]
    %v391 = vld [vmem:[%s388 + $0x10] sm:$0xff]
    %v392 = vld [vmem:[%s388 + $0x18] sm:$0xff]
    %v393 = vld [vmem:[#allocation11] sm:$0xff]
    %v394 = vld [vmem:[#allocation11 + $0x8] sm:$0xff]
    %v395 = vld [vmem:[#allocation11 + $0x10] sm:$0xff]
    %v396 = vld [vmem:[#allocation11 + $0x18] sm:$0xff]
    %s397 = scalar_lea.vmem [#allocation11], 32
    %v398 = vld [vmem:[%s397] sm:$0xff]
    %v399 = vld [vmem:[%s397 + $0x8] sm:$0xff]
    %v400 = vld [vmem:[%s397 + $0x10] sm:$0xff]
    %v401 = vld [vmem:[%s397 + $0x18] sm:$0xff]
    %s402 = scalar_lea.vmem [#allocation11], 64
    %v403 = vld [vmem:[%s402] sm:$0xff]
    %v404 = vld [vmem:[%s402 + $0x8] sm:$0xff]
    %v405 = vld [vmem:[%s402 + $0x10] sm:$0xff]
    %v406 = vld [vmem:[%s402 + $0x18] sm:$0xff]
    %s407 = scalar_lea.vmem [#allocation11], 96
    %v408 = vld [vmem:[%s407] sm:$0xff]
    %v409 = vld [vmem:[%s407 + $0x8] sm:$0xff]
    %v410 = vld [vmem:[%s407 + $0x10] sm:$0xff]
    %v411 = vld [vmem:[%s407 + $0x18] sm:$0xff]
    %v412 = vld [vmem:[#allocation2] sm:$0x3]
    %v414 = vsel %vm122, 0.0, 0
    %416 = vmatpush.msra.mxu0 0.0
    %417 = vmatpush.msra.mxu0 0.0
    %418 = vmatpush.msra.mxu0 0.0
    %419 = vmatpush.msra.mxu0 0.0
    %420 = vmatpush.msra.mxu0 0.0
    %421 = vmatpush.msra.mxu0 0.0
    %422 = vmatpush.msra.mxu0 0.0
    %423 = vmatpush.msra.mxu0 0.0
    %424 = vmatpush.msra.mxu0 0.0
    %425 = vmatpush.msra.mxu0 0.0
    %426 = vmatpush.msra.mxu0 0.0
    %427 = vmatpush.msra.mxu0 0.0
    %428 = vmatpush.msra.mxu0 %v377
    %429 = vmatpush.msra.mxu0 %v376
    %430 = vmatpush.msra.mxu0 %v375
    %431 = vmatpush.msra.mxu0 %v374
    %432 = vmatmul.f32.gmra.mxu0 %v414
    %v433 = vpop.f32.mrf.mxu0
    %v434 = vadd.f32 0.0, %v433
    %435 = vdwg.mxu0
    %v436 = vadd.f32 %v412, %v434
    %v437 = vld [vmem:[%s191] sm:$0x3]
    %438 = vmatpush.msra.mxu0 0.0
    %439 = vmatpush.msra.mxu0 0.0
    %440 = vmatpush.msra.mxu0 0.0
    %441 = vmatpush.msra.mxu0 0.0
    %442 = vmatpush.msra.mxu0 0.0
    %443 = vmatpush.msra.mxu0 0.0
    %444 = vmatpush.msra.mxu0 0.0
    %445 = vmatpush.msra.mxu0 0.0
    %446 = vmatpush.msra.mxu0 0.0
    %447 = vmatpush.msra.mxu0 0.0
    %448 = vmatpush.msra.mxu0 0.0
    %449 = vmatpush.msra.mxu0 0.0
    %450 = vmatpush.msra.mxu0 %v382
    %451 = vmatpush.msra.mxu0 %v381
    %452 = vmatpush.msra.mxu0 %v380
    %453 = vmatpush.msra.mxu0 %v379
    %454 = vmatmul.f32.gmra.mxu0 %v414
    %v455 = vpop.f32.mrf.mxu0
    %v456 = vadd.f32 0.0, %v455
    %457 = vdwg.mxu0
    %v458 = vadd.f32 %v437, %v456
    %v459 = vld [vmem:[%s263] sm:$0x3]
    %460 = vmatpush.msra.mxu0 0.0
    %461 = vmatpush.msra.mxu0 0.0
    %462 = vmatpush.msra.mxu0 0.0
    %463 = vmatpush.msra.mxu0 0.0
    %464 = vmatpush.msra.mxu0 0.0
    %465 = vmatpush.msra.mxu0 0.0
    %466 = vmatpush.msra.mxu0 0.0
    %467 = vmatpush.msra.mxu0 0.0
    %468 = vmatpush.msra.mxu0 0.0
    %469 = vmatpush.msra.mxu0 0.0
    %470 = vmatpush.msra.mxu0 0.0
    %471 = vmatpush.msra.mxu0 0.0
    %472 = vmatpush.msra.mxu0 %v387
    %473 = vmatpush.msra.mxu0 %v386
    %474 = vmatpush.msra.mxu0 %v385
    %475 = vmatpush.msra.mxu0 %v384
    %476 = vmatmul.f32.gmra.mxu0 %v414
    %v477 = vpop.f32.mrf.mxu0
    %v478 = vadd.f32 0.0, %v477
    %479 = vdwg.mxu0
    %v480 = vadd.f32 %v459, %v478
    %v481 = vld [vmem:[%s335] sm:$0x3]
    %482 = vmatpush.msra.mxu0 0.0
    %483 = vmatpush.msra.mxu0 0.0
    %484 = vmatpush.msra.mxu0 0.0
    %485 = vmatpush.msra.mxu0 0.0
    %486 = vmatpush.msra.mxu0 0.0
    %487 = vmatpush.msra.mxu0 0.0
    %488 = vmatpush.msra.mxu0 0.0
    %489 = vmatpush.msra.mxu0 0.0
    %490 = vmatpush.msra.mxu0 0.0
    %491 = vmatpush.msra.mxu0 0.0
    %492 = vmatpush.msra.mxu0 0.0
    %493 = vmatpush.msra.mxu0 0.0
    %494 = vmatpush.msra.mxu0 %v392
    %495 = vmatpush.msra.mxu0 %v391
    %496 = vmatpush.msra.mxu0 %v390
    %497 = vmatpush.msra.mxu0 %v389
    %498 = vmatmul.f32.gmra.mxu0 %v414
    %v499 = vpop.f32.mrf.mxu0
    %v500 = vadd.f32 0.0, %v499
    %501 = vdwg.mxu0
    %v502 = vadd.f32 %v481, %v500
    %v503 = vmul.f32 %v436, 0.5
    %v504 = vtanh.pop %v503
    %v505 = vmul.f32 %v504, 0.5
    %v506 = vadd.f32 %v505, 0.5
    %v507 = vmul.f32 %v458, 0.5
    %v508 = vtanh.pop %v507
    %v509 = vmul.f32 %v508, 0.5
    %v510 = vadd.f32 %v509, 0.5
    %v511 = vtanh.pop %v480
    %v512 = vmul.f32 %v502, 0.5
    %v513 = vtanh.pop %v512
    %v514 = vmul.f32 %v513, 0.5
    %v515 = vadd.f32 %v514, 0.5
    %v516 = vmul.f32 %v510, 0.0
    %v517 = vmul.f32 %v506, %v511
    %v518 = vadd.f32 %v516, %v517
    %v519 = vtanh.pop %v518
    %v520 = vmul.f32 %v515, %v519
    %v521 = vld [vmem:[#allocation3 + $0xe] sm:$0x3]
    %522 = vmatpush.msra.mxu0 0.0
    %523 = vmatpush.msra.mxu0 0.0
    %524 = vmatpush.msra.mxu0 0.0
    %525 = vmatpush.msra.mxu0 0.0
    %526 = vmatpush.msra.mxu0 0.0
    %527 = vmatpush.msra.mxu0 0.0
    %528 = vmatpush.msra.mxu0 0.0
    %529 = vmatpush.msra.mxu0 0.0
    %530 = vmatpush.msra.mxu0 0.0
    %531 = vmatpush.msra.mxu0 0.0
    %532 = vmatpush.msra.mxu0 0.0
    %533 = vmatpush.msra.mxu0 0.0
    %534 = vmatpush.msra.mxu0 %v396
    %535 = vmatpush.msra.mxu0 %v395
    %536 = vmatpush.msra.mxu0 %v394
    %537 = vmatpush.msra.mxu0 %v393
    %538 = vmatmul.f32.gmra.mxu0 %v414
    %v539 = vpop.f32.mrf.mxu0
    %v540 = vadd.f32 0.0, %v539
    %541 = vdwg.mxu0
    %v542 = vadd.f32 %v521, %v540
    %v543 = vld [vmem:[%s227 + $0xe] sm:$0x3]
    %544 = vmatpush.msra.mxu0 0.0
    %545 = vmatpush.msra.mxu0 0.0
    %546 = vmatpush.msra.mxu0 0.0
    %547 = vmatpush.msra.mxu0 0.0
    %548 = vmatpush.msra.mxu0 0.0
    %549 = vmatpush.msra.mxu0 0.0
    %550 = vmatpush.msra.mxu0 0.0
    %551 = vmatpush.msra.mxu0 0.0
    %552 = vmatpush.msra.mxu0 0.0
    %553 = vmatpush.msra.mxu0 0.0
    %554 = vmatpush.msra.mxu0 0.0
    %555 = vmatpush.msra.mxu0 0.0
    %556 = vmatpush.msra.mxu0 %v401
    %557 = vmatpush.msra.mxu0 %v400
    %558 = vmatpush.msra.mxu0 %v399
    %559 = vmatpush.msra.mxu0 %v398
    %560 = vmatmul.f32.gmra.mxu0 %v414
    %v561 = vpop.f32.mrf.mxu0
    %v562 = vadd.f32 0.0, %v561
    %563 = vdwg.mxu0
    %v564 = vadd.f32 %v543, %v562
    %v565 = vld [vmem:[%s299 + $0xe] sm:$0x3]
    %566 = vmatpush.msra.mxu0 0.0
    %567 = vmatpush.msra.mxu0 0.0
    %568 = vmatpush.msra.mxu0 0.0
    %569 = vmatpush.msra.mxu0 0.0
    %570 = vmatpush.msra.mxu0 0.0
    %571 = vmatpush.msra.mxu0 0.0
    %572 = vmatpush.msra.mxu0 0.0
    %573 = vmatpush.msra.mxu0 0.0
    %574 = vmatpush.msra.mxu0 0.0
    %575 = vmatpush.msra.mxu0 0.0
    %576 = vmatpush.msra.mxu0 0.0
    %577 = vmatpush.msra.mxu0 0.0
    %578 = vmatpush.msra.mxu0 %v406
    %579 = vmatpush.msra.mxu0 %v405
    %580 = vmatpush.msra.mxu0 %v404
    %581 = vmatpush.msra.mxu0 %v403
    %582 = vmatmul.f32.gmra.mxu0 %v414
    %v583 = vpop.f32.mrf.mxu0
    %v584 = vadd.f32 0.0, %v583
    %585 = vdwg.mxu0
    %v586 = vadd.f32 %v565, %v584
    %v587 = vld [vmem:[%s371 + $0xe] sm:$0x3]
    %588 = vmatpush.msra.mxu0 0.0
    %589 = vmatpush.msra.mxu0 0.0
    %590 = vmatpush.msra.mxu0 0.0
    %591 = vmatpush.msra.mxu0 0.0
    %592 = vmatpush.msra.mxu0 0.0
    %593 = vmatpush.msra.mxu0 0.0
    %594 = vmatpush.msra.mxu0 0.0
    %595 = vmatpush.msra.mxu0 0.0
    %596 = vmatpush.msra.mxu0 0.0
    %597 = vmatpush.msra.mxu0 0.0
    %598 = vmatpush.msra.mxu0 0.0
    %599 = vmatpush.msra.mxu0 0.0
    %600 = vmatpush.msra.mxu0 %v411
    %601 = vmatpush.msra.mxu0 %v410
    %602 = vmatpush.msra.mxu0 %v409
    %603 = vmatpush.msra.mxu0 %v408
    %604 = vmatmul.f32.gmra.mxu0 %v414
    %v605 = vpop.f32.mrf.mxu0
    %v606 = vadd.f32 0.0, %v605
    %607 = vdwg.mxu0
    %v608 = vadd.f32 %v587, %v606
    %v609 = vmul.f32 %v542, 0.5
    %v610 = vtanh.pop %v609
    %v611 = vmul.f32 %v610, 0.5
    %v612 = vadd.f32 %v611, 0.5
    %v613 = vmul.f32 %v564, 0.5
    %v614 = vtanh.pop %v613
    %v615 = vmul.f32 %v614, 0.5
    %v616 = vadd.f32 %v615, 0.5
    %v617 = vtanh.pop %v586
    %v618 = vmul.f32 %v608, 0.5
    %v619 = vtanh.pop %v618
    %v620 = vmul.f32 %v619, 0.5
    %v621 = vadd.f32 %v620, 0.5
    %v622 = vmul.f32 %v616, 0.0
    %v623 = vmul.f32 %v612, %v617
    %v624 = vadd.f32 %v622, %v623
    %v625 = vtanh.pop %v624
    %v626 = vmul.f32 %v621, %v625
    %vm627 = vcmask 254976
    %628 = vst.msk [vmem:[#allocation4] sm:$0x3] %vm627, %v520
    %s629 = scalar_lea.vmem [#allocation5], 14
    %630 = vst.msk [vmem:[%s629] sm:$0x3] %vm627, %v626
    %v631 = vld [vmem:[#allocation2 + $0x2] sm:$0x3]
    %v633 = vsel %vm122, %v520, 0
    %635 = vmatpush.msra.mxu0 0.0
    %636 = vmatpush.msra.mxu0 0.0
    %637 = vmatpush.msra.mxu0 0.0
    %638 = vmatpush.msra.mxu0 0.0
    %639 = vmatpush.msra.mxu0 0.0
    %640 = vmatpush.msra.mxu0 0.0
    %641 = vmatpush.msra.mxu0 0.0
    %642 = vmatpush.msra.mxu0 0.0
    %643 = vmatpush.msra.mxu0 0.0
    %644 = vmatpush.msra.mxu0 0.0
    %645 = vmatpush.msra.mxu0 0.0
    %646 = vmatpush.msra.mxu0 0.0
    %647 = vmatpush.msra.mxu0 %v377
    %648 = vmatpush.msra.mxu0 %v376
    %649 = vmatpush.msra.mxu0 %v375
    %650 = vmatpush.msra.mxu0 %v374
    %651 = vmatmul.f32.gmra.mxu0 %v633
    %v652 = vpop.f32.mrf.mxu0
    %v653 = vadd.f32 0.0, %v652
    %654 = vdwg.mxu0
    %v655 = vadd.f32 %v631, %v653
    %v656 = vld [vmem:[%s191 + $0x2] sm:$0x3]
    %657 = vmatpush.msra.mxu0 0.0
    %658 = vmatpush.msra.mxu0 0.0
    %659 = vmatpush.msra.mxu0 0.0
    %660 = vmatpush.msra.mxu0 0.0
    %661 = vmatpush.msra.mxu0 0.0
    %662 = vmatpush.msra.mxu0 0.0
    %663 = vmatpush.msra.mxu0 0.0
    %664 = vmatpush.msra.mxu0 0.0
    %665 = vmatpush.msra.mxu0 0.0
    %666 = vmatpush.msra.mxu0 0.0
    %667 = vmatpush.msra.mxu0 0.0
    %668 = vmatpush.msra.mxu0 0.0
    %669 = vmatpush.msra.mxu0 %v382
    %670 = vmatpush.msra.mxu0 %v381
    %671 = vmatpush.msra.mxu0 %v380
    %672 = vmatpush.msra.mxu0 %v379
    %673 = vmatmul.f32.gmra.mxu0 %v633
    %v674 = vpop.f32.mrf.mxu0
    %v675 = vadd.f32 0.0, %v674
    %676 = vdwg.mxu0
    %v677 = vadd.f32 %v656, %v675
    %v678 = vld [vmem:[%s263 + $0x2] sm:$0x3]
    %679 = vmatpush.msra.mxu0 0.0
    %680 = vmatpush.msra.mxu0 0.0
    %681 = vmatpush.msra.mxu0 0.0
    %682 = vmatpush.msra.mxu0 0.0
    %683 = vmatpush.msra.mxu0 0.0
    %684 = vmatpush.msra.mxu0 0.0
    %685 = vmatpush.msra.mxu0 0.0
    %686 = vmatpush.msra.mxu0 0.0
    %687 = vmatpush.msra.mxu0 0.0
    %688 = vmatpush.msra.mxu0 0.0
    %689 = vmatpush.msra.mxu0 0.0
    %690 = vmatpush.msra.mxu0 0.0
    %691 = vmatpush.msra.mxu0 %v387
    %692 = vmatpush.msra.mxu0 %v386
    %693 = vmatpush.msra.mxu0 %v385
    %694 = vmatpush.msra.mxu0 %v384
    %695 = vmatmul.f32.gmra.mxu0 %v633
    %v696 = vpop.f32.mrf.mxu0
    %v697 = vadd.f32 0.0, %v696
    %698 = vdwg.mxu0
    %v699 = vadd.f32 %v678, %v697
    %v700 = vld [vmem:[%s335 + $0x2] sm:$0x3]
    %701 = vmatpush.msra.mxu0 0.0
    %702 = vmatpush.msra.mxu0 0.0
    %703 = vmatpush.msra.mxu0 0.0
    %704 = vmatpush.msra.mxu0 0.0
    %705 = vmatpush.msra.mxu0 0.0
    %706 = vmatpush.msra.mxu0 0.0
    %707 = vmatpush.msra.mxu0 0.0
    %708 = vmatpush.msra.mxu0 0.0
    %709 = vmatpush.msra.mxu0 0.0
    %710 = vmatpush.msra.mxu0 0.0
    %711 = vmatpush.msra.mxu0 0.0
    %712 = vmatpush.msra.mxu0 0.0
    %713 = vmatpush.msra.mxu0 %v392
    %714 = vmatpush.msra.mxu0 %v391
    %715 = vmatpush.msra.mxu0 %v390
    %716 = vmatpush.msra.mxu0 %v389
    %717 = vmatmul.f32.gmra.mxu0 %v633
    %v718 = vpop.f32.mrf.mxu0
    %v719 = vadd.f32 0.0, %v718
    %720 = vdwg.mxu0
    %v721 = vadd.f32 %v700, %v719
    %v722 = vmul.f32 %v655, 0.5
    %v723 = vtanh.pop %v722
    %v724 = vmul.f32 %v723, 0.5
    %v725 = vadd.f32 %v724, 0.5
    %v726 = vmul.f32 %v677, 0.5
    %v727 = vtanh.pop %v726
    %v728 = vmul.f32 %v727, 0.5
    %v729 = vadd.f32 %v728, 0.5
    %v730 = vtanh.pop %v699
    %v731 = vmul.f32 %v721, 0.5
    %v732 = vtanh.pop %v731
    %v733 = vmul.f32 %v732, 0.5
    %v734 = vadd.f32 %v733, 0.5
    %v735 = vmul.f32 %v729, %v518
    %v736 = vmul.f32 %v725, %v730
    %v737 = vadd.f32 %v735, %v736
    %v738 = vtanh.pop %v737
    %v739 = vmul.f32 %v734, %v738
    %v740 = vld [vmem:[#allocation3 + $0xc] sm:$0x3]
    %v742 = vsel %vm122, %v626, 0
    %744 = vmatpush.msra.mxu0 0.0
    %745 = vmatpush.msra.mxu0 0.0
    %746 = vmatpush.msra.mxu0 0.0
    %747 = vmatpush.msra.mxu0 0.0
    %748 = vmatpush.msra.mxu0 0.0
    %749 = vmatpush.msra.mxu0 0.0
    %750 = vmatpush.msra.mxu0 0.0
    %751 = vmatpush.msra.mxu0 0.0
    %752 = vmatpush.msra.mxu0 0.0
    %753 = vmatpush.msra.mxu0 0.0
    %754 = vmatpush.msra.mxu0 0.0
    %755 = vmatpush.msra.mxu0 0.0
    %756 = vmatpush.msra.mxu0 %v396
    %757 = vmatpush.msra.mxu0 %v395
    %758 = vmatpush.msra.mxu0 %v394
    %759 = vmatpush.msra.mxu0 %v393
    %760 = vmatmul.f32.gmra.mxu0 %v742
    %v761 = vpop.f32.mrf.mxu0
    %v762 = vadd.f32 0.0, %v761
    %763 = vdwg.mxu0
    %v764 = vadd.f32 %v740, %v762
    %v765 = vld [vmem:[%s227 + $0xc] sm:$0x3]
    %766 = vmatpush.msra.mxu0 0.0
    %767 = vmatpush.msra.mxu0 0.0
    %768 = vmatpush.msra.mxu0 0.0
    %769 = vmatpush.msra.mxu0 0.0
    %770 = vmatpush.msra.mxu0 0.0
    %771 = vmatpush.msra.mxu0 0.0
    %772 = vmatpush.msra.mxu0 0.0
    %773 = vmatpush.msra.mxu0 0.0
    %774 = vmatpush.msra.mxu0 0.0
    %775 = vmatpush.msra.mxu0 0.0
    %776 = vmatpush.msra.mxu0 0.0
    %777 = vmatpush.msra.mxu0 0.0
    %778 = vmatpush.msra.mxu0 %v401
    %779 = vmatpush.msra.mxu0 %v400
    %780 = vmatpush.msra.mxu0 %v399
    %781 = vmatpush.msra.mxu0 %v398
    %782 = vmatmul.f32.gmra.mxu0 %v742
    %v783 = vpop.f32.mrf.mxu0
    %v784 = vadd.f32 0.0, %v783
    %785 = vdwg.mxu0
    %v786 = vadd.f32 %v765, %v784
    %v787 = vld [vmem:[%s299 + $0xc] sm:$0x3]
    %788 = vmatpush.msra.mxu0 0.0
    %789 = vmatpush.msra.mxu0 0.0
    %790 = vmatpush.msra.mxu0 0.0
    %791 = vmatpush.msra.mxu0 0.0
    %792 = vmatpush.msra.mxu0 0.0
    %793 = vmatpush.msra.mxu0 0.0
    %794 = vmatpush.msra.mxu0 0.0
    %795 = vmatpush.msra.mxu0 0.0
    %796 = vmatpush.msra.mxu0 0.0
    %797 = vmatpush.msra.mxu0 0.0
    %798 = vmatpush.msra.mxu0 0.0
    %799 = vmatpush.msra.mxu0 0.0
    %800 = vmatpush.msra.mxu0 %v406
    %801 = vmatpush.msra.mxu0 %v405
    %802 = vmatpush.msra.mxu0 %v404
    %803 = vmatpush.msra.mxu0 %v403
    %804 = vmatmul.f32.gmra.mxu0 %v742
    %v805 = vpop.f32.mrf.mxu0
    %v806 = vadd.f32 0.0, %v805
    %807 = vdwg.mxu0
    %v808 = vadd.f32 %v787, %v806
    %v809 = vld [vmem:[%s371 + $0xc] sm:$0x3]
    %810 = vmatpush.msra.mxu0 0.0
    %811 = vmatpush.msra.mxu0 0.0
    %812 = vmatpush.msra.mxu0 0.0
    %813 = vmatpush.msra.mxu0 0.0
    %814 = vmatpush.msra.mxu0 0.0
    %815 = vmatpush.msra.mxu0 0.0
    %816 = vmatpush.msra.mxu0 0.0
    %817 = vmatpush.msra.mxu0 0.0
    %818 = vmatpush.msra.mxu0 0.0
    %819 = vmatpush.msra.mxu0 0.0
    %820 = vmatpush.msra.mxu0 0.0
    %821 = vmatpush.msra.mxu0 0.0
    %822 = vmatpush.msra.mxu0 %v411
    %823 = vmatpush.msra.mxu0 %v410
    %824 = vmatpush.msra.mxu0 %v409
    %825 = vmatpush.msra.mxu0 %v408
    %826 = vmatmul.f32.gmra.mxu0 %v742
    %v827 = vpop.f32.mrf.mxu0
    %v828 = vadd.f32 0.0, %v827
    %829 = vdwg.mxu0
    %v830 = vadd.f32 %v809, %v828
    %v831 = vmul.f32 %v764, 0.5
    %v832 = vtanh.pop %v831
    %v833 = vmul.f32 %v832, 0.5
    %v834 = vadd.f32 %v833, 0.5
    %v835 = vmul.f32 %v786, 0.5
    %v836 = vtanh.pop %v835
    %v837 = vmul.f32 %v836, 0.5
    %v838 = vadd.f32 %v837, 0.5
    %v839 = vtanh.pop %v808
    %v840 = vmul.f32 %v830, 0.5
    %v841 = vtanh.pop %v840
    %v842 = vmul.f32 %v841, 0.5
    %v843 = vadd.f32 %v842, 0.5
    %v844 = vmul.f32 %v838, %v624
    %v845 = vmul.f32 %v834, %v839
    %v846 = vadd.f32 %v844, %v845
    %v847 = vtanh.pop %v846
    %v848 = vmul.f32 %v843, %v847
    %s849 = scalar_lea.vmem [#allocation4], 2
    %850 = vst.msk [vmem:[%s849] sm:$0x3] %vm627, %v739
    %s851 = scalar_lea.vmem [#allocation5], 12
    %852 = vst.msk [vmem:[%s851] sm:$0x3] %vm627, %v848
    %v853 = vld [vmem:[#allocation2 + $0x4] sm:$0x3]
    %v855 = vsel %vm122, %v739, 0
    %857 = vmatpush.msra.mxu0 0.0
    %858 = vmatpush.msra.mxu0 0.0
    %859 = vmatpush.msra.mxu0 0.0
    %860 = vmatpush.msra.mxu0 0.0
    %861 = vmatpush.msra.mxu0 0.0
    %862 = vmatpush.msra.mxu0 0.0
    %863 = vmatpush.msra.mxu0 0.0
    %864 = vmatpush.msra.mxu0 0.0
    %865 = vmatpush.msra.mxu0 0.0
    %866 = vmatpush.msra.mxu0 0.0
    %867 = vmatpush.msra.mxu0 0.0
    %868 = vmatpush.msra.mxu0 0.0
    %869 = vmatpush.msra.mxu0 %v377
    %870 = vmatpush.msra.mxu0 %v376
    %871 = vmatpush.msra.mxu0 %v375
    %872 = vmatpush.msra.mxu0 %v374
    %873 = vmatmul.f32.gmra.mxu0 %v855
    %v874 = vpop.f32.mrf.mxu0
    %v875 = vadd.f32 0.0, %v874
    %876 = vdwg.mxu0
    %v877 = vadd.f32 %v853, %v875
    %v878 = vld [vmem:[%s191 + $0x4] sm:$0x3]
    %879 = vmatpush.msra.mxu0 0.0
    %880 = vmatpush.msra.mxu0 0.0
    %881 = vmatpush.msra.mxu0 0.0
    %882 = vmatpush.msra.mxu0 0.0
    %883 = vmatpush.msra.mxu0 0.0
    %884 = vmatpush.msra.mxu0 0.0
    %885 = vmatpush.msra.mxu0 0.0
    %886 = vmatpush.msra.mxu0 0.0
    %887 = vmatpush.msra.mxu0 0.0
    %888 = vmatpush.msra.mxu0 0.0
    %889 = vmatpush.msra.mxu0 0.0
    %890 = vmatpush.msra.mxu0 0.0
    %891 = vmatpush.msra.mxu0 %v382
    %892 = vmatpush.msra.mxu0 %v381
    %893 = vmatpush.msra.mxu0 %v380
    %894 = vmatpush.msra.mxu0 %v379
    %895 = vmatmul.f32.gmra.mxu0 %v855
    %v896 = vpop.f32.mrf.mxu0
    %v897 = vadd.f32 0.0, %v896
    %898 = vdwg.mxu0
    %v899 = vadd.f32 %v878, %v897
    %v900 = vld [vmem:[%s263 + $0x4] sm:$0x3]
    %901 = vmatpush.msra.mxu0 0.0
    %902 = vmatpush.msra.mxu0 0.0
    %903 = vmatpush.msra.mxu0 0.0
    %904 = vmatpush.msra.mxu0 0.0
    %905 = vmatpush.msra.mxu0 0.0
    %906 = vmatpush.msra.mxu0 0.0
    %907 = vmatpush.msra.mxu0 0.0
    %908 = vmatpush.msra.mxu0 0.0
    %909 = vmatpush.msra.mxu0 0.0
    %910 = vmatpush.msra.mxu0 0.0
    %911 = vmatpush.msra.mxu0 0.0
    %912 = vmatpush.msra.mxu0 0.0
    %913 = vmatpush.msra.mxu0 %v387
    %914 = vmatpush.msra.mxu0 %v386
    %915 = vmatpush.msra.mxu0 %v385
    %916 = vmatpush.msra.mxu0 %v384
    %917 = vmatmul.f32.gmra.mxu0 %v855
    %v918 = vpop.f32.mrf.mxu0
    %v919 = vadd.f32 0.0, %v918
    %920 = vdwg.mxu0
    %v921 = vadd.f32 %v900, %v919
    %v922 = vld [vmem:[%s335 + $0x4] sm:$0x3]
    %923 = vmatpush.msra.mxu0 0.0
    %924 = vmatpush.msra.mxu0 0.0
    %925 = vmatpush.msra.mxu0 0.0
    %926 = vmatpush.msra.mxu0 0.0
    %927 = vmatpush.msra.mxu0 0.0
    %928 = vmatpush.msra.mxu0 0.0
    %929 = vmatpush.msra.mxu0 0.0
    %930 = vmatpush.msra.mxu0 0.0
    %931 = vmatpush.msra.mxu0 0.0
    %932 = vmatpush.msra.mxu0 0.0
    %933 = vmatpush.msra.mxu0 0.0
    %934 = vmatpush.msra.mxu0 0.0
    %935 = vmatpush.msra.mxu0 %v392
    %936 = vmatpush.msra.mxu0 %v391
    %937 = vmatpush.msra.mxu0 %v390
    %938 = vmatpush.msra.mxu0 %v389
    %939 = vmatmul.f32.gmra.mxu0 %v855
    %v940 = vpop.f32.mrf.mxu0
    %v941 = vadd.f32 0.0, %v940
    %942 = vdwg.mxu0
    %v943 = vadd.f32 %v922, %v941
    %v944 = vmul.f32 %v877, 0.5
    %v945 = vtanh.pop %v944
    %v946 = vmul.f32 %v945, 0.5
    %v947 = vadd.f32 %v946, 0.5
    %v948 = vmul.f32 %v899, 0.5
    %v949 = vtanh.pop %v948
    %v950 = vmul.f32 %v949, 0.5
    %v951 = vadd.f32 %v950, 0.5
    %v952 = vtanh.pop %v921
    %v953 = vmul.f32 %v943, 0.5
    %v954 = vtanh.pop %v953
    %v955 = vmul.f32 %v954, 0.5
    %v956 = vadd.f32 %v955, 0.5
    %v957 = vmul.f32 %v951, %v737
    %v958 = vmul.f32 %v947, %v952
    %v959 = vadd.f32 %v957, %v958
    %v960 = vtanh.pop %v959
    %v961 = vmul.f32 %v956, %v960
    %v962 = vld [vmem:[#allocation3 + $0xa] sm:$0x3]
    %v964 = vsel %vm122, %v848, 0
    %966 = vmatpush.msra.mxu0 0.0
    %967 = vmatpush.msra.mxu0 0.0
    %968 = vmatpush.msra.mxu0 0.0
    %969 = vmatpush.msra.mxu0 0.0
    %970 = vmatpush.msra.mxu0 0.0
    %971 = vmatpush.msra.mxu0 0.0
    %972 = vmatpush.msra.mxu0 0.0
    %973 = vmatpush.msra.mxu0 0.0
    %974 = vmatpush.msra.mxu0 0.0
    %975 = vmatpush.msra.mxu0 0.0
    %976 = vmatpush.msra.mxu0 0.0
    %977 = vmatpush.msra.mxu0 0.0
    %978 = vmatpush.msra.mxu0 %v396
    %979 = vmatpush.msra.mxu0 %v395
    %980 = vmatpush.msra.mxu0 %v394
    %981 = vmatpush.msra.mxu0 %v393
    %982 = vmatmul.f32.gmra.mxu0 %v964
    %v983 = vpop.f32.mrf.mxu0
    %v984 = vadd.f32 0.0, %v983
    %985 = vdwg.mxu0
    %v986 = vadd.f32 %v962, %v984
    %v987 = vld [vmem:[%s227 + $0xa] sm:$0x3]
    %988 = vmatpush.msra.mxu0 0.0
    %989 = vmatpush.msra.mxu0 0.0
    %990 = vmatpush.msra.mxu0 0.0
    %991 = vmatpush.msra.mxu0 0.0
    %992 = vmatpush.msra.mxu0 0.0
    %993 = vmatpush.msra.mxu0 0.0
    %994 = vmatpush.msra.mxu0 0.0
    %995 = vmatpush.msra.mxu0 0.0
    %996 = vmatpush.msra.mxu0 0.0
    %997 = vmatpush.msra.mxu0 0.0
    %998 = vmatpush.msra.mxu0 0.0
    %999 = vmatpush.msra.mxu0 0.0
    %1000 = vmatpush.msra.mxu0 %v401
    %1001 = vmatpush.msra.mxu0 %v400
    %1002 = vmatpush.msra.mxu0 %v399
    %1003 = vmatpush.msra.mxu0 %v398
    %1004 = vmatmul.f32.gmra.mxu0 %v964
    %v1005 = vpop.f32.mrf.mxu0
    %v1006 = vadd.f32 0.0, %v1005
    %1007 = vdwg.mxu0
    %v1008 = vadd.f32 %v987, %v1006
    %v1009 = vld [vmem:[%s299 + $0xa] sm:$0x3]
    %1010 = vmatpush.msra.mxu0 0.0
    %1011 = vmatpush.msra.mxu0 0.0
    %1012 = vmatpush.msra.mxu0 0.0
    %1013 = vmatpush.msra.mxu0 0.0
    %1014 = vmatpush.msra.mxu0 0.0
    %1015 = vmatpush.msra.mxu0 0.0
    %1016 = vmatpush.msra.mxu0 0.0
    %1017 = vmatpush.msra.mxu0 0.0
    %1018 = vmatpush.msra.mxu0 0.0
    %1019 = vmatpush.msra.mxu0 0.0
    %1020 = vmatpush.msra.mxu0 0.0
    %1021 = vmatpush.msra.mxu0 0.0
    %1022 = vmatpush.msra.mxu0 %v406
    %1023 = vmatpush.msra.mxu0 %v405
    %1024 = vmatpush.msra.mxu0 %v404
    %1025 = vmatpush.msra.mxu0 %v403
    %1026 = vmatmul.f32.gmra.mxu0 %v964
    %v1027 = vpop.f32.mrf.mxu0
    %v1028 = vadd.f32 0.0, %v1027
    %1029 = vdwg.mxu0
    %v1030 = vadd.f32 %v1009, %v1028
    %v1031 = vld [vmem:[%s371 + $0xa] sm:$0x3]
    %1032 = vmatpush.msra.mxu0 0.0
    %1033 = vmatpush.msra.mxu0 0.0
    %1034 = vmatpush.msra.mxu0 0.0
    %1035 = vmatpush.msra.mxu0 0.0
    %1036 = vmatpush.msra.mxu0 0.0
    %1037 = vmatpush.msra.mxu0 0.0
    %1038 = vmatpush.msra.mxu0 0.0
    %1039 = vmatpush.msra.mxu0 0.0
    %1040 = vmatpush.msra.mxu0 0.0
    %1041 = vmatpush.msra.mxu0 0.0
    %1042 = vmatpush.msra.mxu0 0.0
    %1043 = vmatpush.msra.mxu0 0.0
    %1044 = vmatpush.msra.mxu0 %v411
    %1045 = vmatpush.msra.mxu0 %v410
    %1046 = vmatpush.msra.mxu0 %v409
    %1047 = vmatpush.msra.mxu0 %v408
    %1048 = vmatmul.f32.gmra.mxu0 %v964
    %v1049 = vpop.f32.mrf.mxu0
    %v1050 = vadd.f32 0.0, %v1049
    %1051 = vdwg.mxu0
    %v1052 = vadd.f32 %v1031, %v1050
    %v1053 = vmul.f32 %v986, 0.5
    %v1054 = vtanh.pop %v1053
    %v1055 = vmul.f32 %v1054, 0.5
    %v1056 = vadd.f32 %v1055, 0.5
    %v1057 = vmul.f32 %v1008, 0.5
    %v1058 = vtanh.pop %v1057
    %v1059 = vmul.f32 %v1058, 0.5
    %v1060 = vadd.f32 %v1059, 0.5
    %v1061 = vtanh.pop %v1030
    %v1062 = vmul.f32 %v1052, 0.5
    %v1063 = vtanh.pop %v1062
    %v1064 = vmul.f32 %v1063, 0.5
    %v1065 = vadd.f32 %v1064, 0.5
    %v1066 = vmul.f32 %v1060, %v846
    %v1067 = vmul.f32 %v1056, %v1061
    %v1068 = vadd.f32 %v1066, %v1067
    %v1069 = vtanh.pop %v1068
    %v1070 = vmul.f32 %v1065, %v1069
    %s1071 = scalar_lea.vmem [#allocation4], 4
    %1072 = vst.msk [vmem:[%s1071] sm:$0x3] %vm627, %v961
    %s1073 = scalar_lea.vmem [#allocation5], 10
    %1074 = vst.msk [vmem:[%s1073] sm:$0x3] %vm627, %v1070
    %v1075 = vld [vmem:[#allocation2 + $0x6] sm:$0x3]
    %v1077 = vsel %vm122, %v961, 0
    %1079 = vmatpush.msra.mxu0 0.0
    %1080 = vmatpush.msra.mxu0 0.0
    %1081 = vmatpush.msra.mxu0 0.0
    %1082 = vmatpush.msra.mxu0 0.0
    %1083 = vmatpush.msra.mxu0 0.0
    %1084 = vmatpush.msra.mxu0 0.0
    %1085 = vmatpush.msra.mxu0 0.0
    %1086 = vmatpush.msra.mxu0 0.0
    %1087 = vmatpush.msra.mxu0 0.0
    %1088 = vmatpush.msra.mxu0 0.0
    %1089 = vmatpush.msra.mxu0 0.0
    %1090 = vmatpush.msra.mxu0 0.0
    %1091 = vmatpush.msra.mxu0 %v377
    %1092 = vmatpush.msra.mxu0 %v376
    %1093 = vmatpush.msra.mxu0 %v375
    %1094 = vmatpush.msra.mxu0 %v374
    %1095 = vmatmul.f32.gmra.mxu0 %v1077
    %v1096 = vpop.f32.mrf.mxu0
    %v1097 = vadd.f32 0.0, %v1096
    %1098 = vdwg.mxu0
    %v1099 = vadd.f32 %v1075, %v1097
    %v1100 = vld [vmem:[%s191 + $0x6] sm:$0x3]
    %1101 = vmatpush.msra.mxu0 0.0
    %1102 = vmatpush.msra.mxu0 0.0
    %1103 = vmatpush.msra.mxu0 0.0
    %1104 = vmatpush.msra.mxu0 0.0
    %1105 = vmatpush.msra.mxu0 0.0
    %1106 = vmatpush.msra.mxu0 0.0
    %1107 = vmatpush.msra.mxu0 0.0
    %1108 = vmatpush.msra.mxu0 0.0
    %1109 = vmatpush.msra.mxu0 0.0
    %1110 = vmatpush.msra.mxu0 0.0
    %1111 = vmatpush.msra.mxu0 0.0
    %1112 = vmatpush.msra.mxu0 0.0
    %1113 = vmatpush.msra.mxu0 %v382
    %1114 = vmatpush.msra.mxu0 %v381
    %1115 = vmatpush.msra.mxu0 %v380
    %1116 = vmatpush.msra.mxu0 %v379
    %1117 = vmatmul.f32.gmra.mxu0 %v1077
    %v1118 = vpop.f32.mrf.mxu0
    %v1119 = vadd.f32 0.0, %v1118
    %1120 = vdwg.mxu0
    %v1121 = vadd.f32 %v1100, %v1119
    %v1122 = vld [vmem:[%s263 + $0x6] sm:$0x3]
    %1123 = vmatpush.msra.mxu0 0.0
    %1124 = vmatpush.msra.mxu0 0.0
    %1125 = vmatpush.msra.mxu0 0.0
    %1126 = vmatpush.msra.mxu0 0.0
    %1127 = vmatpush.msra.mxu0 0.0
    %1128 = vmatpush.msra.mxu0 0.0
    %1129 = vmatpush.msra.mxu0 0.0
    %1130 = vmatpush.msra.mxu0 0.0
    %1131 = vmatpush.msra.mxu0 0.0
    %1132 = vmatpush.msra.mxu0 0.0
    %1133 = vmatpush.msra.mxu0 0.0
    %1134 = vmatpush.msra.mxu0 0.0
    %1135 = vmatpush.msra.mxu0 %v387
    %1136 = vmatpush.msra.mxu0 %v386
    %1137 = vmatpush.msra.mxu0 %v385
    %1138 = vmatpush.msra.mxu0 %v384
    %1139 = vmatmul.f32.gmra.mxu0 %v1077
    %v1140 = vpop.f32.mrf.mxu0
    %v1141 = vadd.f32 0.0, %v1140
    %1142 = vdwg.mxu0
    %v1143 = vadd.f32 %v1122, %v1141
    %v1144 = vld [vmem:[%s335 + $0x6] sm:$0x3]
    %1145 = vmatpush.msra.mxu0 0.0
    %1146 = vmatpush.msra.mxu0 0.0
    %1147 = vmatpush.msra.mxu0 0.0
    %1148 = vmatpush.msra.mxu0 0.0
    %1149 = vmatpush.msra.mxu0 0.0
    %1150 = vmatpush.msra.mxu0 0.0
    %1151 = vmatpush.msra.mxu0 0.0
    %1152 = vmatpush.msra.mxu0 0.0
    %1153 = vmatpush.msra.mxu0 0.0
    %1154 = vmatpush.msra.mxu0 0.0
    %1155 = vmatpush.msra.mxu0 0.0
    %1156 = vmatpush.msra.mxu0 0.0
    %1157 = vmatpush.msra.mxu0 %v392
    %1158 = vmatpush.msra.mxu0 %v391
    %1159 = vmatpush.msra.mxu0 %v390
    %1160 = vmatpush.msra.mxu0 %v389
    %1161 = vmatmul.f32.gmra.mxu0 %v1077
    %v1162 = vpop.f32.mrf.mxu0
    %v1163 = vadd.f32 0.0, %v1162
    %1164 = vdwg.mxu0
    %v1165 = vadd.f32 %v1144, %v1163
    %v1166 = vmul.f32 %v1099, 0.5
    %v1167 = vtanh.pop %v1166
    %v1168 = vmul.f32 %v1167, 0.5
    %v1169 = vadd.f32 %v1168, 0.5
    %v1170 = vmul.f32 %v1121, 0.5
    %v1171 = vtanh.pop %v1170
    %v1172 = vmul.f32 %v1171, 0.5
    %v1173 = vadd.f32 %v1172, 0.5
    %v1174 = vtanh.pop %v1143
    %v1175 = vmul.f32 %v1165, 0.5
    %v1176 = vtanh.pop %v1175
    %v1177 = vmul.f32 %v1176, 0.5
    %v1178 = vadd.f32 %v1177, 0.5
    %v1179 = vmul.f32 %v1173, %v959
    %v1180 = vmul.f32 %v1169, %v1174
    %v1181 = vadd.f32 %v1179, %v1180
    %v1182 = vtanh.pop %v1181
    %v1183 = vmul.f32 %v1178, %v1182
    %v1184 = vld [vmem:[#allocation3 + $0x8] sm:$0x3]
    %v1186 = vsel %vm122, %v1070, 0
    %1188 = vmatpush.msra.mxu0 0.0
    %1189 = vmatpush.msra.mxu0 0.0
    %1190 = vmatpush.msra.mxu0 0.0
    %1191 = vmatpush.msra.mxu0 0.0
    %1192 = vmatpush.msra.mxu0 0.0
    %1193 = vmatpush.msra.mxu0 0.0
    %1194 = vmatpush.msra.mxu0 0.0
    %1195 = vmatpush.msra.mxu0 0.0
    %1196 = vmatpush.msra.mxu0 0.0
    %1197 = vmatpush.msra.mxu0 0.0
    %1198 = vmatpush.msra.mxu0 0.0
    %1199 = vmatpush.msra.mxu0 0.0
    %1200 = vmatpush.msra.mxu0 %v396
    %1201 = vmatpush.msra.mxu0 %v395
    %1202 = vmatpush.msra.mxu0 %v394
    %1203 = vmatpush.msra.mxu0 %v393
    %1204 = vmatmul.f32.gmra.mxu0 %v1186
    %v1205 = vpop.f32.mrf.mxu0
    %v1206 = vadd.f32 0.0, %v1205
    %1207 = vdwg.mxu0
    %v1208 = vadd.f32 %v1184, %v1206
    %v1209 = vld [vmem:[%s227 + $0x8] sm:$0x3]
    %1210 = vmatpush.msra.mxu0 0.0
    %1211 = vmatpush.msra.mxu0 0.0
    %1212 = vmatpush.msra.mxu0 0.0
    %1213 = vmatpush.msra.mxu0 0.0
    %1214 = vmatpush.msra.mxu0 0.0
    %1215 = vmatpush.msra.mxu0 0.0
    %1216 = vmatpush.msra.mxu0 0.0
    %1217 = vmatpush.msra.mxu0 0.0
    %1218 = vmatpush.msra.mxu0 0.0
    %1219 = vmatpush.msra.mxu0 0.0
    %1220 = vmatpush.msra.mxu0 0.0
    %1221 = vmatpush.msra.mxu0 0.0
    %1222 = vmatpush.msra.mxu0 %v401
    %1223 = vmatpush.msra.mxu0 %v400
    %1224 = vmatpush.msra.mxu0 %v399
    %1225 = vmatpush.msra.mxu0 %v398
    %1226 = vmatmul.f32.gmra.mxu0 %v1186
    %v1227 = vpop.f32.mrf.mxu0
    %v1228 = vadd.f32 0.0, %v1227
    %1229 = vdwg.mxu0
    %v1230 = vadd.f32 %v1209, %v1228
    %v1231 = vld [vmem:[%s299 + $0x8] sm:$0x3]
    %1232 = vmatpush.msra.mxu0 0.0
    %1233 = vmatpush.msra.mxu0 0.0
    %1234 = vmatpush.msra.mxu0 0.0
    %1235 = vmatpush.msra.mxu0 0.0
    %1236 = vmatpush.msra.mxu0 0.0
    %1237 = vmatpush.msra.mxu0 0.0
    %1238 = vmatpush.msra.mxu0 0.0
    %1239 = vmatpush.msra.mxu0 0.0
    %1240 = vmatpush.msra.mxu0 0.0
    %1241 = vmatpush.msra.mxu0 0.0
    %1242 = vmatpush.msra.mxu0 0.0
    %1243 = vmatpush.msra.mxu0 0.0
    %1244 = vmatpush.msra.mxu0 %v406
    %1245 = vmatpush.msra.mxu0 %v405
    %1246 = vmatpush.msra.mxu0 %v404
    %1247 = vmatpush.msra.mxu0 %v403
    %1248 = vmatmul.f32.gmra.mxu0 %v1186
    %v1249 = vpop.f32.mrf.mxu0
    %v1250 = vadd.f32 0.0, %v1249
    %1251 = vdwg.mxu0
    %v1252 = vadd.f32 %v1231, %v1250
    %v1253 = vld [vmem:[%s371 + $0x8] sm:$0x3]
    %1254 = vmatpush.msra.mxu0 0.0
    %1255 = vmatpush.msra.mxu0 0.0
    %1256 = vmatpush.msra.mxu0 0.0
    %1257 = vmatpush.msra.mxu0 0.0
    %1258 = vmatpush.msra.mxu0 0.0
    %1259 = vmatpush.msra.mxu0 0.0
    %1260 = vmatpush.msra.mxu0 0.0
    %1261 = vmatpush.msra.mxu0 0.0
    %1262 = vmatpush.msra.mxu0 0.0
    %1263 = vmatpush.msra.mxu0 0.0
    %1264 = vmatpush.msra.mxu0 0.0
    %1265 = vmatpush.msra.mxu0 0.0
    %1266 = vmatpush.msra.mxu0 %v411
    %1267 = vmatpush.msra.mxu0 %v410
    %1268 = vmatpush.msra.mxu0 %v409
    %1269 = vmatpush.msra.mxu0 %v408
    %1270 = vmatmul.f32.gmra.mxu0 %v1186
    %v1271 = vpop.f32.mrf.mxu0
    %v1272 = vadd.f32 0.0, %v1271
    %1273 = vdwg.mxu0
    %v1274 = vadd.f32 %v1253, %v1272
    %v1275 = vmul.f32 %v1208, 0.5
    %v1276 = vtanh.pop %v1275
    %v1277 = vmul.f32 %v1276, 0.5
    %v1278 = vadd.f32 %v1277, 0.5
    %v1279 = vmul.f32 %v1230, 0.5
    %v1280 = vtanh.pop %v1279
    %v1281 = vmul.f32 %v1280, 0.5
    %v1282 = vadd.f32 %v1281, 0.5
    %v1283 = vtanh.pop %v1252
    %v1284 = vmul.f32 %v1274, 0.5
    %v1285 = vtanh.pop %v1284
    %v1286 = vmul.f32 %v1285, 0.5
    %v1287 = vadd.f32 %v1286, 0.5
    %v1288 = vmul.f32 %v1282, %v1068
    %v1289 = vmul.f32 %v1278, %v1283
    %v1290 = vadd.f32 %v1288, %v1289
    %v1291 = vtanh.pop %v1290
    %v1292 = vmul.f32 %v1287, %v1291
    %s1293 = scalar_lea.vmem [#allocation4], 6
    %1294 = vst.msk [vmem:[%s1293] sm:$0x3] %vm627, %v1183
    %s1295 = scalar_lea.vmem [#allocation5], 8
    %1296 = vst.msk [vmem:[%s1295] sm:$0x3] %vm627, %v1292
    %v1297 = vld [vmem:[#allocation2 + $0x8] sm:$0x3]
    %v1299 = vsel %vm122, %v1183, 0
    %1301 = vmatpush.msra.mxu0 0.0
    %1302 = vmatpush.msra.mxu0 0.0
    %1303 = vmatpush.msra.mxu0 0.0
    %1304 = vmatpush.msra.mxu0 0.0
    %1305 = vmatpush.msra.mxu0 0.0
    %1306 = vmatpush.msra.mxu0 0.0
    %1307 = vmatpush.msra.mxu0 0.0
    %1308 = vmatpush.msra.mxu0 0.0
    %1309 = vmatpush.msra.mxu0 0.0
    %1310 = vmatpush.msra.mxu0 0.0
    %1311 = vmatpush.msra.mxu0 0.0
    %1312 = vmatpush.msra.mxu0 0.0
    %1313 = vmatpush.msra.mxu0 %v377
    %1314 = vmatpush.msra.mxu0 %v376
    %1315 = vmatpush.msra.mxu0 %v375
    %1316 = vmatpush.msra.mxu0 %v374
    %1317 = vmatmul.f32.gmra.mxu0 %v1299
    %v1318 = vpop.f32.mrf.mxu0
    %v1319 = vadd.f32 0.0, %v1318
    %1320 = vdwg.mxu0
    %v1321 = vadd.f32 %v1297, %v1319
    %v1322 = vld [vmem:[%s191 + $0x8] sm:$0x3]
    %1323 = vmatpush.msra.mxu0 0.0
    %1324 = vmatpush.msra.mxu0 0.0
    %1325 = vmatpush.msra.mxu0 0.0
    %1326 = vmatpush.msra.mxu0 0.0
    %1327 = vmatpush.msra.mxu0 0.0
    %1328 = vmatpush.msra.mxu0 0.0
    %1329 = vmatpush.msra.mxu0 0.0
    %1330 = vmatpush.msra.mxu0 0.0
    %1331 = vmatpush.msra.mxu0 0.0
    %1332 = vmatpush.msra.mxu0 0.0
    %1333 = vmatpush.msra.mxu0 0.0
    %1334 = vmatpush.msra.mxu0 0.0
    %1335 = vmatpush.msra.mxu0 %v382
    %1336 = vmatpush.msra.mxu0 %v381
    %1337 = vmatpush.msra.mxu0 %v380
    %1338 = vmatpush.msra.mxu0 %v379
    %1339 = vmatmul.f32.gmra.mxu0 %v1299
    %v1340 = vpop.f32.mrf.mxu0
    %v1341 = vadd.f32 0.0, %v1340
    %1342 = vdwg.mxu0
    %v1343 = vadd.f32 %v1322, %v1341
    %v1344 = vld [vmem:[%s263 + $0x8] sm:$0x3]
    %1345 = vmatpush.msra.mxu0 0.0
    %1346 = vmatpush.msra.mxu0 0.0
    %1347 = vmatpush.msra.mxu0 0.0
    %1348 = vmatpush.msra.mxu0 0.0
    %1349 = vmatpush.msra.mxu0 0.0
    %1350 = vmatpush.msra.mxu0 0.0
    %1351 = vmatpush.msra.mxu0 0.0
    %1352 = vmatpush.msra.mxu0 0.0
    %1353 = vmatpush.msra.mxu0 0.0
    %1354 = vmatpush.msra.mxu0 0.0
    %1355 = vmatpush.msra.mxu0 0.0
    %1356 = vmatpush.msra.mxu0 0.0
    %1357 = vmatpush.msra.mxu0 %v387
    %1358 = vmatpush.msra.mxu0 %v386
    %1359 = vmatpush.msra.mxu0 %v385
    %1360 = vmatpush.msra.mxu0 %v384
    %1361 = vmatmul.f32.gmra.mxu0 %v1299
    %v1362 = vpop.f32.mrf.mxu0
    %v1363 = vadd.f32 0.0, %v1362
    %1364 = vdwg.mxu0
    %v1365 = vadd.f32 %v1344, %v1363
    %v1366 = vld [vmem:[%s335 + $0x8] sm:$0x3]
    %1367 = vmatpush.msra.mxu0 0.0
    %1368 = vmatpush.msra.mxu0 0.0
    %1369 = vmatpush.msra.mxu0 0.0
    %1370 = vmatpush.msra.mxu0 0.0
    %1371 = vmatpush.msra.mxu0 0.0
    %1372 = vmatpush.msra.mxu0 0.0
    %1373 = vmatpush.msra.mxu0 0.0
    %1374 = vmatpush.msra.mxu0 0.0
    %1375 = vmatpush.msra.mxu0 0.0
    %1376 = vmatpush.msra.mxu0 0.0
    %1377 = vmatpush.msra.mxu0 0.0
    %1378 = vmatpush.msra.mxu0 0.0
    %1379 = vmatpush.msra.mxu0 %v392
    %1380 = vmatpush.msra.mxu0 %v391
    %1381 = vmatpush.msra.mxu0 %v390
    %1382 = vmatpush.msra.mxu0 %v389
    %1383 = vmatmul.f32.gmra.mxu0 %v1299
    %v1384 = vpop.f32.mrf.mxu0
    %v1385 = vadd.f32 0.0, %v1384
    %1386 = vdwg.mxu0
    %v1387 = vadd.f32 %v1366, %v1385
    %v1388 = vmul.f32 %v1321, 0.5
    %v1389 = vtanh.pop %v1388
    %v1390 = vmul.f32 %v1389, 0.5
    %v1391 = vadd.f32 %v1390, 0.5
    %v1392 = vmul.f32 %v1343, 0.5
    %v1393 = vtanh.pop %v1392
    %v1394 = vmul.f32 %v1393, 0.5
    %v1395 = vadd.f32 %v1394, 0.5
    %v1396 = vtanh.pop %v1365
    %v1397 = vmul.f32 %v1387, 0.5
    %v1398 = vtanh.pop %v1397
    %v1399 = vmul.f32 %v1398, 0.5
    %v1400 = vadd.f32 %v1399, 0.5
    %v1401 = vmul.f32 %v1395, %v1181
    %v1402 = vmul.f32 %v1391, %v1396
    %v1403 = vadd.f32 %v1401, %v1402
    %v1404 = vtanh.pop %v1403
    %v1405 = vmul.f32 %v1400, %v1404
    %v1406 = vld [vmem:[#allocation3 + $0x6] sm:$0x3]
    %v1408 = vsel %vm122, %v1292, 0
    %1410 = vmatpush.msra.mxu0 0.0
    %1411 = vmatpush.msra.mxu0 0.0
    %1412 = vmatpush.msra.mxu0 0.0
    %1413 = vmatpush.msra.mxu0 0.0
    %1414 = vmatpush.msra.mxu0 0.0
    %1415 = vmatpush.msra.mxu0 0.0
    %1416 = vmatpush.msra.mxu0 0.0
    %1417 = vmatpush.msra.mxu0 0.0
    %1418 = vmatpush.msra.mxu0 0.0
    %1419 = vmatpush.msra.mxu0 0.0
    %1420 = vmatpush.msra.mxu0 0.0
    %1421 = vmatpush.msra.mxu0 0.0
    %1422 = vmatpush.msra.mxu0 %v396
    %1423 = vmatpush.msra.mxu0 %v395
    %1424 = vmatpush.msra.mxu0 %v394
    %1425 = vmatpush.msra.mxu0 %v393
    %1426 = vmatmul.f32.gmra.mxu0 %v1408
    %v1427 = vpop.f32.mrf.mxu0
    %v1428 = vadd.f32 0.0, %v1427
    %1429 = vdwg.mxu0
    %v1430 = vadd.f32 %v1406, %v1428
    %v1431 = vld [vmem:[%s227 + $0x6] sm:$0x3]
    %1432 = vmatpush.msra.mxu0 0.0
    %1433 = vmatpush.msra.mxu0 0.0
    %1434 = vmatpush.msra.mxu0 0.0
    %1435 = vmatpush.msra.mxu0 0.0
    %1436 = vmatpush.msra.mxu0 0.0
    %1437 = vmatpush.msra.mxu0 0.0
    %1438 = vmatpush.msra.mxu0 0.0
    %1439 = vmatpush.msra.mxu0 0.0
    %1440 = vmatpush.msra.mxu0 0.0
    %1441 = vmatpush.msra.mxu0 0.0
    %1442 = vmatpush.msra.mxu0 0.0
    %1443 = vmatpush.msra.mxu0 0.0
    %1444 = vmatpush.msra.mxu0 %v401
    %1445 = vmatpush.msra.mxu0 %v400
    %1446 = vmatpush.msra.mxu0 %v399
    %1447 = vmatpush.msra.mxu0 %v398
    %1448 = vmatmul.f32.gmra.mxu0 %v1408
    %v1449 = vpop.f32.mrf.mxu0
    %v1450 = vadd.f32 0.0, %v1449
    %1451 = vdwg.mxu0
    %v1452 = vadd.f32 %v1431, %v1450
    %v1453 = vld [vmem:[%s299 + $0x6] sm:$0x3]
    %1454 = vmatpush.msra.mxu0 0.0
    %1455 = vmatpush.msra.mxu0 0.0
    %1456 = vmatpush.msra.mxu0 0.0
    %1457 = vmatpush.msra.mxu0 0.0
    %1458 = vmatpush.msra.mxu0 0.0
    %1459 = vmatpush.msra.mxu0 0.0
    %1460 = vmatpush.msra.mxu0 0.0
    %1461 = vmatpush.msra.mxu0 0.0
    %1462 = vmatpush.msra.mxu0 0.0
    %1463 = vmatpush.msra.mxu0 0.0
    %1464 = vmatpush.msra.mxu0 0.0
    %1465 = vmatpush.msra.mxu0 0.0
    %1466 = vmatpush.msra.mxu0 %v406
    %1467 = vmatpush.msra.mxu0 %v405
    %1468 = vmatpush.msra.mxu0 %v404
    %1469 = vmatpush.msra.mxu0 %v403
    %1470 = vmatmul.f32.gmra.mxu0 %v1408
    %v1471 = vpop.f32.mrf.mxu0
    %v1472 = vadd.f32 0.0, %v1471
    %1473 = vdwg.mxu0
    %v1474 = vadd.f32 %v1453, %v1472
    %v1475 = vld [vmem:[%s371 + $0x6] sm:$0x3]
    %1476 = vmatpush.msra.mxu0 0.0
    %1477 = vmatpush.msra.mxu0 0.0
    %1478 = vmatpush.msra.mxu0 0.0
    %1479 = vmatpush.msra.mxu0 0.0
    %1480 = vmatpush.msra.mxu0 0.0
    %1481 = vmatpush.msra.mxu0 0.0
    %1482 = vmatpush.msra.mxu0 0.0
    %1483 = vmatpush.msra.mxu0 0.0
    %1484 = vmatpush.msra.mxu0 0.0
    %1485 = vmatpush.msra.mxu0 0.0
    %1486 = vmatpush.msra.mxu0 0.0
    %1487 = vmatpush.msra.mxu0 0.0
    %1488 = vmatpush.msra.mxu0 %v411
    %1489 = vmatpush.msra.mxu0 %v410
    %1490 = vmatpush.msra.mxu0 %v409
    %1491 = vmatpush.msra.mxu0 %v408
    %1492 = vmatmul.f32.gmra.mxu0 %v1408
    %v1493 = vpop.f32.mrf.mxu0
    %v1494 = vadd.f32 0.0, %v1493
    %1495 = vdwg.mxu0
    %v1496 = vadd.f32 %v1475, %v1494
    %v1497 = vmul.f32 %v1430, 0.5
    %v1498 = vtanh.pop %v1497
    %v1499 = vmul.f32 %v1498, 0.5
    %v1500 = vadd.f32 %v1499, 0.5
    %v1501 = vmul.f32 %v1452, 0.5
    %v1502 = vtanh.pop %v1501
    %v1503 = vmul.f32 %v1502, 0.5
    %v1504 = vadd.f32 %v1503, 0.5
    %v1505 = vtanh.pop %v1474
    %v1506 = vmul.f32 %v1496, 0.5
    %v1507 = vtanh.pop %v1506
    %v1508 = vmul.f32 %v1507, 0.5
    %v1509 = vadd.f32 %v1508, 0.5
    %v1510 = vmul.f32 %v1504, %v1290
    %v1511 = vmul.f32 %v1500, %v1505
    %v1512 = vadd.f32 %v1510, %v1511
    %v1513 = vtanh.pop %v1512
    %v1514 = vmul.f32 %v1509, %v1513
    %s1515 = scalar_lea.vmem [#allocation4], 8
    %1516 = vst.msk [vmem:[%s1515] sm:$0x3] %vm627, %v1405
    %s1517 = scalar_lea.vmem [#allocation5], 6
    %1518 = vst.msk [vmem:[%s1517] sm:$0x3] %vm627, %v1514
    %v1519 = vld [vmem:[#allocation2 + $0xa] sm:$0x3]
    %v1521 = vsel %vm122, %v1405, 0
    %1523 = vmatpush.msra.mxu0 0.0
    %1524 = vmatpush.msra.mxu0 0.0
    %1525 = vmatpush.msra.mxu0 0.0
    %1526 = vmatpush.msra.mxu0 0.0
    %1527 = vmatpush.msra.mxu0 0.0
    %1528 = vmatpush.msra.mxu0 0.0
    %1529 = vmatpush.msra.mxu0 0.0
    %1530 = vmatpush.msra.mxu0 0.0
    %1531 = vmatpush.msra.mxu0 0.0
    %1532 = vmatpush.msra.mxu0 0.0
    %1533 = vmatpush.msra.mxu0 0.0
    %1534 = vmatpush.msra.mxu0 0.0
    %1535 = vmatpush.msra.mxu0 %v377
    %1536 = vmatpush.msra.mxu0 %v376
    %1537 = vmatpush.msra.mxu0 %v375
    %1538 = vmatpush.msra.mxu0 %v374
    %1539 = vmatmul.f32.gmra.mxu0 %v1521
    %v1540 = vpop.f32.mrf.mxu0
    %v1541 = vadd.f32 0.0, %v1540
    %1542 = vdwg.mxu0
    %v1543 = vadd.f32 %v1519, %v1541
    %v1544 = vld [vmem:[%s191 + $0xa] sm:$0x3]
    %1545 = vmatpush.msra.mxu0 0.0
    %1546 = vmatpush.msra.mxu0 0.0
    %1547 = vmatpush.msra.mxu0 0.0
    %1548 = vmatpush.msra.mxu0 0.0
    %1549 = vmatpush.msra.mxu0 0.0
    %1550 = vmatpush.msra.mxu0 0.0
    %1551 = vmatpush.msra.mxu0 0.0
    %1552 = vmatpush.msra.mxu0 0.0
    %1553 = vmatpush.msra.mxu0 0.0
    %1554 = vmatpush.msra.mxu0 0.0
    %1555 = vmatpush.msra.mxu0 0.0
    %1556 = vmatpush.msra.mxu0 0.0
    %1557 = vmatpush.msra.mxu0 %v382
    %1558 = vmatpush.msra.mxu0 %v381
    %1559 = vmatpush.msra.mxu0 %v380
    %1560 = vmatpush.msra.mxu0 %v379
    %1561 = vmatmul.f32.gmra.mxu0 %v1521
    %v1562 = vpop.f32.mrf.mxu0
    %v1563 = vadd.f32 0.0, %v1562
    %1564 = vdwg.mxu0
    %v1565 = vadd.f32 %v1544, %v1563
    %v1566 = vld [vmem:[%s263 + $0xa] sm:$0x3]
    %1567 = vmatpush.msra.mxu0 0.0
    %1568 = vmatpush.msra.mxu0 0.0
    %1569 = vmatpush.msra.mxu0 0.0
    %1570 = vmatpush.msra.mxu0 0.0
    %1571 = vmatpush.msra.mxu0 0.0
    %1572 = vmatpush.msra.mxu0 0.0
    %1573 = vmatpush.msra.mxu0 0.0
    %1574 = vmatpush.msra.mxu0 0.0
    %1575 = vmatpush.msra.mxu0 0.0
    %1576 = vmatpush.msra.mxu0 0.0
    %1577 = vmatpush.msra.mxu0 0.0
    %1578 = vmatpush.msra.mxu0 0.0
    %1579 = vmatpush.msra.mxu0 %v387
    %1580 = vmatpush.msra.mxu0 %v386
    %1581 = vmatpush.msra.mxu0 %v385
    %1582 = vmatpush.msra.mxu0 %v384
    %1583 = vmatmul.f32.gmra.mxu0 %v1521
    %v1584 = vpop.f32.mrf.mxu0
    %v1585 = vadd.f32 0.0, %v1584
    %1586 = vdwg.mxu0
    %v1587 = vadd.f32 %v1566, %v1585
    %v1588 = vld [vmem:[%s335 + $0xa] sm:$0x3]
    %1589 = vmatpush.msra.mxu0 0.0
    %1590 = vmatpush.msra.mxu0 0.0
    %1591 = vmatpush.msra.mxu0 0.0
    %1592 = vmatpush.msra.mxu0 0.0
    %1593 = vmatpush.msra.mxu0 0.0
    %1594 = vmatpush.msra.mxu0 0.0
    %1595 = vmatpush.msra.mxu0 0.0
    %1596 = vmatpush.msra.mxu0 0.0
    %1597 = vmatpush.msra.mxu0 0.0
    %1598 = vmatpush.msra.mxu0 0.0
    %1599 = vmatpush.msra.mxu0 0.0
    %1600 = vmatpush.msra.mxu0 0.0
    %1601 = vmatpush.msra.mxu0 %v392
    %1602 = vmatpush.msra.mxu0 %v391
    %1603 = vmatpush.msra.mxu0 %v390
    %1604 = vmatpush.msra.mxu0 %v389
    %1605 = vmatmul.f32.gmra.mxu0 %v1521
    %v1606 = vpop.f32.mrf.mxu0
    %v1607 = vadd.f32 0.0, %v1606
    %1608 = vdwg.mxu0
    %v1609 = vadd.f32 %v1588, %v1607
    %v1610 = vmul.f32 %v1543, 0.5
    %v1611 = vtanh.pop %v1610
    %v1612 = vmul.f32 %v1611, 0.5
    %v1613 = vadd.f32 %v1612, 0.5
    %v1614 = vmul.f32 %v1565, 0.5
    %v1615 = vtanh.pop %v1614
    %v1616 = vmul.f32 %v1615, 0.5
    %v1617 = vadd.f32 %v1616, 0.5
    %v1618 = vtanh.pop %v1587
    %v1619 = vmul.f32 %v1609, 0.5
    %v1620 = vtanh.pop %v1619
    %v1621 = vmul.f32 %v1620, 0.5
    %v1622 = vadd.f32 %v1621, 0.5
    %v1623 = vmul.f32 %v1617, %v1403
    %v1624 = vmul.f32 %v1613, %v1618
    %v1625 = vadd.f32 %v1623, %v1624
    %v1626 = vtanh.pop %v1625
    %v1627 = vmul.f32 %v1622, %v1626
    %v1628 = vld [vmem:[#allocation3 + $0x4] sm:$0x3]
    %v1630 = vsel %vm122, %v1514, 0
    %1632 = vmatpush.msra.mxu0 0.0
    %1633 = vmatpush.msra.mxu0 0.0
    %1634 = vmatpush.msra.mxu0 0.0
    %1635 = vmatpush.msra.mxu0 0.0
    %1636 = vmatpush.msra.mxu0 0.0
    %1637 = vmatpush.msra.mxu0 0.0
    %1638 = vmatpush.msra.mxu0 0.0
    %1639 = vmatpush.msra.mxu0 0.0
    %1640 = vmatpush.msra.mxu0 0.0
    %1641 = vmatpush.msra.mxu0 0.0
    %1642 = vmatpush.msra.mxu0 0.0
    %1643 = vmatpush.msra.mxu0 0.0
    %1644 = vmatpush.msra.mxu0 %v396
    %1645 = vmatpush.msra.mxu0 %v395
    %1646 = vmatpush.msra.mxu0 %v394
    %1647 = vmatpush.msra.mxu0 %v393
    %1648 = vmatmul.f32.gmra.mxu0 %v1630
    %v1649 = vpop.f32.mrf.mxu0
    %v1650 = vadd.f32 0.0, %v1649
    %1651 = vdwg.mxu0
    %v1652 = vadd.f32 %v1628, %v1650
    %v1653 = vld [vmem:[%s227 + $0x4] sm:$0x3]
    %1654 = vmatpush.msra.mxu0 0.0
    %1655 = vmatpush.msra.mxu0 0.0
    %1656 = vmatpush.msra.mxu0 0.0
    %1657 = vmatpush.msra.mxu0 0.0
    %1658 = vmatpush.msra.mxu0 0.0
    %1659 = vmatpush.msra.mxu0 0.0
    %1660 = vmatpush.msra.mxu0 0.0
    %1661 = vmatpush.msra.mxu0 0.0
    %1662 = vmatpush.msra.mxu0 0.0
    %1663 = vmatpush.msra.mxu0 0.0
    %1664 = vmatpush.msra.mxu0 0.0
    %1665 = vmatpush.msra.mxu0 0.0
    %1666 = vmatpush.msra.mxu0 %v401
    %1667 = vmatpush.msra.mxu0 %v400
    %1668 = vmatpush.msra.mxu0 %v399
    %1669 = vmatpush.msra.mxu0 %v398
    %1670 = vmatmul.f32.gmra.mxu0 %v1630
    %v1671 = vpop.f32.mrf.mxu0
    %v1672 = vadd.f32 0.0, %v1671
    %1673 = vdwg.mxu0
    %v1674 = vadd.f32 %v1653, %v1672
    %v1675 = vld [vmem:[%s299 + $0x4] sm:$0x3]
    %1676 = vmatpush.msra.mxu0 0.0
    %1677 = vmatpush.msra.mxu0 0.0
    %1678 = vmatpush.msra.mxu0 0.0
    %1679 = vmatpush.msra.mxu0 0.0
    %1680 = vmatpush.msra.mxu0 0.0
    %1681 = vmatpush.msra.mxu0 0.0
    %1682 = vmatpush.msra.mxu0 0.0
    %1683 = vmatpush.msra.mxu0 0.0
    %1684 = vmatpush.msra.mxu0 0.0
    %1685 = vmatpush.msra.mxu0 0.0
    %1686 = vmatpush.msra.mxu0 0.0
    %1687 = vmatpush.msra.mxu0 0.0
    %1688 = vmatpush.msra.mxu0 %v406
    %1689 = vmatpush.msra.mxu0 %v405
    %1690 = vmatpush.msra.mxu0 %v404
    %1691 = vmatpush.msra.mxu0 %v403
    %1692 = vmatmul.f32.gmra.mxu0 %v1630
    %v1693 = vpop.f32.mrf.mxu0
    %v1694 = vadd.f32 0.0, %v1693
    %1695 = vdwg.mxu0
    %v1696 = vadd.f32 %v1675, %v1694
    %v1697 = vld [vmem:[%s371 + $0x4] sm:$0x3]
    %1698 = vmatpush.msra.mxu0 0.0
    %1699 = vmatpush.msra.mxu0 0.0
    %1700 = vmatpush.msra.mxu0 0.0
    %1701 = vmatpush.msra.mxu0 0.0
    %1702 = vmatpush.msra.mxu0 0.0
    %1703 = vmatpush.msra.mxu0 0.0
    %1704 = vmatpush.msra.mxu0 0.0
    %1705 = vmatpush.msra.mxu0 0.0
    %1706 = vmatpush.msra.mxu0 0.0
    %1707 = vmatpush.msra.mxu0 0.0
    %1708 = vmatpush.msra.mxu0 0.0
    %1709 = vmatpush.msra.mxu0 0.0
    %1710 = vmatpush.msra.mxu0 %v411
    %1711 = vmatpush.msra.mxu0 %v410
    %1712 = vmatpush.msra.mxu0 %v409
    %1713 = vmatpush.msra.mxu0 %v408
    %1714 = vmatmul.f32.gmra.mxu0 %v1630
    %v1715 = vpop.f32.mrf.mxu0
    %v1716 = vadd.f32 0.0, %v1715
    %1717 = vdwg.mxu0
    %v1718 = vadd.f32 %v1697, %v1716
    %v1719 = vmul.f32 %v1652, 0.5
    %v1720 = vtanh.pop %v1719
    %v1721 = vmul.f32 %v1720, 0.5
    %v1722 = vadd.f32 %v1721, 0.5
    %v1723 = vmul.f32 %v1674, 0.5
    %v1724 = vtanh.pop %v1723
    %v1725 = vmul.f32 %v1724, 0.5
    %v1726 = vadd.f32 %v1725, 0.5
    %v1727 = vtanh.pop %v1696
    %v1728 = vmul.f32 %v1718, 0.5
    %v1729 = vtanh.pop %v1728
    %v1730 = vmul.f32 %v1729, 0.5
    %v1731 = vadd.f32 %v1730, 0.5
    %v1732 = vmul.f32 %v1726, %v1512
    %v1733 = vmul.f32 %v1722, %v1727
    %v1734 = vadd.f32 %v1732, %v1733
    %v1735 = vtanh.pop %v1734
    %v1736 = vmul.f32 %v1731, %v1735
    %s1737 = scalar_lea.vmem [#allocation4], 10
    %1738 = vst.msk [vmem:[%s1737] sm:$0x3] %vm627, %v1627
    %s1739 = scalar_lea.vmem [#allocation5], 4
    %1740 = vst.msk [vmem:[%s1739] sm:$0x3] %vm627, %v1736
    %v1741 = vld [vmem:[#allocation2 + $0xc] sm:$0x3]
    %v1743 = vsel %vm122, %v1627, 0
    %1745 = vmatpush.msra.mxu0 0.0
    %1746 = vmatpush.msra.mxu0 0.0
    %1747 = vmatpush.msra.mxu0 0.0
    %1748 = vmatpush.msra.mxu0 0.0
    %1749 = vmatpush.msra.mxu0 0.0
    %1750 = vmatpush.msra.mxu0 0.0
    %1751 = vmatpush.msra.mxu0 0.0
    %1752 = vmatpush.msra.mxu0 0.0
    %1753 = vmatpush.msra.mxu0 0.0
    %1754 = vmatpush.msra.mxu0 0.0
    %1755 = vmatpush.msra.mxu0 0.0
    %1756 = vmatpush.msra.mxu0 0.0
    %1757 = vmatpush.msra.mxu0 %v377
    %1758 = vmatpush.msra.mxu0 %v376
    %1759 = vmatpush.msra.mxu0 %v375
    %1760 = vmatpush.msra.mxu0 %v374
    %1761 = vmatmul.f32.gmra.mxu0 %v1743
    %v1762 = vpop.f32.mrf.mxu0
    %v1763 = vadd.f32 0.0, %v1762
    %1764 = vdwg.mxu0
    %v1765 = vadd.f32 %v1741, %v1763
    %v1766 = vld [vmem:[%s191 + $0xc] sm:$0x3]
    %1767 = vmatpush.msra.mxu0 0.0
    %1768 = vmatpush.msra.mxu0 0.0
    %1769 = vmatpush.msra.mxu0 0.0
    %1770 = vmatpush.msra.mxu0 0.0
    %1771 = vmatpush.msra.mxu0 0.0
    %1772 = vmatpush.msra.mxu0 0.0
    %1773 = vmatpush.msra.mxu0 0.0
    %1774 = vmatpush.msra.mxu0 0.0
    %1775 = vmatpush.msra.mxu0 0.0
    %1776 = vmatpush.msra.mxu0 0.0
    %1777 = vmatpush.msra.mxu0 0.0
    %1778 = vmatpush.msra.mxu0 0.0
    %1779 = vmatpush.msra.mxu0 %v382
    %1780 = vmatpush.msra.mxu0 %v381
    %1781 = vmatpush.msra.mxu0 %v380
    %1782 = vmatpush.msra.mxu0 %v379
    %1783 = vmatmul.f32.gmra.mxu0 %v1743
    %v1784 = vpop.f32.mrf.mxu0
    %v1785 = vadd.f32 0.0, %v1784
    %1786 = vdwg.mxu0
    %v1787 = vadd.f32 %v1766, %v1785
    %v1788 = vld [vmem:[%s263 + $0xc] sm:$0x3]
    %1789 = vmatpush.msra.mxu0 0.0
    %1790 = vmatpush.msra.mxu0 0.0
    %1791 = vmatpush.msra.mxu0 0.0
    %1792 = vmatpush.msra.mxu0 0.0
    %1793 = vmatpush.msra.mxu0 0.0
    %1794 = vmatpush.msra.mxu0 0.0
    %1795 = vmatpush.msra.mxu0 0.0
    %1796 = vmatpush.msra.mxu0 0.0
    %1797 = vmatpush.msra.mxu0 0.0
    %1798 = vmatpush.msra.mxu0 0.0
    %1799 = vmatpush.msra.mxu0 0.0
    %1800 = vmatpush.msra.mxu0 0.0
    %1801 = vmatpush.msra.mxu0 %v387
    %1802 = vmatpush.msra.mxu0 %v386
    %1803 = vmatpush.msra.mxu0 %v385
    %1804 = vmatpush.msra.mxu0 %v384
    %1805 = vmatmul.f32.gmra.mxu0 %v1743
    %v1806 = vpop.f32.mrf.mxu0
    %v1807 = vadd.f32 0.0, %v1806
    %1808 = vdwg.mxu0
    %v1809 = vadd.f32 %v1788, %v1807
    %v1810 = vld [vmem:[%s335 + $0xc] sm:$0x3]
    %1811 = vmatpush.msra.mxu0 0.0
    %1812 = vmatpush.msra.mxu0 0.0
    %1813 = vmatpush.msra.mxu0 0.0
    %1814 = vmatpush.msra.mxu0 0.0
    %1815 = vmatpush.msra.mxu0 0.0
    %1816 = vmatpush.msra.mxu0 0.0
    %1817 = vmatpush.msra.mxu0 0.0
    %1818 = vmatpush.msra.mxu0 0.0
    %1819 = vmatpush.msra.mxu0 0.0
    %1820 = vmatpush.msra.mxu0 0.0
    %1821 = vmatpush.msra.mxu0 0.0
    %1822 = vmatpush.msra.mxu0 0.0
    %1823 = vmatpush.msra.mxu0 %v392
    %1824 = vmatpush.msra.mxu0 %v391
    %1825 = vmatpush.msra.mxu0 %v390
    %1826 = vmatpush.msra.mxu0 %v389
    %1827 = vmatmul.f32.gmra.mxu0 %v1743
    %v1828 = vpop.f32.mrf.mxu0
    %v1829 = vadd.f32 0.0, %v1828
    %1830 = vdwg.mxu0
    %v1831 = vadd.f32 %v1810, %v1829
    %v1832 = vmul.f32 %v1765, 0.5
    %v1833 = vtanh.pop %v1832
    %v1834 = vmul.f32 %v1833, 0.5
    %v1835 = vadd.f32 %v1834, 0.5
    %v1836 = vmul.f32 %v1787, 0.5
    %v1837 = vtanh.pop %v1836
    %v1838 = vmul.f32 %v1837, 0.5
    %v1839 = vadd.f32 %v1838, 0.5
    %v1840 = vtanh.pop %v1809
    %v1841 = vmul.f32 %v1831, 0.5
    %v1842 = vtanh.pop %v1841
    %v1843 = vmul.f32 %v1842, 0.5
    %v1844 = vadd.f32 %v1843, 0.5
    %v1845 = vmul.f32 %v1839, %v1625
    %v1846 = vmul.f32 %v1835, %v1840
    %v1847 = vadd.f32 %v1845, %v1846
    %v1848 = vtanh.pop %v1847
    %v1849 = vmul.f32 %v1844, %v1848
    %v1850 = vld [vmem:[#allocation3 + $0x2] sm:$0x3]
    %v1852 = vsel %vm122, %v1736, 0
    %1854 = vmatpush.msra.mxu0 0.0
    %1855 = vmatpush.msra.mxu0 0.0
    %1856 = vmatpush.msra.mxu0 0.0
    %1857 = vmatpush.msra.mxu0 0.0
    %1858 = vmatpush.msra.mxu0 0.0
    %1859 = vmatpush.msra.mxu0 0.0
    %1860 = vmatpush.msra.mxu0 0.0
    %1861 = vmatpush.msra.mxu0 0.0
    %1862 = vmatpush.msra.mxu0 0.0
    %1863 = vmatpush.msra.mxu0 0.0
    %1864 = vmatpush.msra.mxu0 0.0
    %1865 = vmatpush.msra.mxu0 0.0
    %1866 = vmatpush.msra.mxu0 %v396
    %1867 = vmatpush.msra.mxu0 %v395
    %1868 = vmatpush.msra.mxu0 %v394
    %1869 = vmatpush.msra.mxu0 %v393
    %1870 = vmatmul.f32.gmra.mxu0 %v1852
    %v1871 = vpop.f32.mrf.mxu0
    %v1872 = vadd.f32 0.0, %v1871
    %1873 = vdwg.mxu0
    %v1874 = vadd.f32 %v1850, %v1872
    %v1875 = vld [vmem:[%s227 + $0x2] sm:$0x3]
    %1876 = vmatpush.msra.mxu0 0.0
    %1877 = vmatpush.msra.mxu0 0.0
    %1878 = vmatpush.msra.mxu0 0.0
    %1879 = vmatpush.msra.mxu0 0.0
    %1880 = vmatpush.msra.mxu0 0.0
    %1881 = vmatpush.msra.mxu0 0.0
    %1882 = vmatpush.msra.mxu0 0.0
    %1883 = vmatpush.msra.mxu0 0.0
    %1884 = vmatpush.msra.mxu0 0.0
    %1885 = vmatpush.msra.mxu0 0.0
    %1886 = vmatpush.msra.mxu0 0.0
    %1887 = vmatpush.msra.mxu0 0.0
    %1888 = vmatpush.msra.mxu0 %v401
    %1889 = vmatpush.msra.mxu0 %v400
    %1890 = vmatpush.msra.mxu0 %v399
    %1891 = vmatpush.msra.mxu0 %v398
    %1892 = vmatmul.f32.gmra.mxu0 %v1852
    %v1893 = vpop.f32.mrf.mxu0
    %v1894 = vadd.f32 0.0, %v1893
    %1895 = vdwg.mxu0
    %v1896 = vadd.f32 %v1875, %v1894
    %v1897 = vld [vmem:[%s299 + $0x2] sm:$0x3]
    %1898 = vmatpush.msra.mxu0 0.0
    %1899 = vmatpush.msra.mxu0 0.0
    %1900 = vmatpush.msra.mxu0 0.0
    %1901 = vmatpush.msra.mxu0 0.0
    %1902 = vmatpush.msra.mxu0 0.0
    %1903 = vmatpush.msra.mxu0 0.0
    %1904 = vmatpush.msra.mxu0 0.0
    %1905 = vmatpush.msra.mxu0 0.0
    %1906 = vmatpush.msra.mxu0 0.0
    %1907 = vmatpush.msra.mxu0 0.0
    %1908 = vmatpush.msra.mxu0 0.0
    %1909 = vmatpush.msra.mxu0 0.0
    %1910 = vmatpush.msra.mxu0 %v406
    %1911 = vmatpush.msra.mxu0 %v405
    %1912 = vmatpush.msra.mxu0 %v404
    %1913 = vmatpush.msra.mxu0 %v403
    %1914 = vmatmul.f32.gmra.mxu0 %v1852
    %v1915 = vpop.f32.mrf.mxu0
    %v1916 = vadd.f32 0.0, %v1915
    %1917 = vdwg.mxu0
    %v1918 = vadd.f32 %v1897, %v1916
    %v1919 = vld [vmem:[%s371 + $0x2] sm:$0x3]
    %1920 = vmatpush.msra.mxu0 0.0
    %1921 = vmatpush.msra.mxu0 0.0
    %1922 = vmatpush.msra.mxu0 0.0
    %1923 = vmatpush.msra.mxu0 0.0
    %1924 = vmatpush.msra.mxu0 0.0
    %1925 = vmatpush.msra.mxu0 0.0
    %1926 = vmatpush.msra.mxu0 0.0
    %1927 = vmatpush.msra.mxu0 0.0
    %1928 = vmatpush.msra.mxu0 0.0
    %1929 = vmatpush.msra.mxu0 0.0
    %1930 = vmatpush.msra.mxu0 0.0
    %1931 = vmatpush.msra.mxu0 0.0
    %1932 = vmatpush.msra.mxu0 %v411
    %1933 = vmatpush.msra.mxu0 %v410
    %1934 = vmatpush.msra.mxu0 %v409
    %1935 = vmatpush.msra.mxu0 %v408
    %1936 = vmatmul.f32.gmra.mxu0 %v1852
    %v1937 = vpop.f32.mrf.mxu0
    %v1938 = vadd.f32 0.0, %v1937
    %1939 = vdwg.mxu0
    %v1940 = vadd.f32 %v1919, %v1938
    %v1941 = vmul.f32 %v1874, 0.5
    %v1942 = vtanh.pop %v1941
    %v1943 = vmul.f32 %v1942, 0.5
    %v1944 = vadd.f32 %v1943, 0.5
    %v1945 = vmul.f32 %v1896, 0.5
    %v1946 = vtanh.pop %v1945
    %v1947 = vmul.f32 %v1946, 0.5
    %v1948 = vadd.f32 %v1947, 0.5
    %v1949 = vtanh.pop %v1918
    %v1950 = vmul.f32 %v1940, 0.5
    %v1951 = vtanh.pop %v1950
    %v1952 = vmul.f32 %v1951, 0.5
    %v1953 = vadd.f32 %v1952, 0.5
    %v1954 = vmul.f32 %v1948, %v1734
    %v1955 = vmul.f32 %v1944, %v1949
    %v1956 = vadd.f32 %v1954, %v1955
    %v1957 = vtanh.pop %v1956
    %v1958 = vmul.f32 %v1953, %v1957
    %s1959 = scalar_lea.vmem [#allocation4], 12
    %1960 = vst.msk [vmem:[%s1959] sm:$0x3] %vm627, %v1849
    %s1961 = scalar_lea.vmem [#allocation5], 2
    %1962 = vst.msk [vmem:[%s1961] sm:$0x3] %vm627, %v1958
    %v1963 = vld [vmem:[#allocation2 + $0xe] sm:$0x3]
    %v1965 = vsel %vm122, %v1849, 0
    %1967 = vmatpush.msra.mxu0 0.0
    %1968 = vmatpush.msra.mxu0 0.0
    %1969 = vmatpush.msra.mxu0 0.0
    %1970 = vmatpush.msra.mxu0 0.0
    %1971 = vmatpush.msra.mxu0 0.0
    %1972 = vmatpush.msra.mxu0 0.0
    %1973 = vmatpush.msra.mxu0 0.0
    %1974 = vmatpush.msra.mxu0 0.0
    %1975 = vmatpush.msra.mxu0 0.0
    %1976 = vmatpush.msra.mxu0 0.0
    %1977 = vmatpush.msra.mxu0 0.0
    %1978 = vmatpush.msra.mxu0 0.0
    %1979 = vmatpush.msra.mxu0 %v377
    %1980 = vmatpush.msra.mxu0 %v376
    %1981 = vmatpush.msra.mxu0 %v375
    %1982 = vmatpush.msra.mxu0 %v374
    %1983 = vmatmul.f32.gmra.mxu0 %v1965
    %v1984 = vpop.f32.mrf.mxu0
    %v1985 = vadd.f32 0.0, %v1984
    %1986 = vdwg.mxu0
    %v1987 = vadd.f32 %v1963, %v1985
    %v1988 = vld [vmem:[%s191 + $0xe] sm:$0x3]
    %1989 = vmatpush.msra.mxu0 0.0
    %1990 = vmatpush.msra.mxu0 0.0
    %1991 = vmatpush.msra.mxu0 0.0
    %1992 = vmatpush.msra.mxu0 0.0
    %1993 = vmatpush.msra.mxu0 0.0
    %1994 = vmatpush.msra.mxu0 0.0
    %1995 = vmatpush.msra.mxu0 0.0
    %1996 = vmatpush.msra.mxu0 0.0
    %1997 = vmatpush.msra.mxu0 0.0
    %1998 = vmatpush.msra.mxu0 0.0
    %1999 = vmatpush.msra.mxu0 0.0
    %2000 = vmatpush.msra.mxu0 0.0
    %2001 = vmatpush.msra.mxu0 %v382
    %2002 = vmatpush.msra.mxu0 %v381
    %2003 = vmatpush.msra.mxu0 %v380
    %2004 = vmatpush.msra.mxu0 %v379
    %2005 = vmatmul.f32.gmra.mxu0 %v1965
    %v2006 = vpop.f32.mrf.mxu0
    %v2007 = vadd.f32 0.0, %v2006
    %2008 = vdwg.mxu0
    %v2009 = vadd.f32 %v1988, %v2007
    %v2010 = vld [vmem:[%s263 + $0xe] sm:$0x3]
    %2011 = vmatpush.msra.mxu0 0.0
    %2012 = vmatpush.msra.mxu0 0.0
    %2013 = vmatpush.msra.mxu0 0.0
    %2014 = vmatpush.msra.mxu0 0.0
    %2015 = vmatpush.msra.mxu0 0.0
    %2016 = vmatpush.msra.mxu0 0.0
    %2017 = vmatpush.msra.mxu0 0.0
    %2018 = vmatpush.msra.mxu0 0.0
    %2019 = vmatpush.msra.mxu0 0.0
    %2020 = vmatpush.msra.mxu0 0.0
    %2021 = vmatpush.msra.mxu0 0.0
    %2022 = vmatpush.msra.mxu0 0.0
    %2023 = vmatpush.msra.mxu0 %v387
    %2024 = vmatpush.msra.mxu0 %v386
    %2025 = vmatpush.msra.mxu0 %v385
    %2026 = vmatpush.msra.mxu0 %v384
    %2027 = vmatmul.f32.gmra.mxu0 %v1965
    %v2028 = vpop.f32.mrf.mxu0
    %v2029 = vadd.f32 0.0, %v2028
    %2030 = vdwg.mxu0
    %v2031 = vadd.f32 %v2010, %v2029
    %v2032 = vld [vmem:[%s335 + $0xe] sm:$0x3]
    %2033 = vmatpush.msra.mxu0 0.0
    %2034 = vmatpush.msra.mxu0 0.0
    %2035 = vmatpush.msra.mxu0 0.0
    %2036 = vmatpush.msra.mxu0 0.0
    %2037 = vmatpush.msra.mxu0 0.0
    %2038 = vmatpush.msra.mxu0 0.0
    %2039 = vmatpush.msra.mxu0 0.0
    %2040 = vmatpush.msra.mxu0 0.0
    %2041 = vmatpush.msra.mxu0 0.0
    %2042 = vmatpush.msra.mxu0 0.0
    %2043 = vmatpush.msra.mxu0 0.0
    %2044 = vmatpush.msra.mxu0 0.0
    %2045 = vmatpush.msra.mxu0 %v392
    %2046 = vmatpush.msra.mxu0 %v391
    %2047 = vmatpush.msra.mxu0 %v390
    %2048 = vmatpush.msra.mxu0 %v389
    %2049 = vmatmul.f32.gmra.mxu0 %v1965
    %v2050 = vpop.f32.mrf.mxu0
    %v2051 = vadd.f32 0.0, %v2050
    %2052 = vdwg.mxu0
    %v2053 = vadd.f32 %v2032, %v2051
    %v2054 = vmul.f32 %v1987, 0.5
    %v2055 = vtanh.pop %v2054
    %v2056 = vmul.f32 %v2055, 0.5
    %v2057 = vadd.f32 %v2056, 0.5
    %v2058 = vmul.f32 %v2009, 0.5
    %v2059 = vtanh.pop %v2058
    %v2060 = vmul.f32 %v2059, 0.5
    %v2061 = vadd.f32 %v2060, 0.5
    %v2062 = vtanh.pop %v2031
    %v2063 = vmul.f32 %v2053, 0.5
    %v2064 = vtanh.pop %v2063
    %v2065 = vmul.f32 %v2064, 0.5
    %v2066 = vadd.f32 %v2065, 0.5
    %v2067 = vmul.f32 %v2061, %v1847
    %v2068 = vmul.f32 %v2057, %v2062
    %v2069 = vadd.f32 %v2067, %v2068
    %v2070 = vtanh.pop %v2069
    %v2071 = vmul.f32 %v2066, %v2070
    %v2072 = vld [vmem:[#allocation3] sm:$0x3]
    %v2074 = vsel %vm122, %v1958, 0
    %2076 = vmatpush.msra.mxu0 0.0
    %2077 = vmatpush.msra.mxu0 0.0
    %2078 = vmatpush.msra.mxu0 0.0
    %2079 = vmatpush.msra.mxu0 0.0
    %2080 = vmatpush.msra.mxu0 0.0
    %2081 = vmatpush.msra.mxu0 0.0
    %2082 = vmatpush.msra.mxu0 0.0
    %2083 = vmatpush.msra.mxu0 0.0
    %2084 = vmatpush.msra.mxu0 0.0
    %2085 = vmatpush.msra.mxu0 0.0
    %2086 = vmatpush.msra.mxu0 0.0
    %2087 = vmatpush.msra.mxu0 0.0
    %2088 = vmatpush.msra.mxu0 %v396
    %2089 = vmatpush.msra.mxu0 %v395
    %2090 = vmatpush.msra.mxu0 %v394
    %2091 = vmatpush.msra.mxu0 %v393
    %2092 = vmatmul.f32.gmra.mxu0 %v2074
    %v2093 = vpop.f32.mrf.mxu0
    %v2094 = vadd.f32 0.0, %v2093
    %2095 = vdwg.mxu0
    %v2096 = vadd.f32 %v2072, %v2094
    %v2097 = vld [vmem:[%s227] sm:$0x3]
    %2098 = vmatpush.msra.mxu0 0.0
    %2099 = vmatpush.msra.mxu0 0.0
    %2100 = vmatpush.msra.mxu0 0.0
    %2101 = vmatpush.msra.mxu0 0.0
    %2102 = vmatpush.msra.mxu0 0.0
    %2103 = vmatpush.msra.mxu0 0.0
    %2104 = vmatpush.msra.mxu0 0.0
    %2105 = vmatpush.msra.mxu0 0.0
    %2106 = vmatpush.msra.mxu0 0.0
    %2107 = vmatpush.msra.mxu0 0.0
    %2108 = vmatpush.msra.mxu0 0.0
    %2109 = vmatpush.msra.mxu0 0.0
    %2110 = vmatpush.msra.mxu0 %v401
    %2111 = vmatpush.msra.mxu0 %v400
    %2112 = vmatpush.msra.mxu0 %v399
    %2113 = vmatpush.msra.mxu0 %v398
    %2114 = vmatmul.f32.gmra.mxu0 %v2074
    %v2115 = vpop.f32.mrf.mxu0
    %v2116 = vadd.f32 0.0, %v2115
    %2117 = vdwg.mxu0
    %v2118 = vadd.f32 %v2097, %v2116
    %v2119 = vld [vmem:[%s299] sm:$0x3]
    %2120 = vmatpush.msra.mxu0 0.0
    %2121 = vmatpush.msra.mxu0 0.0
    %2122 = vmatpush.msra.mxu0 0.0
    %2123 = vmatpush.msra.mxu0 0.0
    %2124 = vmatpush.msra.mxu0 0.0
    %2125 = vmatpush.msra.mxu0 0.0
    %2126 = vmatpush.msra.mxu0 0.0
    %2127 = vmatpush.msra.mxu0 0.0
    %2128 = vmatpush.msra.mxu0 0.0
    %2129 = vmatpush.msra.mxu0 0.0
    %2130 = vmatpush.msra.mxu0 0.0
    %2131 = vmatpush.msra.mxu0 0.0
    %2132 = vmatpush.msra.mxu0 %v406
    %2133 = vmatpush.msra.mxu0 %v405
    %2134 = vmatpush.msra.mxu0 %v404
    %2135 = vmatpush.msra.mxu0 %v403
    %2136 = vmatmul.f32.gmra.mxu0 %v2074
    %v2137 = vpop.f32.mrf.mxu0
    %v2138 = vadd.f32 0.0, %v2137
    %2139 = vdwg.mxu0
    %v2140 = vadd.f32 %v2119, %v2138
    %v2141 = vld [vmem:[%s371] sm:$0x3]
    %2142 = vmatpush.msra.mxu0 0.0
    %2143 = vmatpush.msra.mxu0 0.0
    %2144 = vmatpush.msra.mxu0 0.0
    %2145 = vmatpush.msra.mxu0 0.0
    %2146 = vmatpush.msra.mxu0 0.0
    %2147 = vmatpush.msra.mxu0 0.0
    %2148 = vmatpush.msra.mxu0 0.0
    %2149 = vmatpush.msra.mxu0 0.0
    %2150 = vmatpush.msra.mxu0 0.0
    %2151 = vmatpush.msra.mxu0 0.0
    %2152 = vmatpush.msra.mxu0 0.0
    %2153 = vmatpush.msra.mxu0 0.0
    %2154 = vmatpush.msra.mxu0 %v411
    %2155 = vmatpush.msra.mxu0 %v410
    %2156 = vmatpush.msra.mxu0 %v409
    %2157 = vmatpush.msra.mxu0 %v408
    %2158 = vmatmul.f32.gmra.mxu0 %v2074
    %v2159 = vpop.f32.mrf.mxu0
    %v2160 = vadd.f32 0.0, %v2159
    %2161 = vdwg.mxu0
    %v2162 = vadd.f32 %v2141, %v2160
    %v2163 = vmul.f32 %v2096, 0.5
    %v2164 = vtanh.pop %v2163
    %v2165 = vmul.f32 %v2164, 0.5
    %v2166 = vadd.f32 %v2165, 0.5
    %v2167 = vmul.f32 %v2118, 0.5
    %v2168 = vtanh.pop %v2167
    %v2169 = vmul.f32 %v2168, 0.5
    %v2170 = vadd.f32 %v2169, 0.5
    %v2171 = vtanh.pop %v2140
    %v2172 = vmul.f32 %v2162, 0.5
    %v2173 = vtanh.pop %v2172
    %v2174 = vmul.f32 %v2173, 0.5
    %v2175 = vadd.f32 %v2174, 0.5
    %v2176 = vmul.f32 %v2170, %v1956
    %v2177 = vmul.f32 %v2166, %v2171
    %v2178 = vadd.f32 %v2176, %v2177
    %v2179 = vtanh.pop %v2178
    %v2180 = vmul.f32 %v2175, %v2179
    %s2181 = scalar_lea.vmem [#allocation4], 14
    %2182 = vst.msk [vmem:[%s2181] sm:$0x3] %vm627, %v2071
    %2183 = vst.msk [vmem:[#allocation5] sm:$0x3] %vm627, %v2180
    %2184 = vst.msk [vmem:[#allocation13] sm:$0x3] %vm627, %v2071
    %s2185 = scalar_lea.vmem [#allocation13], 2
    %2186 = vst.msk [vmem:[%s2185] sm:$0x3] %vm627, %v2180
    %v2187 = vld [vmem:[#allocation4] sm:$0x3]
    %v2188 = vld [vmem:[#allocation4 + $0x2] sm:$0x3]
    %v2189 = vld [vmem:[#allocation4 + $0x4] sm:$0x3]
    %v2190 = vld [vmem:[#allocation4 + $0x6] sm:$0x3]
    %v2191 = vld [vmem:[#allocation4 + $0x8] sm:$0x3]
    %v2192 = vld [vmem:[#allocation4 + $0xa] sm:$0x3]
    %v2193 = vld [vmem:[#allocation4 + $0xc] sm:$0x3]
    %v2194 = vld [vmem:[#allocation4 + $0xe] sm:$0x3]
    %v2195 = vld [vmem:[#allocation5] sm:$0x3]
    %v2196 = vld [vmem:[#allocation5 + $0x2] sm:$0x3]
    %v2197 = vld [vmem:[#allocation5 + $0x4] sm:$0x3]
    %v2198 = vld [vmem:[#allocation5 + $0x6] sm:$0x3]
    %v2199 = vld [vmem:[#allocation5 + $0x8] sm:$0x3]
    %v2200 = vld [vmem:[#allocation5 + $0xa] sm:$0x3]
    %v2201 = vld [vmem:[#allocation5 + $0xc] sm:$0x3]
    %v2202 = vld [vmem:[#allocation5 + $0xe] sm:$0x3]
    %v2203 = vld [vmem:[%s7] sm:$0x1]
    %v2205 = vperm.slane %v2203, 0
    %v2207 = vmul.f32 %v2187, %v2205
    %v2208 = vmul.f32 %v2188, %v2205
    %v2209 = vmul.f32 %v2189, %v2205
    %v2210 = vmul.f32 %v2190, %v2205
    %v2211 = vmul.f32 %v2191, %v2205
    %v2212 = vmul.f32 %v2192, %v2205
    %v2213 = vmul.f32 %v2193, %v2205
    %v2214 = vmul.f32 %v2194, %v2205
    %v2215 = vsel %vm627, %v2207, 0.0
    %2216 = vadd.xlane.f32.xlu0 %v2215
    %v2217 = vpop.xlane.xlu0 %2216
    %v2218 = vsel %vm627, %v2208, 0.0
    %2219 = vadd.xlane.f32.xlu0 %v2218
    %v2220 = vpop.xlane.xlu0 %2219
    %v2221 = vsel %vm627, %v2209, 0.0
    %2222 = vadd.xlane.f32.xlu0 %v2221
    %v2223 = vpop.xlane.xlu0 %2222
    %v2224 = vsel %vm627, %v2210, 0.0
    %2225 = vadd.xlane.f32.xlu0 %v2224
    %v2226 = vpop.xlane.xlu0 %2225
    %v2227 = vsel %vm627, %v2211, 0.0
    %2228 = vadd.xlane.f32.xlu0 %v2227
    %v2229 = vpop.xlane.xlu0 %2228
    %v2230 = vsel %vm627, %v2212, 0.0
    %2231 = vadd.xlane.f32.xlu0 %v2230
    %v2232 = vpop.xlane.xlu0 %2231
    %v2233 = vsel %vm627, %v2213, 0.0
    %2234 = vadd.xlane.f32.xlu0 %v2233
    %v2235 = vpop.xlane.xlu0 %2234
    %v2236 = vsel %vm627, %v2214, 0.0
    %2237 = vadd.xlane.f32.xlu0 %v2236
    %v2238 = vpop.xlane.xlu0 %2237
    %2239 = vrot.lane.b32.xlu0 %v2205, 96
    %v2240 = vpop.permute.xlu0 %2239
    %v2242 = vmul.f32 %v2195, %v2240
    %v2243 = vmul.f32 %v2196, %v2240
    %v2244 = vmul.f32 %v2197, %v2240
    %v2245 = vmul.f32 %v2198, %v2240
    %v2246 = vmul.f32 %v2199, %v2240
    %v2247 = vmul.f32 %v2200, %v2240
    %v2248 = vmul.f32 %v2201, %v2240
    %v2249 = vmul.f32 %v2202, %v2240
    %v2250 = vsel %vm627, %v2242, 0.0
    %2251 = vadd.xlane.f32.xlu0 %v2250
    %v2252 = vpop.xlane.xlu0 %2251
    %v2253 = vsel %vm627, %v2243, 0.0
    %2254 = vadd.xlane.f32.xlu0 %v2253
    %v2255 = vpop.xlane.xlu0 %2254
    %v2256 = vsel %vm627, %v2244, 0.0
    %2257 = vadd.xlane.f32.xlu0 %v2256
    %v2258 = vpop.xlane.xlu0 %2257
    %v2259 = vsel %vm627, %v2245, 0.0
    %2260 = vadd.xlane.f32.xlu0 %v2259
    %v2261 = vpop.xlane.xlu0 %2260
    %v2262 = vsel %vm627, %v2246, 0.0
    %2263 = vadd.xlane.f32.xlu0 %v2262
    %v2264 = vpop.xlane.xlu0 %2263
    %v2265 = vsel %vm627, %v2247, 0.0
    %2266 = vadd.xlane.f32.xlu0 %v2265
    %v2267 = vpop.xlane.xlu0 %2266
    %v2268 = vsel %vm627, %v2248, 0.0
    %2269 = vadd.xlane.f32.xlu0 %v2268
    %v2270 = vpop.xlane.xlu0 %2269
    %v2271 = vsel %vm627, %v2249, 0.0
    %2272 = vadd.xlane.f32.xlu0 %v2271
    %v2273 = vpop.xlane.xlu0 %2272
    %v2274 = vadd.f32 %v2217, %v2252
    %v2275 = vadd.f32 %v2220, %v2255
    %v2276 = vadd.f32 %v2223, %v2258
    %v2277 = vadd.f32 %v2226, %v2261
    %v2278 = vadd.f32 %v2229, %v2264
    %v2279 = vadd.f32 %v2232, %v2267
    %v2280 = vadd.f32 %v2235, %v2270
    %v2281 = vadd.f32 %v2238, %v2273
    %v2290 = vlaneseq
    %v2291 = vand.u32 %v2290, 127
    %v2292 = vperm.slane %v2274, %v2291
    %v2293 = vperm.slane %v2275, %v2291
    %v2294 = vperm.slane %v2276, %v2291
    %v2295 = vperm.slane %v2277, %v2291
    %v2296 = vperm.slane %v2278, %v2291
    %v2297 = vperm.slane %v2279, %v2291
    %v2298 = vperm.slane %v2280, %v2291
    %v2299 = vperm.slane %v2281, %v2291
    %vm2300 = vcmask 1041409
    %v2301 = vsel %vm2300, %v2293, %v2292
    %vm2302 = vcmask 1042434
    %v2303 = vsel %vm2302, %v2294, %v2301
    %vm2304 = vcmask 1043459
    %v2305 = vsel %vm2304, %v2295, %v2303
    %vm2306 = vcmask 1044484
    %v2307 = vsel %vm2306, %v2296, %v2305
    %vm2308 = vcmask 1045509
    %v2309 = vsel %vm2308, %v2297, %v2307
    %vm2310 = vcmask 1046534
    %v2311 = vsel %vm2310, %v2298, %v2309
    %vm2312 = vcmask 1047559
    %v2313 = vsel %vm2312, %v2299, %v2311
    %vm2315 = vcmask 15360
    %v2316 = vsel %vm2315, %v2313, -inf
    %2317 = vmax.xlane.f32.xlu0 %v2316
    %v2318 = vpop.xlane.xlu0 %2317
    %v2320 = vperm.slane %v2318, 0
    %v2321 = vperm.slane %v2318, 1
    %v2322 = vperm.slane %v2318, 2
    %v2323 = vperm.slane %v2318, 3
    %v2324 = vperm.slane %v2318, 4
    %v2325 = vperm.slane %v2318, 5
    %v2326 = vperm.slane %v2318, 6
    %v2327 = vperm.slane %v2318, 7
    %v2336 = vsub.f32 %v2274, %v2320
    %v2337 = vsub.f32 %v2275, %v2321
    %v2338 = vsub.f32 %v2276, %v2322
    %v2339 = vsub.f32 %v2277, %v2323
    %v2340 = vsub.f32 %v2278, %v2324
    %v2341 = vsub.f32 %v2279, %v2325
    %v2342 = vsub.f32 %v2280, %v2326
    %v2343 = vsub.f32 %v2281, %v2327
    %v2344 = vmul.f32 %v2336, 1.442695
    %v2345 = vpow.pop %v2344
    %v2346 = vmul.f32 %v2337, 1.442695
    %v2347 = vpow.pop %v2346
    %v2348 = vmul.f32 %v2338, 1.442695
    %v2349 = vpow.pop %v2348
    %v2350 = vmul.f32 %v2339, 1.442695
    %v2351 = vpow.pop %v2350
    %v2352 = vmul.f32 %v2340, 1.442695
    %v2353 = vpow.pop %v2352
    %v2354 = vmul.f32 %v2341, 1.442695
    %v2355 = vpow.pop %v2354
    %v2356 = vmul.f32 %v2342, 1.442695
    %v2357 = vpow.pop %v2356
    %v2358 = vmul.f32 %v2343, 1.442695
    %v2359 = vpow.pop %v2358
    %2368 = vset.pattern.permute.xlu0 0
    %2369 = vperm.xlu0 %2368, %v2345
    %v2370 = vpop.permute.xlu0 %2369
    %2371 = vset.pattern.permute.xlu0 0
    %2372 = vperm.xlu0 %2371, %v2347
    %v2373 = vpop.permute.xlu0 %2372
    %2374 = vset.pattern.permute.xlu0 0
    %2375 = vperm.xlu0 %2374, %v2349
    %v2376 = vpop.permute.xlu0 %2375
    %2377 = vset.pattern.permute.xlu0 0
    %2378 = vperm.xlu0 %2377, %v2351
    %v2379 = vpop.permute.xlu0 %2378
    %2380 = vset.pattern.permute.xlu0 0
    %2381 = vperm.xlu0 %2380, %v2353
    %v2382 = vpop.permute.xlu0 %2381
    %2383 = vset.pattern.permute.xlu0 0
    %2384 = vperm.xlu0 %2383, %v2355
    %v2385 = vpop.permute.xlu0 %2384
    %2386 = vset.pattern.permute.xlu0 0
    %2387 = vperm.xlu0 %2386, %v2357
    %v2388 = vpop.permute.xlu0 %2387
    %2389 = vset.pattern.permute.xlu0 0
    %2390 = vperm.xlu0 %2389, %v2359
    %v2391 = vpop.permute.xlu0 %2390
    %v2392 = vperm.slane %v2370, %v2291
    %v2393 = vperm.slane %v2373, %v2291
    %v2394 = vperm.slane %v2376, %v2291
    %v2395 = vperm.slane %v2379, %v2291
    %v2396 = vperm.slane %v2382, %v2291
    %v2397 = vperm.slane %v2385, %v2291
    %v2398 = vperm.slane %v2388, %v2291
    %v2399 = vperm.slane %v2391, %v2291
    %v2400 = vsel %vm2300, %v2393, %v2392
    %v2401 = vsel %vm2302, %v2394, %v2400
    %v2402 = vsel %vm2304, %v2395, %v2401
    %v2403 = vsel %vm2306, %v2396, %v2402
    %v2404 = vsel %vm2308, %v2397, %v2403
    %v2405 = vsel %vm2310, %v2398, %v2404
    %v2406 = vsel %vm2312, %v2399, %v2405
    %v2408 = vsel %vm2315, %v2406, 0.0
    %2409 = vadd.xlane.f32.xlu0 %v2408
    %v2410 = vpop.xlane.xlu0 %2409
    %v2412 = vperm.slane %v2410, 0
    %v2413 = vperm.slane %v2410, 1
    %v2414 = vperm.slane %v2410, 2
    %v2415 = vperm.slane %v2410, 3
    %v2416 = vperm.slane %v2410, 4
    %v2417 = vperm.slane %v2410, 5
    %v2418 = vperm.slane %v2410, 6
    %v2419 = vperm.slane %v2410, 7
    %v2428 = vrcp.pop %v2412
    %v2429 = vmul.f32 %v2412, %v2428
    %v2430 = vsub.f32 1.0, %v2429
    %v2431 = vmul.f32 %v2428, %v2430
    %v2432 = vadd.f32 %v2428, %v2431
    %vm2433 = vweird.f32 %v2412
    %vm2434 = vweird.f32 %v2428
    %vm2435 = vmor %vm2433, %vm2434
    %v2436 = vsel %vm2435, %v2428, %v2432
    %v2437 = vand.u32 2147483647, %v2412
    %vm2438 = vcmp.eq.f32.partialorder %v2437, 8.507059e+37
    %v2439 = vand.u32 %v2412, 2147483648
    %v2440 = vor.u32 1.1754944e-38, %v2439
    %v2441 = vsel %vm2438, %v2440, %v2436
    %v2442 = vmul.f32 %v2345, %v2441
    %v2443 = vrcp.pop %v2413
    %v2444 = vmul.f32 %v2413, %v2443
    %v2445 = vsub.f32 1.0, %v2444
    %v2446 = vmul.f32 %v2443, %v2445
    %v2447 = vadd.f32 %v2443, %v2446
    %vm2448 = vweird.f32 %v2413
    %vm2449 = vweird.f32 %v2443
    %vm2450 = vmor %vm2448, %vm2449
    %v2451 = vsel %vm2450, %v2443, %v2447
    %v2452 = vand.u32 2147483647, %v2413
    %vm2453 = vcmp.eq.f32.partialorder %v2452, 8.507059e+37
    %v2454 = vand.u32 %v2413, 2147483648
    %v2455 = vor.u32 1.1754944e-38, %v2454
    %v2456 = vsel %vm2453, %v2455, %v2451
    %v2457 = vmul.f32 %v2347, %v2456
    %v2458 = vrcp.pop %v2414
    %v2459 = vmul.f32 %v2414, %v2458
    %v2460 = vsub.f32 1.0, %v2459
    %v2461 = vmul.f32 %v2458, %v2460
    %v2462 = vadd.f32 %v2458, %v2461
    %vm2463 = vweird.f32 %v2414
    %vm2464 = vweird.f32 %v2458
    %vm2465 = vmor %vm2463, %vm2464
    %v2466 = vsel %vm2465, %v2458, %v2462
    %v2467 = vand.u32 2147483647, %v2414
    %vm2468 = vcmp.eq.f32.partialorder %v2467, 8.507059e+37
    %v2469 = vand.u32 %v2414, 2147483648
    %v2470 = vor.u32 1.1754944e-38, %v2469
    %v2471 = vsel %vm2468, %v2470, %v2466
    %v2472 = vmul.f32 %v2349, %v2471
    %v2473 = vrcp.pop %v2415
    %v2474 = vmul.f32 %v2415, %v2473
    %v2475 = vsub.f32 1.0, %v2474
    %v2476 = vmul.f32 %v2473, %v2475
    %v2477 = vadd.f32 %v2473, %v2476
    %vm2478 = vweird.f32 %v2415
    %vm2479 = vweird.f32 %v2473
    %vm2480 = vmor %vm2478, %vm2479
    %v2481 = vsel %vm2480, %v2473, %v2477
    %v2482 = vand.u32 2147483647, %v2415
    %vm2483 = vcmp.eq.f32.partialorder %v2482, 8.507059e+37
    %v2484 = vand.u32 %v2415, 2147483648
    %v2485 = vor.u32 1.1754944e-38, %v2484
    %v2486 = vsel %vm2483, %v2485, %v2481
    %v2487 = vmul.f32 %v2351, %v2486
    %v2488 = vrcp.pop %v2416
    %v2489 = vmul.f32 %v2416, %v2488
    %v2490 = vsub.f32 1.0, %v2489
    %v2491 = vmul.f32 %v2488, %v2490
    %v2492 = vadd.f32 %v2488, %v2491
    %vm2493 = vweird.f32 %v2416
    %vm2494 = vweird.f32 %v2488
    %vm2495 = vmor %vm2493, %vm2494
    %v2496 = vsel %vm2495, %v2488, %v2492
    %v2497 = vand.u32 2147483647, %v2416
    %vm2498 = vcmp.eq.f32.partialorder %v2497, 8.507059e+37
    %v2499 = vand.u32 %v2416, 2147483648
    %v2500 = vor.u32 1.1754944e-38, %v2499
    %v2501 = vsel %vm2498, %v2500, %v2496
    %v2502 = vmul.f32 %v2353, %v2501
    %v2503 = vrcp.pop %v2417
    %v2504 = vmul.f32 %v2417, %v2503
    %v2505 = vsub.f32 1.0, %v2504
    %v2506 = vmul.f32 %v2503, %v2505
    %v2507 = vadd.f32 %v2503, %v2506
    %vm2508 = vweird.f32 %v2417
    %vm2509 = vweird.f32 %v2503
    %vm2510 = vmor %vm2508, %vm2509
    %v2511 = vsel %vm2510, %v2503, %v2507
    %v2512 = vand.u32 2147483647, %v2417
    %vm2513 = vcmp.eq.f32.partialorder %v2512, 8.507059e+37
    %v2514 = vand.u32 %v2417, 2147483648
    %v2515 = vor.u32 1.1754944e-38, %v2514
    %v2516 = vsel %vm2513, %v2515, %v2511
    %v2517 = vmul.f32 %v2355, %v2516
    %v2518 = vrcp.pop %v2418
    %v2519 = vmul.f32 %v2418, %v2518
    %v2520 = vsub.f32 1.0, %v2519
    %v2521 = vmul.f32 %v2518, %v2520
    %v2522 = vadd.f32 %v2518, %v2521
    %vm2523 = vweird.f32 %v2418
    %vm2524 = vweird.f32 %v2518
    %vm2525 = vmor %vm2523, %vm2524
    %v2526 = vsel %vm2525, %v2518, %v2522
    %v2527 = vand.u32 2147483647, %v2418
    %vm2528 = vcmp.eq.f32.partialorder %v2527, 8.507059e+37
    %v2529 = vand.u32 %v2418, 2147483648
    %v2530 = vor.u32 1.1754944e-38, %v2529
    %v2531 = vsel %vm2528, %v2530, %v2526
    %v2532 = vmul.f32 %v2357, %v2531
    %v2533 = vrcp.pop %v2419
    %v2534 = vmul.f32 %v2419, %v2533
    %v2535 = vsub.f32 1.0, %v2534
    %v2536 = vmul.f32 %v2533, %v2535
    %v2537 = vadd.f32 %v2533, %v2536
    %vm2538 = vweird.f32 %v2419
    %vm2539 = vweird.f32 %v2533
    %vm2540 = vmor %vm2538, %vm2539
    %v2541 = vsel %vm2540, %v2533, %v2537
    %v2542 = vand.u32 2147483647, %v2419
    %vm2543 = vcmp.eq.f32.partialorder %v2542, 8.507059e+37
    %v2544 = vand.u32 %v2419, 2147483648
    %v2545 = vor.u32 1.1754944e-38, %v2544
    %v2546 = vsel %vm2543, %v2545, %v2541
    %v2547 = vmul.f32 %v2359, %v2546
    %2556 = vset.pattern.permute.xlu0 0
    %2557 = vperm.xlu0 %2556, %v2442
    %v2558 = vpop.permute.xlu0 %2557
    %2559 = vset.pattern.permute.xlu0 0
    %2560 = vperm.xlu0 %2559, %v2457
    %v2561 = vpop.permute.xlu0 %2560
    %2562 = vset.pattern.permute.xlu0 0
    %2563 = vperm.xlu0 %2562, %v2472
    %v2564 = vpop.permute.xlu0 %2563
    %2565 = vset.pattern.permute.xlu0 0
    %2566 = vperm.xlu0 %2565, %v2487
    %v2567 = vpop.permute.xlu0 %2566
    %2568 = vset.pattern.permute.xlu0 0
    %2569 = vperm.xlu0 %2568, %v2502
    %v2570 = vpop.permute.xlu0 %2569
    %2571 = vset.pattern.permute.xlu0 0
    %2572 = vperm.xlu0 %2571, %v2517
    %v2573 = vpop.permute.xlu0 %2572
    %2574 = vset.pattern.permute.xlu0 0
    %2575 = vperm.xlu0 %2574, %v2532
    %v2576 = vpop.permute.xlu0 %2575
    %2577 = vset.pattern.permute.xlu0 0
    %2578 = vperm.xlu0 %2577, %v2547
    %v2579 = vpop.permute.xlu0 %2578
    %v2580 = vperm.slane %v2558, %v2291
    %v2581 = vperm.slane %v2561, %v2291
    %v2582 = vperm.slane %v2564, %v2291
    %v2583 = vperm.slane %v2567, %v2291
    %v2584 = vperm.slane %v2570, %v2291
    %v2585 = vperm.slane %v2573, %v2291
    %v2586 = vperm.slane %v2576, %v2291
    %v2587 = vperm.slane %v2579, %v2291
    %v2588 = vsel %vm2300, %v2581, %v2580
    %v2589 = vsel %vm2302, %v2582, %v2588
    %v2590 = vsel %vm2304, %v2583, %v2589
    %v2591 = vsel %vm2306, %v2584, %v2590
    %v2592 = vsel %vm2308, %v2585, %v2591
    %v2593 = vsel %vm2310, %v2586, %v2592
    %v2594 = vsel %vm2312, %v2587, %v2593
    %2596 = vst.msk [vmem:[%s10] sm:$0xff] %vm2315, %v2594
    %v2597 = vlaneseq
    %v2598 = vshrl.u32 %v2597, 7
    %v2599 = vadd.s32 %v2291, 2
    %v2600 = vadd.s32 %v2291, 4
    %v2601 = vadd.s32 %v2291, 6
    %v2602 = vadd.s32 %v2291, 8
    %v2603 = vadd.s32 %v2291, 10
    %v2604 = vadd.s32 %v2291, 12
    %v2605 = vadd.s32 %v2291, 14
    %v2606 = vmul.u32 %v2598, 8
    %vm2607 = vcmp.ge.s32.totalorder %v2291, %v2606
    %vm2608 = vcmp.ge.s32.totalorder %v2599, %v2606
    %vm2609 = vcmp.ge.s32.totalorder %v2600, %v2606
    %vm2610 = vcmp.ge.s32.totalorder %v2601, %v2606
    %vm2611 = vcmp.ge.s32.totalorder %v2602, %v2606
    %vm2612 = vcmp.ge.s32.totalorder %v2603, %v2606
    %vm2613 = vcmp.ge.s32.totalorder %v2604, %v2606
    %vm2614 = vcmp.ge.s32.totalorder %v2605, %v2606
    %v2615 = vadd.s32 %v2606, 8
    %vm2616 = vcmp.lt.s32.totalorder %v2291, %v2615
    %vm2617 = vcmp.lt.s32.totalorder %v2599, %v2615
    %vm2618 = vcmp.lt.s32.totalorder %v2600, %v2615
    %vm2619 = vcmp.lt.s32.totalorder %v2601, %v2615
    %vm2620 = vcmp.lt.s32.totalorder %v2602, %v2615
    %vm2621 = vcmp.lt.s32.totalorder %v2603, %v2615
    %vm2622 = vcmp.lt.s32.totalorder %v2604, %v2615
    %vm2623 = vcmp.lt.s32.totalorder %v2605, %v2615
    %vm2624 = vmand %vm2607, %vm2616
    %vm2625 = vmand %vm2608, %vm2617
    %vm2626 = vmand %vm2609, %vm2618
    %vm2627 = vmand %vm2610, %vm2619
    %vm2628 = vmand %vm2611, %vm2620
    %vm2629 = vmand %vm2612, %vm2621
    %vm2630 = vmand %vm2613, %vm2622
    %vm2631 = vmand %vm2614, %vm2623
    %v2640 = vsel %vm2624, %v2580, 0.0
    %v2641 = vsel %vm2625, %v2581, 0.0
    %v2642 = vsel %vm2626, %v2582, 0.0
    %v2643 = vsel %vm2627, %v2583, 0.0
    %v2644 = vsel %vm2628, %v2584, 0.0
    %v2645 = vsel %vm2629, %v2585, 0.0
    %v2646 = vsel %vm2630, %v2586, 0.0
    %v2647 = vsel %vm2631, %v2587, 0.0
    %v2649 = vsel %vm2315, %v2640, 0
    %vm2651 = vcmask 1041408
    %v2653 = vsel %vm2651, %v2187, 0
    %2655 = vmatpush.msra.mxu0 0.0
    %2656 = vmatpush.msra.mxu0 0.0
    %2657 = vmatpush.msra.mxu0 0.0
    %2658 = vmatpush.msra.mxu0 0.0
    %2659 = vmatpush.msra.mxu0 0.0
    %2660 = vmatpush.msra.mxu0 0.0
    %2661 = vmatpush.msra.mxu0 0.0
    %2662 = vmatpush.msra.mxu0 0.0
    %2663 = vmatpush.msra.mxu0 0.0
    %2664 = vmatpush.msra.mxu0 0.0
    %2665 = vmatpush.msra.mxu0 0.0
    %2666 = vmatpush.msra.mxu0 0.0
    %2667 = vmatpush.msra.mxu0 0.0
    %2668 = vmatpush.msra.mxu0 0.0
    %2669 = vmatpush.msra.mxu0 0.0
    %2670 = vmatpush.msra.mxu0 %v2653
    %2671 = vmatmul.f32.gmra.mxu0 %v2649
    %v2672 = vpop.f32.mrf.mxu0
    %v2673 = vadd.f32 0.0, %v2672
    %2674 = vdwg.mxu0
    %v2676 = vsel %vm2315, %v2641, 0
    %v2679 = vsel %vm2651, %v2188, 0
    %2681 = vmatpush.msra.mxu0 0.0
    %2682 = vmatpush.msra.mxu0 0.0
    %2683 = vmatpush.msra.mxu0 0.0
    %2684 = vmatpush.msra.mxu0 0.0
    %2685 = vmatpush.msra.mxu0 0.0
    %2686 = vmatpush.msra.mxu0 0.0
    %2687 = vmatpush.msra.mxu0 0.0
    %2688 = vmatpush.msra.mxu0 0.0
    %2689 = vmatpush.msra.mxu0 0.0
    %2690 = vmatpush.msra.mxu0 0.0
    %2691 = vmatpush.msra.mxu0 0.0
    %2692 = vmatpush.msra.mxu0 0.0
    %2693 = vmatpush.msra.mxu0 0.0
    %2694 = vmatpush.msra.mxu0 0.0
    %2695 = vmatpush.msra.mxu0 0.0
    %2696 = vmatpush.msra.mxu0 %v2679
    %2697 = vmatmul.f32.gmra.mxu0 %v2676
    %v2698 = vpop.f32.mrf.mxu0
    %v2699 = vadd.f32 0.0, %v2698
    %2700 = vdwg.mxu0
    %v2702 = vsel %vm2315, %v2642, 0
    %v2705 = vsel %vm2651, %v2189, 0
    %2707 = vmatpush.msra.mxu0 0.0
    %2708 = vmatpush.msra.mxu0 0.0
    %2709 = vmatpush.msra.mxu0 0.0
    %2710 = vmatpush.msra.mxu0 0.0
    %2711 = vmatpush.msra.mxu0 0.0
    %2712 = vmatpush.msra.mxu0 0.0
    %2713 = vmatpush.msra.mxu0 0.0
    %2714 = vmatpush.msra.mxu0 0.0
    %2715 = vmatpush.msra.mxu0 0.0
    %2716 = vmatpush.msra.mxu0 0.0
    %2717 = vmatpush.msra.mxu0 0.0
    %2718 = vmatpush.msra.mxu0 0.0
    %2719 = vmatpush.msra.mxu0 0.0
    %2720 = vmatpush.msra.mxu0 0.0
    %2721 = vmatpush.msra.mxu0 0.0
    %2722 = vmatpush.msra.mxu0 %v2705
    %2723 = vmatmul.f32.gmra.mxu0 %v2702
    %v2724 = vpop.f32.mrf.mxu0
    %v2725 = vadd.f32 0.0, %v2724
    %2726 = vdwg.mxu0
    %v2728 = vsel %vm2315, %v2643, 0
    %v2731 = vsel %vm2651, %v2190, 0
    %2733 = vmatpush.msra.mxu0 0.0
    %2734 = vmatpush.msra.mxu0 0.0
    %2735 = vmatpush.msra.mxu0 0.0
    %2736 = vmatpush.msra.mxu0 0.0
    %2737 = vmatpush.msra.mxu0 0.0
    %2738 = vmatpush.msra.mxu0 0.0
    %2739 = vmatpush.msra.mxu0 0.0
    %2740 = vmatpush.msra.mxu0 0.0
    %2741 = vmatpush.msra.mxu0 0.0
    %2742 = vmatpush.msra.mxu0 0.0
    %2743 = vmatpush.msra.mxu0 0.0
    %2744 = vmatpush.msra.mxu0 0.0
    %2745 = vmatpush.msra.mxu0 0.0
    %2746 = vmatpush.msra.mxu0 0.0
    %2747 = vmatpush.msra.mxu0 0.0
    %2748 = vmatpush.msra.mxu0 %v2731
    %2749 = vmatmul.f32.gmra.mxu0 %v2728
    %v2750 = vpop.f32.mrf.mxu0
    %v2751 = vadd.f32 0.0, %v2750
    %2752 = vdwg.mxu0
    %v2754 = vsel %vm2315, %v2644, 0
    %v2757 = vsel %vm2651, %v2191, 0
    %2759 = vmatpush.msra.mxu0 0.0
    %2760 = vmatpush.msra.mxu0 0.0
    %2761 = vmatpush.msra.mxu0 0.0
    %2762 = vmatpush.msra.mxu0 0.0
    %2763 = vmatpush.msra.mxu0 0.0
    %2764 = vmatpush.msra.mxu0 0.0
    %2765 = vmatpush.msra.mxu0 0.0
    %2766 = vmatpush.msra.mxu0 0.0
    %2767 = vmatpush.msra.mxu0 0.0
    %2768 = vmatpush.msra.mxu0 0.0
    %2769 = vmatpush.msra.mxu0 0.0
    %2770 = vmatpush.msra.mxu0 0.0
    %2771 = vmatpush.msra.mxu0 0.0
    %2772 = vmatpush.msra.mxu0 0.0
    %2773 = vmatpush.msra.mxu0 0.0
    %2774 = vmatpush.msra.mxu0 %v2757
    %2775 = vmatmul.f32.gmra.mxu0 %v2754
    %v2776 = vpop.f32.mrf.mxu0
    %v2777 = vadd.f32 0.0, %v2776
    %2778 = vdwg.mxu0
    %v2780 = vsel %vm2315, %v2645, 0
    %v2783 = vsel %vm2651, %v2192, 0
    %2785 = vmatpush.msra.mxu0 0.0
    %2786 = vmatpush.msra.mxu0 0.0
    %2787 = vmatpush.msra.mxu0 0.0
    %2788 = vmatpush.msra.mxu0 0.0
    %2789 = vmatpush.msra.mxu0 0.0
    %2790 = vmatpush.msra.mxu0 0.0
    %2791 = vmatpush.msra.mxu0 0.0
    %2792 = vmatpush.msra.mxu0 0.0
    %2793 = vmatpush.msra.mxu0 0.0
    %2794 = vmatpush.msra.mxu0 0.0
    %2795 = vmatpush.msra.mxu0 0.0
    %2796 = vmatpush.msra.mxu0 0.0
    %2797 = vmatpush.msra.mxu0 0.0
    %2798 = vmatpush.msra.mxu0 0.0
    %2799 = vmatpush.msra.mxu0 0.0
    %2800 = vmatpush.msra.mxu0 %v2783
    %2801 = vmatmul.f32.gmra.mxu0 %v2780
    %v2802 = vpop.f32.mrf.mxu0
    %v2803 = vadd.f32 0.0, %v2802
    %2804 = vdwg.mxu0
    %v2806 = vsel %vm2315, %v2646, 0
    %v2809 = vsel %vm2651, %v2193, 0
    %2811 = vmatpush.msra.mxu0 0.0
    %2812 = vmatpush.msra.mxu0 0.0
    %2813 = vmatpush.msra.mxu0 0.0
    %2814 = vmatpush.msra.mxu0 0.0
    %2815 = vmatpush.msra.mxu0 0.0
    %2816 = vmatpush.msra.mxu0 0.0
    %2817 = vmatpush.msra.mxu0 0.0
    %2818 = vmatpush.msra.mxu0 0.0
    %2819 = vmatpush.msra.mxu0 0.0
    %2820 = vmatpush.msra.mxu0 0.0
    %2821 = vmatpush.msra.mxu0 0.0
    %2822 = vmatpush.msra.mxu0 0.0
    %2823 = vmatpush.msra.mxu0 0.0
    %2824 = vmatpush.msra.mxu0 0.0
    %2825 = vmatpush.msra.mxu0 0.0
    %2826 = vmatpush.msra.mxu0 %v2809
    %2827 = vmatmul.f32.gmra.mxu0 %v2806
    %v2828 = vpop.f32.mrf.mxu0
    %v2829 = vadd.f32 0.0, %v2828
    %2830 = vdwg.mxu0
    %v2832 = vsel %vm2315, %v2647, 0
    %v2835 = vsel %vm2651, %v2194, 0
    %2837 = vmatpush.msra.mxu0 0.0
    %2838 = vmatpush.msra.mxu0 0.0
    %2839 = vmatpush.msra.mxu0 0.0
    %2840 = vmatpush.msra.mxu0 0.0
    %2841 = vmatpush.msra.mxu0 0.0
    %2842 = vmatpush.msra.mxu0 0.0
    %2843 = vmatpush.msra.mxu0 0.0
    %2844 = vmatpush.msra.mxu0 0.0
    %2845 = vmatpush.msra.mxu0 0.0
    %2846 = vmatpush.msra.mxu0 0.0
    %2847 = vmatpush.msra.mxu0 0.0
    %2848 = vmatpush.msra.mxu0 0.0
    %2849 = vmatpush.msra.mxu0 0.0
    %2850 = vmatpush.msra.mxu0 0.0
    %2851 = vmatpush.msra.mxu0 0.0
    %2852 = vmatpush.msra.mxu0 %v2835
    %2853 = vmatmul.f32.gmra.mxu0 %v2832
    %v2854 = vpop.f32.mrf.mxu0
    %v2855 = vadd.f32 0.0, %v2854
    %2856 = vdwg.mxu0
    %v2857 = vsel %vm627, %v2673, 0.0
    %v2858 = vsel %vm627, %v2699, 0.0
    %v2859 = vadd.f32 %v2857, %v2858
    %v2860 = vsel %vm627, %v2725, 0.0
    %v2861 = vadd.f32 %v2859, %v2860
    %v2862 = vsel %vm627, %v2751, 0.0
    %v2863 = vadd.f32 %v2861, %v2862
    %v2864 = vsel %vm627, %v2777, 0.0
    %v2865 = vadd.f32 %v2863, %v2864
    %v2866 = vsel %vm627, %v2803, 0.0
    %v2867 = vadd.f32 %v2865, %v2866
    %v2868 = vsel %vm627, %v2829, 0.0
    %v2869 = vadd.f32 %v2867, %v2868
    %v2870 = vsel %vm627, %v2855, 0.0
    %v2871 = vadd.f32 %v2869, %v2870
    %v2873 = vsel %vm2651, %v2195, 0
    %2875 = vmatpush.msra.mxu0 0.0
    %2876 = vmatpush.msra.mxu0 0.0
    %2877 = vmatpush.msra.mxu0 0.0
    %2878 = vmatpush.msra.mxu0 0.0
    %2879 = vmatpush.msra.mxu0 0.0
    %2880 = vmatpush.msra.mxu0 0.0
    %2881 = vmatpush.msra.mxu0 0.0
    %2882 = vmatpush.msra.mxu0 0.0
    %2883 = vmatpush.msra.mxu0 0.0
    %2884 = vmatpush.msra.mxu0 0.0
    %2885 = vmatpush.msra.mxu0 0.0
    %2886 = vmatpush.msra.mxu0 0.0
    %2887 = vmatpush.msra.mxu0 0.0
    %2888 = vmatpush.msra.mxu0 0.0
    %2889 = vmatpush.msra.mxu0 0.0
    %2890 = vmatpush.msra.mxu0 %v2873
    %2891 = vmatmul.f32.gmra.mxu0 %v2649
    %v2892 = vpop.f32.mrf.mxu0
    %v2893 = vadd.f32 0.0, %v2892
    %2894 = vdwg.mxu0
    %v2896 = vsel %vm2651, %v2196, 0
    %2898 = vmatpush.msra.mxu0 0.0
    %2899 = vmatpush.msra.mxu0 0.0
    %2900 = vmatpush.msra.mxu0 0.0
    %2901 = vmatpush.msra.mxu0 0.0
    %2902 = vmatpush.msra.mxu0 0.0
    %2903 = vmatpush.msra.mxu0 0.0
    %2904 = vmatpush.msra.mxu0 0.0
    %2905 = vmatpush.msra.mxu0 0.0
    %2906 = vmatpush.msra.mxu0 0.0
    %2907 = vmatpush.msra.mxu0 0.0
    %2908 = vmatpush.msra.mxu0 0.0
    %2909 = vmatpush.msra.mxu0 0.0
    %2910 = vmatpush.msra.mxu0 0.0
    %2911 = vmatpush.msra.mxu0 0.0
    %2912 = vmatpush.msra.mxu0 0.0
    %2913 = vmatpush.msra.mxu0 %v2896
    %2914 = vmatmul.f32.gmra.mxu0 %v2676
    %v2915 = vpop.f32.mrf.mxu0
    %v2916 = vadd.f32 0.0, %v2915
    %2917 = vdwg.mxu0
    %v2919 = vsel %vm2651, %v2197, 0
    %2921 = vmatpush.msra.mxu0 0.0
    %2922 = vmatpush.msra.mxu0 0.0
    %2923 = vmatpush.msra.mxu0 0.0
    %2924 = vmatpush.msra.mxu0 0.0
    %2925 = vmatpush.msra.mxu0 0.0
    %2926 = vmatpush.msra.mxu0 0.0
    %2927 = vmatpush.msra.mxu0 0.0
    %2928 = vmatpush.msra.mxu0 0.0
    %2929 = vmatpush.msra.mxu0 0.0
    %2930 = vmatpush.msra.mxu0 0.0
    %2931 = vmatpush.msra.mxu0 0.0
    %2932 = vmatpush.msra.mxu0 0.0
    %2933 = vmatpush.msra.mxu0 0.0
    %2934 = vmatpush.msra.mxu0 0.0
    %2935 = vmatpush.msra.mxu0 0.0
    %2936 = vmatpush.msra.mxu0 %v2919
    %2937 = vmatmul.f32.gmra.mxu0 %v2702
    %v2938 = vpop.f32.mrf.mxu0
    %v2939 = vadd.f32 0.0, %v2938
    %2940 = vdwg.mxu0
    %v2942 = vsel %vm2651, %v2198, 0
    %2944 = vmatpush.msra.mxu0 0.0
    %2945 = vmatpush.msra.mxu0 0.0
    %2946 = vmatpush.msra.mxu0 0.0
    %2947 = vmatpush.msra.mxu0 0.0
    %2948 = vmatpush.msra.mxu0 0.0
    %2949 = vmatpush.msra.mxu0 0.0
    %2950 = vmatpush.msra.mxu0 0.0
    %2951 = vmatpush.msra.mxu0 0.0
    %2952 = vmatpush.msra.mxu0 0.0
    %2953 = vmatpush.msra.mxu0 0.0
    %2954 = vmatpush.msra.mxu0 0.0
    %2955 = vmatpush.msra.mxu0 0.0
    %2956 = vmatpush.msra.mxu0 0.0
    %2957 = vmatpush.msra.mxu0 0.0
    %2958 = vmatpush.msra.mxu0 0.0
    %2959 = vmatpush.msra.mxu0 %v2942
    %2960 = vmatmul.f32.gmra.mxu0 %v2728
    %v2961 = vpop.f32.mrf.mxu0
    %v2962 = vadd.f32 0.0, %v2961
    %2963 = vdwg.mxu0
    %v2965 = vsel %vm2651, %v2199, 0
    %2967 = vmatpush.msra.mxu0 0.0
    %2968 = vmatpush.msra.mxu0 0.0
    %2969 = vmatpush.msra.mxu0 0.0
    %2970 = vmatpush.msra.mxu0 0.0
    %2971 = vmatpush.msra.mxu0 0.0
    %2972 = vmatpush.msra.mxu0 0.0
    %2973 = vmatpush.msra.mxu0 0.0
    %2974 = vmatpush.msra.mxu0 0.0
    %2975 = vmatpush.msra.mxu0 0.0
    %2976 = vmatpush.msra.mxu0 0.0
    %2977 = vmatpush.msra.mxu0 0.0
    %2978 = vmatpush.msra.mxu0 0.0
    %2979 = vmatpush.msra.mxu0 0.0
    %2980 = vmatpush.msra.mxu0 0.0
    %2981 = vmatpush.msra.mxu0 0.0
    %2982 = vmatpush.msra.mxu0 %v2965
    %2983 = vmatmul.f32.gmra.mxu0 %v2754
    %v2984 = vpop.f32.mrf.mxu0
    %v2985 = vadd.f32 0.0, %v2984
    %2986 = vdwg.mxu0
    %v2988 = vsel %vm2651, %v2200, 0
    %2990 = vmatpush.msra.mxu0 0.0
    %2991 = vmatpush.msra.mxu0 0.0
    %2992 = vmatpush.msra.mxu0 0.0
    %2993 = vmatpush.msra.mxu0 0.0
    %2994 = vmatpush.msra.mxu0 0.0
    %2995 = vmatpush.msra.mxu0 0.0
    %2996 = vmatpush.msra.mxu0 0.0
    %2997 = vmatpush.msra.mxu0 0.0
    %2998 = vmatpush.msra.mxu0 0.0
    %2999 = vmatpush.msra.mxu0 0.0
    %3000 = vmatpush.msra.mxu0 0.0
    %3001 = vmatpush.msra.mxu0 0.0
    %3002 = vmatpush.msra.mxu0 0.0
    %3003 = vmatpush.msra.mxu0 0.0
    %3004 = vmatpush.msra.mxu0 0.0
    %3005 = vmatpush.msra.mxu0 %v2988
    %3006 = vmatmul.f32.gmra.mxu0 %v2780
    %v3007 = vpop.f32.mrf.mxu0
    %v3008 = vadd.f32 0.0, %v3007
    %3009 = vdwg.mxu0
    %v3011 = vsel %vm2651, %v2201, 0
    %3013 = vmatpush.msra.mxu0 0.0
    %3014 = vmatpush.msra.mxu0 0.0
    %3015 = vmatpush.msra.mxu0 0.0
    %3016 = vmatpush.msra.mxu0 0.0
    %3017 = vmatpush.msra.mxu0 0.0
    %3018 = vmatpush.msra.mxu0 0.0
    %3019 = vmatpush.msra.mxu0 0.0
    %3020 = vmatpush.msra.mxu0 0.0
    %3021 = vmatpush.msra.mxu0 0.0
    %3022 = vmatpush.msra.mxu0 0.0
    %3023 = vmatpush.msra.mxu0 0.0
    %3024 = vmatpush.msra.mxu0 0.0
    %3025 = vmatpush.msra.mxu0 0.0
    %3026 = vmatpush.msra.mxu0 0.0
    %3027 = vmatpush.msra.mxu0 0.0
    %3028 = vmatpush.msra.mxu0 %v3011
    %3029 = vmatmul.f32.gmra.mxu0 %v2806
    %v3030 = vpop.f32.mrf.mxu0
    %v3031 = vadd.f32 0.0, %v3030
    %3032 = vdwg.mxu0
    %v3034 = vsel %vm2651, %v2202, 0
    %3036 = vmatpush.msra.mxu0 0.0
    %3037 = vmatpush.msra.mxu0 0.0
    %3038 = vmatpush.msra.mxu0 0.0
    %3039 = vmatpush.msra.mxu0 0.0
    %3040 = vmatpush.msra.mxu0 0.0
    %3041 = vmatpush.msra.mxu0 0.0
    %3042 = vmatpush.msra.mxu0 0.0
    %3043 = vmatpush.msra.mxu0 0.0
    %3044 = vmatpush.msra.mxu0 0.0
    %3045 = vmatpush.msra.mxu0 0.0
    %3046 = vmatpush.msra.mxu0 0.0
    %3047 = vmatpush.msra.mxu0 0.0
    %3048 = vmatpush.msra.mxu0 0.0
    %3049 = vmatpush.msra.mxu0 0.0
    %3050 = vmatpush.msra.mxu0 0.0
    %3051 = vmatpush.msra.mxu0 %v3034
    %3052 = vmatmul.f32.gmra.mxu0 %v2832
    %v3053 = vpop.f32.mrf.mxu0
    %v3054 = vadd.f32 0.0, %v3053
    %3055 = vdwg.mxu0
    %v3056 = vsel %vm627, %v2893, 0.0
    %v3057 = vsel %vm627, %v2916, 0.0
    %v3058 = vadd.f32 %v3056, %v3057
    %v3059 = vsel %vm627, %v2939, 0.0
    %v3060 = vadd.f32 %v3058, %v3059
    %v3061 = vsel %vm627, %v2962, 0.0
    %v3062 = vadd.f32 %v3060, %v3061
    %v3063 = vsel %vm627, %v2985, 0.0
    %v3064 = vadd.f32 %v3062, %v3063
    %v3065 = vsel %vm627, %v3008, 0.0
    %v3066 = vadd.f32 %v3064, %v3065
    %v3067 = vsel %vm627, %v3031, 0.0
    %v3068 = vadd.f32 %v3066, %v3067
    %v3069 = vsel %vm627, %v3054, 0.0
    %v3070 = vadd.f32 %v3068, %v3069
    %3072 = vrot.lane.b32.xlu0 %v3070, 32
    %v3073 = vpop.permute.xlu0 %3072
    %v3075 = vsel %vm122, %v2871, %v3073
    %vm3076 = vcmask 517120
    %3077 = vst.msk [vmem:[#allocation12] sm:$0x3] %vm3076, %v3075
    // Predicated region
    $region46: #{tpu_custom_call.1} parent=1 // pred_check
      _
    $region47: #{tpu_custom_call.1} parent=1 // pred_check_branch
      %3079 = sbr.rel (0) target = $region49
    $region48: #{tpu_custom_call.1} parent=1 // pred_region
      %3081 = vsyncadd [#allocation8], 0
      %s3083 = sshll.u32 [#allocation12], 4
      %s3084 = int_to_ptr.vmem [resolvable:$true] %s3083
      %s3085 = sshll.u32 %s8, 4
      %s3086 = int_to_ptr.hbm [resolvable:$true] %s3085
      %3088 = dma.vmem_to_hbm [thread:$0]  %s3084, 32, %s3086, [#allocation8]
    $region49: #{tpu_custom_call.1} parent=1 // pred_fallthru
      _
    // Predicated region
    $region50: #{tpu_custom_call.1} parent=1 // pred_check
      _
    $region51: #{tpu_custom_call.1} parent=1 // pred_check_branch
      %3090 = sbr.rel (0) target = $region53
    $region52: #{tpu_custom_call.1} parent=1 // pred_region
      %3092 = vsyncadd [#allocation14], 0
      %s3093 = sshll.u32 [#allocation13], 4
      %s3094 = int_to_ptr.vmem [resolvable:$true] %s3093
      %s3095 = sshll.u32 %s9, 4
      %s3096 = int_to_ptr.hbm [resolvable:$true] %s3095
      %3101 = dma.vmem_to_hbm [thread:$0]  %s3094, 64, %s3096, [#allocation14], 32, 32, 2
    $region53: #{tpu_custom_call.1} parent=1 // pred_fallthru
      _
    // Predicated region
    $region54: #{tpu_custom_call.1} parent=1 // pred_check
      _
    $region55: #{tpu_custom_call.1} parent=1 // pred_check_branch
      %3103 = sbr.rel (0) target = $region57
    $region56: #{tpu_custom_call.1} parent=1 // pred_region
      _
    $region57: #{tpu_custom_call.1} parent=1 // pred_fallthru
      _
    // Predicated region
    $region58: #{tpu_custom_call.1} parent=1 // pred_check
      _
    $region59: #{tpu_custom_call.1} parent=1 // pred_check_branch
      %3105 = sbr.rel (0) target = $region61
    $region60: #{tpu_custom_call.1} parent=1 // pred_region
      %3107 = dma.done [#allocation8], 32
    $region61: #{tpu_custom_call.1} parent=1 // pred_fallthru
      _
    // Predicated region
    $region62: #{tpu_custom_call.1} parent=1 // pred_check
      _
    $region63: #{tpu_custom_call.1} parent=1 // pred_check_branch
      %3109 = sbr.rel (0) target = $region65
    $region64: #{tpu_custom_call.1} parent=1 // pred_region
      %3111 = dma.done [#allocation14], 64
    $region65: #{tpu_custom_call.1} parent=1 // pred_fallthru
      _
    // Predicated region
    $region66: #{tpu_custom_call.1} parent=1 // pred_check
      _
    $region67: #{tpu_custom_call.1} parent=1 // pred_check_branch
      %3113 = sbr.rel (0) target = $region69
    $region68: #{tpu_custom_call.1} parent=1 // pred_region
      _
    $region69: #{tpu_custom_call.1} parent=1 // pred_fallthru
      _
    %3114 = vsyncpa [#allocation7], 1
    %3115 = vsyncpa [#allocation10], 1
    %3116 = vsyncpa [#allocation8], 1
    %3117 = vsyncpa [#allocation14], 1

</llo_original>
